<compile_context>
chip_gen: v6e
topology: v6e:2x2x1
jax: 0.10.0
libtpu: 0.0.40
codegen_flags: <defaults>
</compile_context>

<pallas_src>
import functools

import jax
import jax.numpy as jnp
import numpy as np
from jax import lax
from jax.experimental import pallas as pl
from jax.experimental.pallas import tpu as pltpu

KH = KW = 3
NPAD = 128  # lane-dense logits padding


# ---------------------------------------------------------------------------
# Pallas kernel: packed-K conv matmul + bias + ReLU + MXU avg-pool + head
# ---------------------------------------------------------------------------
def _gbml_cnn_kernel(x_ref, wk_ref, bc_ref, pool_ref, wfc_ref, bfc_ref,
                     out_ref, lhs_ref, *, q, q_pad, wp, bt, cp):
    """Per-batch-tile fused SmallCNN forward.

    x_ref:    (bt, Hp*Wp, Cin_pad)  zero-padded images, NHWC flattened spatially
    wk_ref:   (KH*KW*Cin_pad, Cout) K-packed conv weights
    bc_ref:   (1, Cout)             conv bias
    pool_ref: (bt, bt*q_pad)        block pooling matrix (mask * 1/(H*W))
    wfc_ref:  (Cout, NPAD)          classifier weight (lane-padded)
    bfc_ref:  (1, NPAD)             classifier bias (lane-padded)
    out_ref:  (1, bt, NPAD)         lane-dense logits for this batch tile
    lhs_ref:  (bt*q_pad, KH*KW*Cin_pad) VMEM scratch, K-packed im2col slab
    """
    ktot = lhs_ref.shape[1]

    # 1) Build the K-packed im2col LHS in VMEM: 9 shifted slices straight from
    #    the x block (im2col fused in-kernel; nothing extra written to HBM).
    for b in range(bt):
        base = b * q_pad
        for t in range(KH * KW):
            dh, dw = divmod(t, KW)
            off = dh * wp + dw
            lhs_ref[base:base + q, t * cp:(t + 1) * cp] = x_ref[b, off:off + q, :]
        if q_pad > q:
            # zero sublane-padding rows so downstream values stay finite
            lhs_ref[base + q:base + q_pad, :] = jnp.zeros(
                (q_pad - q, ktot), jnp.float32)

    # 2) Single MXU conv matmul (K = taps*channels), bias + ReLU.
    acc = jnp.dot(lhs_ref[...], wk_ref[...], preferred_element_type=jnp.float32)
    act = jnp.maximum(acc + bc_ref[...], 0.0)          # (bt*q_pad, Cout)

    # 3) Masked global average pool on the MXU: (bt, bt*q_pad) @ (bt*q_pad, Cout).
    #    The pooling matrix zeroes row-wrap garbage / pad rows and carries 1/(H*W).
    pooled = jnp.dot(pool_ref[...], act,
                     preferred_element_type=jnp.float32)  # (bt, Cout)

    # 4) Classifier head on a lane-dense (bt, 128) tile.
    logits = jnp.dot(pooled, wfc_ref[...],
                     preferred_element_type=jnp.float32) + bfc_ref[...]
    out_ref[...] = logits[None].astype(out_ref.dtype)


# ---------------------------------------------------------------------------
# Wrapper: cheap layout prep + pallas_call with a batched grid
# ---------------------------------------------------------------------------
def gbml_forward(x, conv_w, conv_b, fc_w, fc_b):
    """Forward of the GBML-wrapped SmallCNN.

    x:      (B, Cin, H, W)  float32  (NCHW, PyTorch convention)
    conv_w: (Cout, Cin, 3, 3)
    conv_b: (Cout,)
    fc_w:   (Ncls, Cout)    (PyTorch Linear weight layout)
    fc_b:   (Ncls,)
    returns logits (B, Ncls)
    """
    B, Cin, H, W = x.shape
    Cout = conv_w.shape[0]
    Ncls = fc_w.shape[0]

    # Pad width to a multiple of 8 (>= W+2) so row-stride tap offsets are
    # sublane-aligned; extra right columns are zeros and masked out of the pool.
    Wp = -(-(W + 2) // 8) * 8
    Hp = H + 2
    MP = Hp * Wp
    Q = (H - 1) * Wp + W              # flat output rows (incl. row-wrap garbage)
    Q_pad = -(-Q // 8) * 8
    Cin_pad = -(-Cin // 8) * 8
    KTOT = KH * KW * Cin_pad

    # Batch tiling: amortize per-step overhead, but keep >=2 grid steps when
    # B >= 2 so both v7x TensorCores get work (no-op on v5e/v6e).
    Bt = min(max(1, -(-B // 2)), 8)
    G = -(-B // Bt)
    Bpad = G * Bt

    # ---- single pad pass (batch + channel + spatial) then transpose/flatten ----
    xp = jnp.pad(x.astype(jnp.float32),
                 ((0, Bpad - B), (0, Cin_pad - Cin), (1, 1), (1, Wp - W - 1)))
    x_flat = jnp.transpose(xp, (0, 2, 3, 1)).reshape(Bpad, MP, Cin_pad)

    # K-packed conv weights: row index = (dh*KW + dw)*Cin_pad + c.
    w_taps = jnp.transpose(conv_w.astype(jnp.float32), (2, 3, 1, 0))  # (KH,KW,Cin,Cout)
    w_taps = jnp.pad(w_taps, ((0, 0), (0, 0), (0, Cin_pad - Cin), (0, 0)))
    wk = w_taps.reshape(KTOT, Cout)
    bc = conv_b.reshape(1, Cout).astype(jnp.float32)

    # Block pooling matrix: valid iff flat index doesn't wrap into row padding.
    r = np.arange(Q_pad)
    valid_row = (((r % Wp) < W) & (r < Q)).astype(np.float32) / float(H * W)
    pool_np = np.zeros((Bt, Bt * Q_pad), np.float32)
    for b in range(Bt):
        pool_np[b, b * Q_pad:(b + 1) * Q_pad] = valid_row
    pool = jnp.asarray(pool_np)

    # Lane-padded classifier params.
    wfc = jnp.zeros((Cout, NPAD), jnp.float32).at[:, :Ncls].set(
        fc_w.T.astype(jnp.float32))
    bfc = jnp.zeros((1, NPAD), jnp.float32).at[:, :Ncls].set(
        fc_b.astype(jnp.float32))

    kernel = functools.partial(_gbml_cnn_kernel,
                               q=Q, q_pad=Q_pad, wp=Wp, bt=Bt, cp=Cin_pad)
    out = pl.pallas_call(
        kernel,
        out_shape=jax.ShapeDtypeStruct((G, Bt, NPAD), jnp.float32),
        grid_spec=pltpu.PrefetchScalarGridSpec(
            num_scalar_prefetch=0,
            grid=(G,),
            in_specs=[
                pl.BlockSpec((Bt, MP, Cin_pad), lambda i: (i, 0, 0)),
                pl.BlockSpec((KTOT, Cout), lambda i: (0, 0)),
                pl.BlockSpec((1, Cout), lambda i: (0, 0)),
                pl.BlockSpec((Bt, Bt * Q_pad), lambda i: (0, 0)),
                pl.BlockSpec((Cout, NPAD), lambda i: (0, 0)),
                pl.BlockSpec((1, NPAD), lambda i: (0, 0)),
            ],
            out_specs=pl.BlockSpec((1, Bt, NPAD), lambda i: (i, 0, 0)),
            scratch_shapes=[pltpu.VMEM((Bt * Q_pad, KTOT), jnp.float32)],
        ),
        compiler_params=pltpu.CompilerParams(
            dimension_semantics=("parallel",)),
    )(x_flat, wk, bc, pool, wfc, bfc)
    return out.reshape(G * Bt, NPAD)[:B, :Ncls]


# ---------------------------------------------------------------------------
# Pure-JAX reference (for correctness check)
# ---------------------------------------------------------------------------
def gbml_forward_ref(x, conv_w, conv_b, fc_w, fc_b):
    y = lax.conv_general_dilated(
        x, conv_w, window_strides=(1, 1), padding="SAME",
        dimension_numbers=("NCHW", "OIHW", "NCHW"))
    y = jnp.maximum(y + conv_b[None, :, None, None], 0.0)
    pooled = jnp.mean(y, axis=(2, 3))                       # (B, Cout)
    return pooled @ fc_w.T + fc_b[None, :]


if __name__ == "__main__":
    key = jax.random.PRNGKey(0)
    kx, kcw, kcb, kfw, kfb = jax.random.split(key, 5)

    B, Cin, H, W = 2, 4, 16, 16
    Cout, Ncls = 8, 5

    x = jax.random.normal(kx, (B, Cin, H, W), jnp.float32)
    # deterministic, PyTorch-style fan_in-scaled uniform init
    conv_fan_in = Cin * 3 * 3
    conv_w = jax.random.uniform(kcw, (Cout, Cin, 3, 3), jnp.float32,
                                -1.0, 1.0) / np.sqrt(conv_fan_in)
    conv_b = jax.random.uniform(kcb, (Cout,), jnp.float32,
                                -1.0, 1.0) / np.sqrt(conv_fan_in)
    fc_w = jax.random.uniform(kfw, (Ncls, Cout), jnp.float32,
                              -1.0, 1.0) / np.sqrt(Cout)
    fc_b = jax.random.uniform(kfb, (Ncls,), jnp.float32,
                              -1.0, 1.0) / np.sqrt(Cout)

    out = jax.jit(gbml_forward)(x, conv_w, conv_b, fc_w, fc_b)
    out = jax.block_until_ready(out)

    ref = gbml_forward_ref(x, conv_w, conv_b, fc_w, fc_b)
    np.testing.assert_allclose(np.asarray(out), np.asarray(ref),
                               rtol=1e-4, atol=1e-4)
    print("KERNEL_OK")
</pallas_src>

<mosaic_0001>
module attributes {stable_mosaic.version = 11 : i64} {
  func.func @_gbml_cnn_kernel(%arg0: i32, %arg1: memref<1x432x8xf32, #tpu.memory_space<vmem>>, %arg2: memref<72x8xf32, #tpu.memory_space<vmem>>, %arg3: memref<1x8xf32, #tpu.memory_space<vmem>>, %arg4: memref<1x376xf32, #tpu.memory_space<vmem>>, %arg5: memref<8x128xf32, #tpu.memory_space<vmem>>, %arg6: memref<1x128xf32, #tpu.memory_space<vmem>>, %arg7: memref<1x1x128xf32, #tpu.memory_space<vmem>>, %arg8: memref<376x72xf32, #tpu.memory_space<vmem>>) attributes {dimension_semantics = [#tpu.dimension_semantics<parallel>], iteration_bounds = array<i64: 2>, scalar_prefetch = 0 : i64, scratch_operands = 1 : i64, tpu.core_type = #tpu.core_type<tc>, window_params = [{transform_indices = @transform_0, window_bounds = array<i64: 1, 432, 8>}, {pipeline_mode = #tpu.pipeline_mode<synchronous>, transform_indices = @transform_1, window_bounds = array<i64: 72, 8>}, {pipeline_mode = #tpu.pipeline_mode<synchronous>, transform_indices = @transform_2, window_bounds = array<i64: 1, 8>}, {pipeline_mode = #tpu.pipeline_mode<synchronous>, transform_indices = @transform_3, window_bounds = array<i64: 1, 376>}, {pipeline_mode = #tpu.pipeline_mode<synchronous>, transform_indices = @transform_4, window_bounds = array<i64: 8, 128>}, {pipeline_mode = #tpu.pipeline_mode<synchronous>, transform_indices = @transform_5, window_bounds = array<i64: 1, 128>}, {transform_indices = @transform_6, window_bounds = array<i64: 1, 1, 128>}]} {
    %c0 = arith.constant 0 : index
    %c0_0 = arith.constant 0 : index
    %c0_1 = arith.constant 0 : index
    %0 = vector.load %arg1[%c0, %c0_0, %c0_1] : memref<1x432x8xf32, #tpu.memory_space<vmem>>, vector<1x376x8xf32>
    %1 = vector.shape_cast %0 : vector<1x376x8xf32> to vector<376x8xf32>
    %c0_2 = arith.constant 0 : index
    %c0_3 = arith.constant 0 : index
    %2 = vector.load %arg8[%c0_2, %c0_3] : memref<376x72xf32, #tpu.memory_space<vmem>>, vector<376x8xf32>
    tpu.vector_store %arg8[%c0_2, %c0_3], %1 {strides = array<i32>} : memref<376x72xf32, #tpu.memory_space<vmem>>, vector<376x8xf32>,
    %c0_4 = arith.constant 0 : index
    %c1 = arith.constant 1 : index
    %c0_5 = arith.constant 0 : index
    %3 = vector.load %arg1[%c0_4, %c1, %c0_5] : memref<1x432x8xf32, #tpu.memory_space<vmem>>, vector<1x376x8xf32>
    %4 = vector.shape_cast %3 : vector<1x376x8xf32> to vector<376x8xf32>
    %c0_6 = arith.constant 0 : index
    %c8 = arith.constant 8 : index
    %5 = vector.load %arg8[%c0_6, %c8] : memref<376x72xf32, #tpu.memory_space<vmem>>, vector<376x8xf32>
    tpu.vector_store %arg8[%c0_6, %c8], %4 {strides = array<i32>} : memref<376x72xf32, #tpu.memory_space<vmem>>, vector<376x8xf32>,
    %c0_7 = arith.constant 0 : index
    %c2 = arith.constant 2 : index
    %c0_8 = arith.constant 0 : index
    %6 = vector.load %arg1[%c0_7, %c2, %c0_8] : memref<1x432x8xf32, #tpu.memory_space<vmem>>, vector<1x376x8xf32>
    %7 = vector.shape_cast %6 : vector<1x376x8xf32> to vector<376x8xf32>
    %c0_9 = arith.constant 0 : index
    %c16 = arith.constant 16 : index
    %8 = vector.load %arg8[%c0_9, %c16] : memref<376x72xf32, #tpu.memory_space<vmem>>, vector<376x8xf32>
    tpu.vector_store %arg8[%c0_9, %c16], %7 {strides = array<i32>} : memref<376x72xf32, #tpu.memory_space<vmem>>, vector<376x8xf32>,
    %c0_10 = arith.constant 0 : index
    %c24 = arith.constant 24 : index
    %c0_11 = arith.constant 0 : index
    %9 = vector.load %arg1[%c0_10, %c24, %c0_11] : memref<1x432x8xf32, #tpu.memory_space<vmem>>, vector<1x376x8xf32>
    %10 = vector.shape_cast %9 : vector<1x376x8xf32> to vector<376x8xf32>
    %c0_12 = arith.constant 0 : index
    %c24_13 = arith.constant 24 : index
    %11 = vector.load %arg8[%c0_12, %c24_13] : memref<376x72xf32, #tpu.memory_space<vmem>>, vector<376x8xf32>
    tpu.vector_store %arg8[%c0_12, %c24_13], %10 {strides = array<i32>} : memref<376x72xf32, #tpu.memory_space<vmem>>, vector<376x8xf32>,
    %c0_14 = arith.constant 0 : index
    %c25 = arith.constant 25 : index
    %c0_15 = arith.constant 0 : index
    %12 = vector.load %arg1[%c0_14, %c25, %c0_15] : memref<1x432x8xf32, #tpu.memory_space<vmem>>, vector<1x376x8xf32>
    %13 = vector.shape_cast %12 : vector<1x376x8xf32> to vector<376x8xf32>
    %c0_16 = arith.constant 0 : index
    %c32 = arith.constant 32 : index
    %14 = vector.load %arg8[%c0_16, %c32] : memref<376x72xf32, #tpu.memory_space<vmem>>, vector<376x8xf32>
    tpu.vector_store %arg8[%c0_16, %c32], %13 {strides = array<i32>} : memref<376x72xf32, #tpu.memory_space<vmem>>, vector<376x8xf32>,
    %c0_17 = arith.constant 0 : index
    %c26 = arith.constant 26 : index
    %c0_18 = arith.constant 0 : index
    %15 = vector.load %arg1[%c0_17, %c26, %c0_18] : memref<1x432x8xf32, #tpu.memory_space<vmem>>, vector<1x376x8xf32>
    %16 = vector.shape_cast %15 : vector<1x376x8xf32> to vector<376x8xf32>
    %c0_19 = arith.constant 0 : index
    %c40 = arith.constant 40 : index
    %17 = vector.load %arg8[%c0_19, %c40] : memref<376x72xf32, #tpu.memory_space<vmem>>, vector<376x8xf32>
    tpu.vector_store %arg8[%c0_19, %c40], %16 {strides = array<i32>} : memref<376x72xf32, #tpu.memory_space<vmem>>, vector<376x8xf32>,
    %c0_20 = arith.constant 0 : index
    %c48 = arith.constant 48 : index
    %c0_21 = arith.constant 0 : index
    %18 = vector.load %arg1[%c0_20, %c48, %c0_21] : memref<1x432x8xf32, #tpu.memory_space<vmem>>, vector<1x376x8xf32>
    %19 = vector.shape_cast %18 : vector<1x376x8xf32> to vector<376x8xf32>
    %c0_22 = arith.constant 0 : index
    %c48_23 = arith.constant 48 : index
    %20 = vector.load %arg8[%c0_22, %c48_23] : memref<376x72xf32, #tpu.memory_space<vmem>>, vector<376x8xf32>
    tpu.vector_store %arg8[%c0_22, %c48_23], %19 {strides = array<i32>} : memref<376x72xf32, #tpu.memory_space<vmem>>, vector<376x8xf32>,
    %c0_24 = arith.constant 0 : index
    %c49 = arith.constant 49 : index
    %c0_25 = arith.constant 0 : index
    %21 = vector.load %arg1[%c0_24, %c49, %c0_25] : memref<1x432x8xf32, #tpu.memory_space<vmem>>, vector<1x376x8xf32>
    %22 = vector.shape_cast %21 : vector<1x376x8xf32> to vector<376x8xf32>
    %c0_26 = arith.constant 0 : index
    %c56 = arith.constant 56 : index
    %23 = vector.load %arg8[%c0_26, %c56] : memref<376x72xf32, #tpu.memory_space<vmem>>, vector<376x8xf32>
    tpu.vector_store %arg8[%c0_26, %c56], %22 {strides = array<i32>} : memref<376x72xf32, #tpu.memory_space<vmem>>, vector<376x8xf32>,
    %c0_27 = arith.constant 0 : index
    %c50 = arith.constant 50 : index
    %c0_28 = arith.constant 0 : index
    %24 = vector.load %arg1[%c0_27, %c50, %c0_28] : memref<1x432x8xf32, #tpu.memory_space<vmem>>, vector<1x376x8xf32>
    %25 = vector.shape_cast %24 : vector<1x376x8xf32> to vector<376x8xf32>
    %c0_29 = arith.constant 0 : index
    %c64 = arith.constant 64 : index
    %26 = vector.load %arg8[%c0_29, %c64] : memref<376x72xf32, #tpu.memory_space<vmem>>, vector<376x8xf32>
    tpu.vector_store %arg8[%c0_29, %c64], %25 {strides = array<i32>} : memref<376x72xf32, #tpu.memory_space<vmem>>, vector<376x8xf32>,
    %c0_30 = arith.constant 0 : index
    %c0_31 = arith.constant 0 : index
    %27 = vector.load %arg8[%c0_30, %c0_31] : memref<376x72xf32, #tpu.memory_space<vmem>>, vector<376x72xf32>
    %c0_32 = arith.constant 0 : index
    %c0_33 = arith.constant 0 : index
    %28 = vector.load %arg2[%c0_32, %c0_33] : memref<72x8xf32, #tpu.memory_space<vmem>>, vector<72x8xf32>
    %cst = arith.constant dense<0.000000e+00> : vector<376x8xf32>
    %29 = tpu.matmul %27, %28, %cst {dimension_numbers = #tpu.dot_dimension_numbers<[1], [0], [0], [1], [0, 0, 1, 1], [], []>} : vector<376x72xf32>, vector<72x8xf32>, vector<376x8xf32> -> vector<376x8xf32>
    %c0_34 = arith.constant 0 : index
    %c0_35 = arith.constant 0 : index
    %30 = vector.load %arg3[%c0_34, %c0_35] : memref<1x8xf32, #tpu.memory_space<vmem>>, vector<1x8xf32>
    %31 = vector.broadcast %30 : vector<1x8xf32> to vector<376x8xf32>
    %32 = arith.addf %29, %31 : vector<376x8xf32>
    %cst_36 = arith.constant 0.000000e+00 : f32
    %33 = vector.broadcast %cst_36 : f32 to vector<376x8xf32>
    %34 = arith.maximumf %32, %33 : vector<376x8xf32>
    %c0_37 = arith.constant 0 : index
    %c0_38 = arith.constant 0 : index
    %35 = vector.load %arg4[%c0_37, %c0_38] : memref<1x376xf32, #tpu.memory_space<vmem>>, vector<1x376xf32>
    %cst_39 = arith.constant dense<0.000000e+00> : vector<1x8xf32>
    %36 = tpu.matmul %35, %34, %cst_39 {dimension_numbers = #tpu.dot_dimension_numbers<[1], [0], [0], [1], [0, 0, 1, 1], [], []>} : vector<1x376xf32>, vector<376x8xf32>, vector<1x8xf32> -> vector<1x8xf32>
    %c0_40 = arith.constant 0 : index
    %c0_41 = arith.constant 0 : index
    %37 = vector.load %arg5[%c0_40, %c0_41] : memref<8x128xf32, #tpu.memory_space<vmem>>, vector<8x128xf32>
    %cst_42 = arith.constant dense<0.000000e+00> : vector<1x128xf32>
    %38 = tpu.matmul %36, %37, %cst_42 {dimension_numbers = #tpu.dot_dimension_numbers<[1], [0], [0], [1], [0, 0, 1, 1], [], []>} : vector<1x8xf32>, vector<8x128xf32>, vector<1x128xf32> -> vector<1x128xf32>
    %c0_43 = arith.constant 0 : index
    %c0_44 = arith.constant 0 : index
    %39 = vector.load %arg6[%c0_43, %c0_44] : memref<1x128xf32, #tpu.memory_space<vmem>>, vector<1x128xf32>
    %40 = arith.addf %38, %39 : vector<1x128xf32>
    %41 = vector.shape_cast %40 : vector<1x128xf32> to vector<1x1x128xf32>
    %c0_45 = arith.constant 0 : index
    %c0_46 = arith.constant 0 : index
    %c0_47 = arith.constant 0 : index
    %42 = vector.load %arg7[%c0_45, %c0_46, %c0_47] : memref<1x1x128xf32, #tpu.memory_space<vmem>>, vector<1x1x128xf32>
    tpu.vector_store %arg7[%c0_45, %c0_46, %c0_47], %41 {strides = array<i32>} : memref<1x1x128xf32, #tpu.memory_space<vmem>>, vector<1x1x128xf32>,
    return
  }
  func.func @transform_0(%arg0: i32) -> (i32, i32, i32) {
    %c0_i32 = arith.constant 0 : i32
    %c0_i32_0 = arith.constant 0 : i32
    %c0_i32_1 = arith.constant 0 : i32
    return %arg0, %c0_i32, %c0_i32_0 : i32, i32, i32
  }
  func.func @transform_1(%arg0: i32) -> (i32, i32) {
    %c0_i32 = arith.constant 0 : i32
    %c0_i32_0 = arith.constant 0 : i32
    %c0_i32_1 = arith.constant 0 : i32
    return %c0_i32, %c0_i32_0 : i32, i32
  }
  func.func @transform_2(%arg0: i32) -> (i32, i32) {
    %c0_i32 = arith.constant 0 : i32
    %c0_i32_0 = arith.constant 0 : i32
    %c0_i32_1 = arith.constant 0 : i32
    return %c0_i32, %c0_i32_0 : i32, i32
  }
  func.func @transform_3(%arg0: i32) -> (i32, i32) {
    %c0_i32 = arith.constant 0 : i32
    %c0_i32_0 = arith.constant 0 : i32
    %c0_i32_1 = arith.constant 0 : i32
    return %c0_i32, %c0_i32_0 : i32, i32
  }
  func.func @transform_4(%arg0: i32) -> (i32, i32) {
    %c0_i32 = arith.constant 0 : i32
    %c0_i32_0 = arith.constant 0 : i32
    %c0_i32_1 = arith.constant 0 : i32
    return %c0_i32, %c0_i32_0 : i32, i32
  }
  func.func @transform_5(%arg0: i32) -> (i32, i32) {
    %c0_i32 = arith.constant 0 : i32
    %c0_i32_0 = arith.constant 0 : i32
    %c0_i32_1 = arith.constant 0 : i32
    return %c0_i32, %c0_i32_0 : i32, i32
  }
  func.func @transform_6(%arg0: i32) -> (i32, i32, i32) {
    %c0_i32 = arith.constant 0 : i32
    %c0_i32_0 = arith.constant 0 : i32
    %c0_i32_1 = arith.constant 0 : i32
    return %arg0, %c0_i32, %c0_i32_0 : i32, i32, i32
  }
}

</mosaic_0001>

<llo_original>
// kernel: gbml_forward.1
$region0: #{gbml_forward.1}
  #allocation0 [shape = 'u32[]', space=smem, size = 0x4, offset = 0x4, fixed_abs, tag = 'smem constant byte address 0x4 - core index']
  #allocation1 [shape = 'u32[144,128]{1,0:T(1,128)}', space=vmem, size = 0x12000, scoped, tag = 'internal scratch']
  #allocation2 [shape = 'f32[376,72]{1,0:T(8,128)}', space=vmem, size = 0x2f000, scoped, tag = 'scratch operand']
  %s0 = inlined_call_operand.vmem [shape: f32[2,432,8], index: 0, kind: input, shape index: {}]
  %s1 = inlined_call_operand.vmem [shape: f32[72,8], index: 1, kind: input, shape index: {}]
  %s2 = inlined_call_operand.vmem [shape: f32[1,8], index: 2, kind: input, shape index: {}]
  %s3 = inlined_call_operand.vmem [shape: f32[1,376], index: 3, kind: input, shape index: {}]
  %s4 = inlined_call_operand.vmem [shape: f32[8,128], index: 4, kind: input, shape index: {}]
  %s5 = inlined_call_operand.vmem [shape: f32[1,128], index: 5, kind: input, shape index: {}]
  %s6 = inlined_call_operand.hbm [shape: f32[2,1,128], index: 6, kind: output, shape index: {}]
  %s7 = sld [smem:[#allocation0]]
  $region57: #{gbml_forward.1} parent=0
    _
  %s9 = ssub.s32 1, %s7
  %s10 = scalar_select 0, %s9, %s7
  $region1: #{gbml_forward.1} parent=0
    #allocation3 [shape = 'u8[1024]{0}', space=vmem, size = 0x400, scoped, tag = 'output window, operand 0']
    #allocation4 [shape = 's32[2]{0}', space=sflag, size = 0x8, scoped, tag = 'scoped memory for gbml_forward.1']
    %11 = vsyncpa [#allocation4], 0
    %s12 = scalar_lea.sflag [#allocation4], 1
    %13 = vsyncpa %s12, 0
    loop: start=0, step=1, limit=4
    $region2: #{gbml_forward.1} parent=1 // loop_pre_header
      _
    $region3: #{gbml_forward.1} parent=1 // loop_header
      %s15 = sphi 0, %s19
      %p16 = scmp.ge.s32.totalorder %s15, 4
      %s25 = sphi 0, %s27
      %s28 = sphi 0, %s25
      %s29 = sphi 0, %s28
      %s45 = sphi 0, %s29
      %s49 = sphi 0, %s49
      %s51 = sphi 0, %s49
      %s52 = sphi 0, %s51
      %s66 = sphi 0, %s52
      %s70 = sphi 0, %s70
      %s72 = sphi 0, %s70
      %s73 = sphi 0, %s72
      %s87 = sphi 0, %s73
      %s91 = sphi 0, %s91
      %s93 = sphi 0, %s91
      %s94 = sphi 0, %s93
      %s108 = sphi 0, %s94
      %s112 = sphi 0, %s112
      %s114 = sphi 0, %s112
      %s115 = sphi 0, %s114
      %s129 = sphi 0, %s115
      %s133 = sphi 0, %s133
      %s135 = sphi 0, %s133
      %s136 = sphi 0, %s135
      %s150 = sphi 0, %s136
      %s156 = sphi 0, %s158
      %s159 = sphi 0, %s156
      %s160 = sphi 0, %s159
      %s176 = sphi 0, %s160
    $region4: #{gbml_forward.1} parent=1 // loop_header_branch
      %18 = sbr.rel (%p16) target = $region8
    $region5: #{gbml_forward.1} parent=1 // loop_body
      %s20 = ssub.s32 %s15, 1
      %s21 = ssub.s32 %s15, 2
      %s22 = sadd.s32 %s15, 1
      %s23 = ssub.s32 %s15, %s22
      %p24 = scmp.eq.s32.totalorder %s23, 0
      %s26 = sadd.s32 %s25, 1
      %s27 = scalar_select %p24, %s25, %s26
      %p30 = pneg %p24
      %p31 = scmp.eq.s32.totalorder %s15, 1
      %p32 = por %p30, %p31
      %p33 = scmp.ne.s32.totalorder %s25, %s28
      %p34 = scmp.eq.s32.totalorder %s15, 0
      %p35 = por %p33, %p34
      %p36 = scmp.ne.s32.totalorder %s25, %s28
      %p37 = scmp.eq.s32.totalorder %s20, 1
      %p38 = por %p36, %p37
      %p39 = scmp.ne.s32.totalorder %s28, %s29
      %p40 = scmp.eq.s32.totalorder %s20, 0
      %p41 = por %p39, %p40
      %p42 = scmp.ne.s32.totalorder %s28, %s29
      %p43 = scmp.eq.s32.totalorder %s21, 1
      %p44 = por %p42, %p43
      %p46 = scmp.ne.s32.totalorder %s29, %s45
      %p47 = scmp.eq.s32.totalorder %s21, 0
      %p48 = por %p46, %p47
      %s50 = sadd.s32 %s49, 1
      %p53 = scmp.eq.s32.totalorder %s15, 1
      %p54 = scmp.ne.s32.totalorder %s49, %s51
      %p55 = scmp.eq.s32.totalorder %s15, 0
      %p56 = por %p54, %p55
      %p57 = scmp.ne.s32.totalorder %s49, %s51
      %p58 = scmp.eq.s32.totalorder %s20, 1
      %p59 = por %p57, %p58
      %p60 = scmp.ne.s32.totalorder %s51, %s52
      %p61 = scmp.eq.s32.totalorder %s20, 0
      %p62 = por %p60, %p61
      %p63 = scmp.ne.s32.totalorder %s51, %s52
      %p64 = scmp.eq.s32.totalorder %s21, 1
      %p65 = por %p63, %p64
      %p67 = scmp.ne.s32.totalorder %s52, %s66
      %p68 = scmp.eq.s32.totalorder %s21, 0
      %p69 = por %p67, %p68
      %s71 = sadd.s32 %s70, 1
      %p74 = scmp.eq.s32.totalorder %s15, 1
      %p75 = scmp.ne.s32.totalorder %s70, %s72
      %p76 = scmp.eq.s32.totalorder %s15, 0
      %p77 = por %p75, %p76
      %p78 = scmp.ne.s32.totalorder %s70, %s72
      %p79 = scmp.eq.s32.totalorder %s20, 1
      %p80 = por %p78, %p79
      %p81 = scmp.ne.s32.totalorder %s72, %s73
      %p82 = scmp.eq.s32.totalorder %s20, 0
      %p83 = por %p81, %p82
      %p84 = scmp.ne.s32.totalorder %s72, %s73
      %p85 = scmp.eq.s32.totalorder %s21, 1
      %p86 = por %p84, %p85
      %p88 = scmp.ne.s32.totalorder %s73, %s87
      %p89 = scmp.eq.s32.totalorder %s21, 0
      %p90 = por %p88, %p89
      %s92 = sadd.s32 %s91, 1
      %p95 = scmp.eq.s32.totalorder %s15, 1
      %p96 = scmp.ne.s32.totalorder %s91, %s93
      %p97 = scmp.eq.s32.totalorder %s15, 0
      %p98 = por %p96, %p97
      %p99 = scmp.ne.s32.totalorder %s91, %s93
      %p100 = scmp.eq.s32.totalorder %s20, 1
      %p101 = por %p99, %p100
      %p102 = scmp.ne.s32.totalorder %s93, %s94
      %p103 = scmp.eq.s32.totalorder %s20, 0
      %p104 = por %p102, %p103
      %p105 = scmp.ne.s32.totalorder %s93, %s94
      %p106 = scmp.eq.s32.totalorder %s21, 1
      %p107 = por %p105, %p106
      %p109 = scmp.ne.s32.totalorder %s94, %s108
      %p110 = scmp.eq.s32.totalorder %s21, 0
      %p111 = por %p109, %p110
      %s113 = sadd.s32 %s112, 1
      %p116 = scmp.eq.s32.totalorder %s15, 1
      %p117 = scmp.ne.s32.totalorder %s112, %s114
      %p118 = scmp.eq.s32.totalorder %s15, 0
      %p119 = por %p117, %p118
      %p120 = scmp.ne.s32.totalorder %s112, %s114
      %p121 = scmp.eq.s32.totalorder %s20, 1
      %p122 = por %p120, %p121
      %p123 = scmp.ne.s32.totalorder %s114, %s115
      %p124 = scmp.eq.s32.totalorder %s20, 0
      %p125 = por %p123, %p124
      %p126 = scmp.ne.s32.totalorder %s114, %s115
      %p127 = scmp.eq.s32.totalorder %s21, 1
      %p128 = por %p126, %p127
      %p130 = scmp.ne.s32.totalorder %s115, %s129
      %p131 = scmp.eq.s32.totalorder %s21, 0
      %p132 = por %p130, %p131
      %s134 = sadd.s32 %s133, 1
      %p137 = scmp.eq.s32.totalorder %s15, 1
      %p138 = scmp.ne.s32.totalorder %s133, %s135
      %p139 = scmp.eq.s32.totalorder %s15, 0
      %p140 = por %p138, %p139
      %p141 = scmp.ne.s32.totalorder %s133, %s135
      %p142 = scmp.eq.s32.totalorder %s20, 1
      %p143 = por %p141, %p142
      %p144 = scmp.ne.s32.totalorder %s135, %s136
      %p145 = scmp.eq.s32.totalorder %s20, 0
      %p146 = por %p144, %p145
      %p147 = scmp.ne.s32.totalorder %s135, %s136
      %p148 = scmp.eq.s32.totalorder %s21, 1
      %p149 = por %p147, %p148
      %p151 = scmp.ne.s32.totalorder %s136, %s150
      %p152 = scmp.eq.s32.totalorder %s21, 0
      %p153 = por %p151, %p152
      %s154 = ssub.s32 %s15, %s22
      %p155 = scmp.eq.s32.totalorder %s154, 0
      %s157 = sadd.s32 %s156, 1
      %s158 = scalar_select %p155, %s156, %s157
      %p161 = pneg %p155
      %p162 = scmp.eq.s32.totalorder %s15, 1
      %p163 = por %p161, %p162
      %p164 = scmp.ne.s32.totalorder %s156, %s159
      %p165 = scmp.eq.s32.totalorder %s15, 0
      %p166 = por %p164, %p165
      %p167 = scmp.ne.s32.totalorder %s156, %s159
      %p168 = scmp.eq.s32.totalorder %s20, 1
      %p169 = por %p167, %p168
      %p170 = scmp.ne.s32.totalorder %s159, %s160
      %p171 = scmp.eq.s32.totalorder %s20, 0
      %p172 = por %p170, %p171
      %p173 = scmp.ne.s32.totalorder %s159, %s160
      %p174 = scmp.eq.s32.totalorder %s21, 1
      %p175 = por %p173, %p174
      %p177 = scmp.ne.s32.totalorder %s160, %s176
      %p178 = scmp.eq.s32.totalorder %s21, 0
      %p179 = por %p177, %p178
      %p180 = scmp.le.s32.totalorder 1, %s15
      %p181 = scmp.lt.s32.totalorder %s15, 3
      %p182 = pnand %p180, %p181
      %p183 = pneg %p182
      // Predicated region
      $region9: #{gbml_forward.1} parent=5 // pred_check
        _
      $region10: #{gbml_forward.1} parent=5 // pred_check_branch
        %185 = sbr.rel (%p182) target = $region12
      $region11: #{gbml_forward.1} parent=5 // pred_region
        %s186 = ssub.s32 %s15, 1
        // Predicated region
        $region13: #{gbml_forward.1} parent=11 // pred_check
          %p187 = pneg %p62
        $region14: #{gbml_forward.1} parent=11 // pred_check_branch
          %189 = sbr.rel (%p187) target = $region16
        $region15: #{gbml_forward.1} parent=11 // pred_region
          _
        $region16: #{gbml_forward.1} parent=11 // pred_fallthru
          _
        // Predicated region
        $region17: #{gbml_forward.1} parent=11 // pred_check
          %p190 = pneg %p83
        $region18: #{gbml_forward.1} parent=11 // pred_check_branch
          %192 = sbr.rel (%p190) target = $region20
        $region19: #{gbml_forward.1} parent=11 // pred_region
          _
        $region20: #{gbml_forward.1} parent=11 // pred_fallthru
          _
        // Predicated region
        $region21: #{gbml_forward.1} parent=11 // pred_check
          %p193 = pneg %p104
        $region22: #{gbml_forward.1} parent=11 // pred_check_branch
          %195 = sbr.rel (%p193) target = $region24
        $region23: #{gbml_forward.1} parent=11 // pred_region
          _
        $region24: #{gbml_forward.1} parent=11 // pred_fallthru
          _
        // Predicated region
        $region25: #{gbml_forward.1} parent=11 // pred_check
          %p196 = pneg %p125
        $region26: #{gbml_forward.1} parent=11 // pred_check_branch
          %198 = sbr.rel (%p196) target = $region28
        $region27: #{gbml_forward.1} parent=11 // pred_region
          _
        $region28: #{gbml_forward.1} parent=11 // pred_fallthru
          _
        // Predicated region
        $region29: #{gbml_forward.1} parent=11 // pred_check
          %p199 = pneg %p146
        $region30: #{gbml_forward.1} parent=11 // pred_check_branch
          %201 = sbr.rel (%p199) target = $region32
        $region31: #{gbml_forward.1} parent=11 // pred_region
          _
        $region32: #{gbml_forward.1} parent=11 // pred_fallthru
          _
      $region12: #{gbml_forward.1} parent=5 // pred_fallthru
        _
      %p202 = scmp.lt.s32.totalorder %s15, 2
      // Predicated region
      $region33: #{gbml_forward.1} parent=5 // pred_check
        %p203 = pneg %p202
      $region34: #{gbml_forward.1} parent=5 // pred_check_branch
        %205 = sbr.rel (%p203) target = $region36
      $region35: #{gbml_forward.1} parent=5 // pred_region
        // Predicated region
        $region37: #{gbml_forward.1} parent=35 // pred_check
          %p206 = pneg %p35
        $region38: #{gbml_forward.1} parent=35 // pred_check_branch
          %208 = sbr.rel (%p206) target = $region40
        $region39: #{gbml_forward.1} parent=35 // pred_region
          %p209 = scmp.lt.s32.totalorder %s15, 1
          %s210 = scalar_select %p209, %s15, 1
          %s211 = smul.addr %s210, 54
          %s212 = smul.addr %s211, 8
          %s213 = scalar_lea.vmem %s0, %s212
        $region40: #{gbml_forward.1} parent=35 // pred_fallthru
          _
      $region36: #{gbml_forward.1} parent=5 // pred_fallthru
        _
      %p214 = scmp.le.s32.totalorder 1, %s15
      %p215 = scmp.lt.s32.totalorder %s15, 3
      %p216 = pnand %p214, %p215
      %p217 = pneg %p216
      // Predicated region
      $region41: #{gbml_forward.1} parent=5 // pred_check
        _
      $region42: #{gbml_forward.1} parent=5 // pred_check_branch
        %219 = sbr.rel (%p216) target = $region44
      $region43: #{gbml_forward.1} parent=5 // pred_region
        %s220 = ssub.s32 %s15, 1
        %p221 = scmp.lt.s32.totalorder %s20, 1
        %s222 = scalar_select %p221, %s20, 1
        %s223 = smul.addr %s222, 54
        %s224 = smul.addr %s223, 8
        %s225 = scalar_lea.vmem %s0, %s224
        %p226 = pneg %p41
        %p227 = pneg %p38
        %p228 = pneg %p62
        %p229 = pneg %p59
        %p230 = pneg %p83
        %p231 = pneg %p80
        %p232 = pneg %p104
        %p233 = pneg %p101
        %p234 = pneg %p125
        %p235 = pneg %p122
        %p236 = pneg %p146
        %p237 = pneg %p143
        %p238 = pneg %p172
        %p239 = pneg %p169
        %s240 = sand.u32 %s159, 1
        %s241 = scalar_lea.sflag [#allocation4], %s240
        %s242 = sand.u32 %s159, 1
        %s243 = scalar_lea.vmem [#allocation3], %s242
        %p244 = scmp.lt.s32.totalorder %s20, 1
        %s245 = scalar_select %p244, %s20, 1
        %s246 = smul.addr %s245, 54
        %s247 = smul.addr %s246, 8
        %s248 = scalar_lea.vmem %s0, %s247
        %v249 = vld [vmem:[%s248] sm:$0xff]
        %v250 = vld [vmem:[%s248 + $0x8] sm:$0xff]
        %v251 = vld [vmem:[%s248 + $0x10] sm:$0xff]
        %v252 = vld [vmem:[%s248 + $0x18] sm:$0xff]
        %v253 = vld [vmem:[%s248 + $0x20] sm:$0xff]
        %v254 = vld [vmem:[%s248 + $0x28] sm:$0xff]
        %v255 = vld [vmem:[%s248 + $0x30] sm:$0xff]
        %v256 = vld [vmem:[%s248 + $0x38] sm:$0xff]
        %v257 = vld [vmem:[%s248 + $0x40] sm:$0xff]
        %v258 = vld [vmem:[%s248 + $0x48] sm:$0xff]
        %v259 = vld [vmem:[%s248 + $0x50] sm:$0xff]
        %v260 = vld [vmem:[%s248 + $0x58] sm:$0xff]
        %v261 = vld [vmem:[%s248 + $0x60] sm:$0xff]
        %v262 = vld [vmem:[%s248 + $0x68] sm:$0xff]
        %v263 = vld [vmem:[%s248 + $0x70] sm:$0xff]
        %v264 = vld [vmem:[%s248 + $0x78] sm:$0xff]
        %v265 = vld [vmem:[%s248 + $0x80] sm:$0xff]
        %v266 = vld [vmem:[%s248 + $0x88] sm:$0xff]
        %v267 = vld [vmem:[%s248 + $0x90] sm:$0xff]
        %v268 = vld [vmem:[%s248 + $0x98] sm:$0xff]
        %v269 = vld [vmem:[%s248 + $0xa0] sm:$0xff]
        %v270 = vld [vmem:[%s248 + $0xa8] sm:$0xff]
        %v271 = vld [vmem:[%s248 + $0xb0] sm:$0xff]
        %v272 = vld [vmem:[%s248 + $0xb8] sm:$0xff]
        %v273 = vld [vmem:[%s248 + $0xc0] sm:$0xff]
        %v274 = vld [vmem:[%s248 + $0xc8] sm:$0xff]
        %v275 = vld [vmem:[%s248 + $0xd0] sm:$0xff]
        %v276 = vld [vmem:[%s248 + $0xd8] sm:$0xff]
        %v277 = vld [vmem:[%s248 + $0xe0] sm:$0xff]
        %v278 = vld [vmem:[%s248 + $0xe8] sm:$0xff]
        %v279 = vld [vmem:[%s248 + $0xf0] sm:$0xff]
        %v280 = vld [vmem:[%s248 + $0xf8] sm:$0xff]
        %v281 = vld [vmem:[%s248 + $0x100] sm:$0xff]
        %v282 = vld [vmem:[%s248 + $0x108] sm:$0xff]
        %v283 = vld [vmem:[%s248 + $0x110] sm:$0xff]
        %v284 = vld [vmem:[%s248 + $0x118] sm:$0xff]
        %v285 = vld [vmem:[%s248 + $0x120] sm:$0xff]
        %v286 = vld [vmem:[%s248 + $0x128] sm:$0xff]
        %v287 = vld [vmem:[%s248 + $0x130] sm:$0xff]
        %v288 = vld [vmem:[%s248 + $0x138] sm:$0xff]
        %v289 = vld [vmem:[%s248 + $0x140] sm:$0xff]
        %v290 = vld [vmem:[%s248 + $0x148] sm:$0xff]
        %v291 = vld [vmem:[%s248 + $0x150] sm:$0xff]
        %v292 = vld [vmem:[%s248 + $0x158] sm:$0xff]
        %v293 = vld [vmem:[%s248 + $0x160] sm:$0xff]
        %v294 = vld [vmem:[%s248 + $0x168] sm:$0xff]
        %v295 = vld [vmem:[%s248 + $0x170] sm:$0xff]
        %vm296 = vcmask 64512
        %297 = vst.msk [vmem:[#allocation2] sm:$0xff] %vm296, %v249
        %298 = vst.msk [vmem:[#allocation2 + $0x8] sm:$0xff] %vm296, %v250
        %299 = vst.msk [vmem:[#allocation2 + $0x10] sm:$0xff] %vm296, %v251
        %300 = vst.msk [vmem:[#allocation2 + $0x18] sm:$0xff] %vm296, %v252
        %301 = vst.msk [vmem:[#allocation2 + $0x20] sm:$0xff] %vm296, %v253
        %302 = vst.msk [vmem:[#allocation2 + $0x28] sm:$0xff] %vm296, %v254
        %303 = vst.msk [vmem:[#allocation2 + $0x30] sm:$0xff] %vm296, %v255
        %304 = vst.msk [vmem:[#allocation2 + $0x38] sm:$0xff] %vm296, %v256
        %305 = vst.msk [vmem:[#allocation2 + $0x40] sm:$0xff] %vm296, %v257
        %306 = vst.msk [vmem:[#allocation2 + $0x48] sm:$0xff] %vm296, %v258
        %307 = vst.msk [vmem:[#allocation2 + $0x50] sm:$0xff] %vm296, %v259
        %308 = vst.msk [vmem:[#allocation2 + $0x58] sm:$0xff] %vm296, %v260
        %309 = vst.msk [vmem:[#allocation2 + $0x60] sm:$0xff] %vm296, %v261
        %310 = vst.msk [vmem:[#allocation2 + $0x68] sm:$0xff] %vm296, %v262
        %311 = vst.msk [vmem:[#allocation2 + $0x70] sm:$0xff] %vm296, %v263
        %312 = vst.msk [vmem:[#allocation2 + $0x78] sm:$0xff] %vm296, %v264
        %313 = vst.msk [vmem:[#allocation2 + $0x80] sm:$0xff] %vm296, %v265
        %314 = vst.msk [vmem:[#allocation2 + $0x88] sm:$0xff] %vm296, %v266
        %315 = vst.msk [vmem:[#allocation2 + $0x90] sm:$0xff] %vm296, %v267
        %316 = vst.msk [vmem:[#allocation2 + $0x98] sm:$0xff] %vm296, %v268
        %317 = vst.msk [vmem:[#allocation2 + $0xa0] sm:$0xff] %vm296, %v269
        %318 = vst.msk [vmem:[#allocation2 + $0xa8] sm:$0xff] %vm296, %v270
        %319 = vst.msk [vmem:[#allocation2 + $0xb0] sm:$0xff] %vm296, %v271
        %320 = vst.msk [vmem:[#allocation2 + $0xb8] sm:$0xff] %vm296, %v272
        %321 = vst.msk [vmem:[#allocation2 + $0xc0] sm:$0xff] %vm296, %v273
        %322 = vst.msk [vmem:[#allocation2 + $0xc8] sm:$0xff] %vm296, %v274
        %323 = vst.msk [vmem:[#allocation2 + $0xd0] sm:$0xff] %vm296, %v275
        %324 = vst.msk [vmem:[#allocation2 + $0xd8] sm:$0xff] %vm296, %v276
        %325 = vst.msk [vmem:[#allocation2 + $0xe0] sm:$0xff] %vm296, %v277
        %326 = vst.msk [vmem:[#allocation2 + $0xe8] sm:$0xff] %vm296, %v278
        %327 = vst.msk [vmem:[#allocation2 + $0xf0] sm:$0xff] %vm296, %v279
        %328 = vst.msk [vmem:[#allocation2 + $0xf8] sm:$0xff] %vm296, %v280
        %329 = vst.msk [vmem:[#allocation2 + $0x100] sm:$0xff] %vm296, %v281
        %330 = vst.msk [vmem:[#allocation2 + $0x108] sm:$0xff] %vm296, %v282
        %331 = vst.msk [vmem:[#allocation2 + $0x110] sm:$0xff] %vm296, %v283
        %332 = vst.msk [vmem:[#allocation2 + $0x118] sm:$0xff] %vm296, %v284
        %333 = vst.msk [vmem:[#allocation2 + $0x120] sm:$0xff] %vm296, %v285
        %334 = vst.msk [vmem:[#allocation2 + $0x128] sm:$0xff] %vm296, %v286
        %335 = vst.msk [vmem:[#allocation2 + $0x130] sm:$0xff] %vm296, %v287
        %336 = vst.msk [vmem:[#allocation2 + $0x138] sm:$0xff] %vm296, %v288
        %337 = vst.msk [vmem:[#allocation2 + $0x140] sm:$0xff] %vm296, %v289
        %338 = vst.msk [vmem:[#allocation2 + $0x148] sm:$0xff] %vm296, %v290
        %339 = vst.msk [vmem:[#allocation2 + $0x150] sm:$0xff] %vm296, %v291
        %340 = vst.msk [vmem:[#allocation2 + $0x158] sm:$0xff] %vm296, %v292
        %341 = vst.msk [vmem:[#allocation2 + $0x160] sm:$0xff] %vm296, %v293
        %342 = vst.msk [vmem:[#allocation2 + $0x168] sm:$0xff] %vm296, %v294
        %343 = vst.msk [vmem:[#allocation2 + $0x170] sm:$0xff] %vm296, %v295
        %v344 = vld [vmem:[%s248 + $0x1] sm:$0xff]
        %v345 = vld [vmem:[%s248 + $0x9] sm:$0xff]
        %v346 = vld [vmem:[%s248 + $0x11] sm:$0xff]
        %v347 = vld [vmem:[%s248 + $0x19] sm:$0xff]
        %v348 = vld [vmem:[%s248 + $0x21] sm:$0xff]
        %v349 = vld [vmem:[%s248 + $0x29] sm:$0xff]
        %v350 = vld [vmem:[%s248 + $0x31] sm:$0xff]
        %v351 = vld [vmem:[%s248 + $0x39] sm:$0xff]
        %v352 = vld [vmem:[%s248 + $0x41] sm:$0xff]
        %v353 = vld [vmem:[%s248 + $0x49] sm:$0xff]
        %v354 = vld [vmem:[%s248 + $0x51] sm:$0xff]
        %v355 = vld [vmem:[%s248 + $0x59] sm:$0xff]
        %v356 = vld [vmem:[%s248 + $0x61] sm:$0xff]
        %v357 = vld [vmem:[%s248 + $0x69] sm:$0xff]
        %v358 = vld [vmem:[%s248 + $0x71] sm:$0xff]
        %v359 = vld [vmem:[%s248 + $0x79] sm:$0xff]
        %v360 = vld [vmem:[%s248 + $0x81] sm:$0xff]
        %v361 = vld [vmem:[%s248 + $0x89] sm:$0xff]
        %v362 = vld [vmem:[%s248 + $0x91] sm:$0xff]
        %v363 = vld [vmem:[%s248 + $0x99] sm:$0xff]
        %v364 = vld [vmem:[%s248 + $0xa1] sm:$0xff]
        %v365 = vld [vmem:[%s248 + $0xa9] sm:$0xff]
        %v366 = vld [vmem:[%s248 + $0xb1] sm:$0xff]
        %v367 = vld [vmem:[%s248 + $0xb9] sm:$0xff]
        %v368 = vld [vmem:[%s248 + $0xc1] sm:$0xff]
        %v369 = vld [vmem:[%s248 + $0xc9] sm:$0xff]
        %v370 = vld [vmem:[%s248 + $0xd1] sm:$0xff]
        %v371 = vld [vmem:[%s248 + $0xd9] sm:$0xff]
        %v372 = vld [vmem:[%s248 + $0xe1] sm:$0xff]
        %v373 = vld [vmem:[%s248 + $0xe9] sm:$0xff]
        %v374 = vld [vmem:[%s248 + $0xf1] sm:$0xff]
        %v375 = vld [vmem:[%s248 + $0xf9] sm:$0xff]
        %v376 = vld [vmem:[%s248 + $0x101] sm:$0xff]
        %v377 = vld [vmem:[%s248 + $0x109] sm:$0xff]
        %v378 = vld [vmem:[%s248 + $0x111] sm:$0xff]
        %v379 = vld [vmem:[%s248 + $0x119] sm:$0xff]
        %v380 = vld [vmem:[%s248 + $0x121] sm:$0xff]
        %v381 = vld [vmem:[%s248 + $0x129] sm:$0xff]
        %v382 = vld [vmem:[%s248 + $0x131] sm:$0xff]
        %v383 = vld [vmem:[%s248 + $0x139] sm:$0xff]
        %v384 = vld [vmem:[%s248 + $0x141] sm:$0xff]
        %v385 = vld [vmem:[%s248 + $0x149] sm:$0xff]
        %v386 = vld [vmem:[%s248 + $0x151] sm:$0xff]
        %v387 = vld [vmem:[%s248 + $0x159] sm:$0xff]
        %v388 = vld [vmem:[%s248 + $0x161] sm:$0xff]
        %v389 = vld [vmem:[%s248 + $0x169] sm:$0xff]
        %v390 = vld [vmem:[%s248 + $0x171] sm:$0xff]
        %438 = vrot.lane.b32.xlu0 %v344, 8
        %v439 = vpop.permute.xlu0 %438
        %440 = vrot.lane.b32.xlu0 %v345, 8
        %v441 = vpop.permute.xlu0 %440
        %442 = vrot.lane.b32.xlu0 %v346, 8
        %v443 = vpop.permute.xlu0 %442
        %444 = vrot.lane.b32.xlu0 %v347, 8
        %v445 = vpop.permute.xlu0 %444
        %446 = vrot.lane.b32.xlu0 %v348, 8
        %v447 = vpop.permute.xlu0 %446
        %448 = vrot.lane.b32.xlu0 %v349, 8
        %v449 = vpop.permute.xlu0 %448
        %450 = vrot.lane.b32.xlu0 %v350, 8
        %v451 = vpop.permute.xlu0 %450
        %452 = vrot.lane.b32.xlu0 %v351, 8
        %v453 = vpop.permute.xlu0 %452
        %454 = vrot.lane.b32.xlu0 %v352, 8
        %v455 = vpop.permute.xlu0 %454
        %456 = vrot.lane.b32.xlu0 %v353, 8
        %v457 = vpop.permute.xlu0 %456
        %458 = vrot.lane.b32.xlu0 %v354, 8
        %v459 = vpop.permute.xlu0 %458
        %460 = vrot.lane.b32.xlu0 %v355, 8
        %v461 = vpop.permute.xlu0 %460
        %462 = vrot.lane.b32.xlu0 %v356, 8
        %v463 = vpop.permute.xlu0 %462
        %464 = vrot.lane.b32.xlu0 %v357, 8
        %v465 = vpop.permute.xlu0 %464
        %466 = vrot.lane.b32.xlu0 %v358, 8
        %v467 = vpop.permute.xlu0 %466
        %468 = vrot.lane.b32.xlu0 %v359, 8
        %v469 = vpop.permute.xlu0 %468
        %470 = vrot.lane.b32.xlu0 %v360, 8
        %v471 = vpop.permute.xlu0 %470
        %472 = vrot.lane.b32.xlu0 %v361, 8
        %v473 = vpop.permute.xlu0 %472
        %474 = vrot.lane.b32.xlu0 %v362, 8
        %v475 = vpop.permute.xlu0 %474
        %476 = vrot.lane.b32.xlu0 %v363, 8
        %v477 = vpop.permute.xlu0 %476
        %478 = vrot.lane.b32.xlu0 %v364, 8
        %v479 = vpop.permute.xlu0 %478
        %480 = vrot.lane.b32.xlu0 %v365, 8
        %v481 = vpop.permute.xlu0 %480
        %482 = vrot.lane.b32.xlu0 %v366, 8
        %v483 = vpop.permute.xlu0 %482
        %484 = vrot.lane.b32.xlu0 %v367, 8
        %v485 = vpop.permute.xlu0 %484
        %486 = vrot.lane.b32.xlu0 %v368, 8
        %v487 = vpop.permute.xlu0 %486
        %488 = vrot.lane.b32.xlu0 %v369, 8
        %v489 = vpop.permute.xlu0 %488
        %490 = vrot.lane.b32.xlu0 %v370, 8
        %v491 = vpop.permute.xlu0 %490
        %492 = vrot.lane.b32.xlu0 %v371, 8
        %v493 = vpop.permute.xlu0 %492
        %494 = vrot.lane.b32.xlu0 %v372, 8
        %v495 = vpop.permute.xlu0 %494
        %496 = vrot.lane.b32.xlu0 %v373, 8
        %v497 = vpop.permute.xlu0 %496
        %498 = vrot.lane.b32.xlu0 %v374, 8
        %v499 = vpop.permute.xlu0 %498
        %500 = vrot.lane.b32.xlu0 %v375, 8
        %v501 = vpop.permute.xlu0 %500
        %502 = vrot.lane.b32.xlu0 %v376, 8
        %v503 = vpop.permute.xlu0 %502
        %504 = vrot.lane.b32.xlu0 %v377, 8
        %v505 = vpop.permute.xlu0 %504
        %506 = vrot.lane.b32.xlu0 %v378, 8
        %v507 = vpop.permute.xlu0 %506
        %508 = vrot.lane.b32.xlu0 %v379, 8
        %v509 = vpop.permute.xlu0 %508
        %510 = vrot.lane.b32.xlu0 %v380, 8
        %v511 = vpop.permute.xlu0 %510
        %512 = vrot.lane.b32.xlu0 %v381, 8
        %v513 = vpop.permute.xlu0 %512
        %514 = vrot.lane.b32.xlu0 %v382, 8
        %v515 = vpop.permute.xlu0 %514
        %516 = vrot.lane.b32.xlu0 %v383, 8
        %v517 = vpop.permute.xlu0 %516
        %518 = vrot.lane.b32.xlu0 %v384, 8
        %v519 = vpop.permute.xlu0 %518
        %520 = vrot.lane.b32.xlu0 %v385, 8
        %v521 = vpop.permute.xlu0 %520
        %522 = vrot.lane.b32.xlu0 %v386, 8
        %v523 = vpop.permute.xlu0 %522
        %524 = vrot.lane.b32.xlu0 %v387, 8
        %v525 = vpop.permute.xlu0 %524
        %526 = vrot.lane.b32.xlu0 %v388, 8
        %v527 = vpop.permute.xlu0 %526
        %528 = vrot.lane.b32.xlu0 %v389, 8
        %v529 = vpop.permute.xlu0 %528
        %530 = vrot.lane.b32.xlu0 %v390, 8
        %v531 = vpop.permute.xlu0 %530
        %vm579 = vcmask 130112
        %580 = vst.msk [vmem:[#allocation2] sm:$0xff] %vm579, %v439
        %581 = vst.msk [vmem:[#allocation2 + $0x8] sm:$0xff] %vm579, %v441
        %582 = vst.msk [vmem:[#allocation2 + $0x10] sm:$0xff] %vm579, %v443
        %583 = vst.msk [vmem:[#allocation2 + $0x18] sm:$0xff] %vm579, %v445
        %584 = vst.msk [vmem:[#allocation2 + $0x20] sm:$0xff] %vm579, %v447
        %585 = vst.msk [vmem:[#allocation2 + $0x28] sm:$0xff] %vm579, %v449
        %586 = vst.msk [vmem:[#allocation2 + $0x30] sm:$0xff] %vm579, %v451
        %587 = vst.msk [vmem:[#allocation2 + $0x38] sm:$0xff] %vm579, %v453
        %588 = vst.msk [vmem:[#allocation2 + $0x40] sm:$0xff] %vm579, %v455
        %589 = vst.msk [vmem:[#allocation2 + $0x48] sm:$0xff] %vm579, %v457
        %590 = vst.msk [vmem:[#allocation2 + $0x50] sm:$0xff] %vm579, %v459
        %591 = vst.msk [vmem:[#allocation2 + $0x58] sm:$0xff] %vm579, %v461
        %592 = vst.msk [vmem:[#allocation2 + $0x60] sm:$0xff] %vm579, %v463
        %593 = vst.msk [vmem:[#allocation2 + $0x68] sm:$0xff] %vm579, %v465
        %594 = vst.msk [vmem:[#allocation2 + $0x70] sm:$0xff] %vm579, %v467
        %595 = vst.msk [vmem:[#allocation2 + $0x78] sm:$0xff] %vm579, %v469
        %596 = vst.msk [vmem:[#allocation2 + $0x80] sm:$0xff] %vm579, %v471
        %597 = vst.msk [vmem:[#allocation2 + $0x88] sm:$0xff] %vm579, %v473
        %598 = vst.msk [vmem:[#allocation2 + $0x90] sm:$0xff] %vm579, %v475
        %599 = vst.msk [vmem:[#allocation2 + $0x98] sm:$0xff] %vm579, %v477
        %600 = vst.msk [vmem:[#allocation2 + $0xa0] sm:$0xff] %vm579, %v479
        %601 = vst.msk [vmem:[#allocation2 + $0xa8] sm:$0xff] %vm579, %v481
        %602 = vst.msk [vmem:[#allocation2 + $0xb0] sm:$0xff] %vm579, %v483
        %603 = vst.msk [vmem:[#allocation2 + $0xb8] sm:$0xff] %vm579, %v485
        %604 = vst.msk [vmem:[#allocation2 + $0xc0] sm:$0xff] %vm579, %v487
        %605 = vst.msk [vmem:[#allocation2 + $0xc8] sm:$0xff] %vm579, %v489
        %606 = vst.msk [vmem:[#allocation2 + $0xd0] sm:$0xff] %vm579, %v491
        %607 = vst.msk [vmem:[#allocation2 + $0xd8] sm:$0xff] %vm579, %v493
        %608 = vst.msk [vmem:[#allocation2 + $0xe0] sm:$0xff] %vm579, %v495
        %609 = vst.msk [vmem:[#allocation2 + $0xe8] sm:$0xff] %vm579, %v497
        %610 = vst.msk [vmem:[#allocation2 + $0xf0] sm:$0xff] %vm579, %v499
        %611 = vst.msk [vmem:[#allocation2 + $0xf8] sm:$0xff] %vm579, %v501
        %612 = vst.msk [vmem:[#allocation2 + $0x100] sm:$0xff] %vm579, %v503
        %613 = vst.msk [vmem:[#allocation2 + $0x108] sm:$0xff] %vm579, %v505
        %614 = vst.msk [vmem:[#allocation2 + $0x110] sm:$0xff] %vm579, %v507
        %615 = vst.msk [vmem:[#allocation2 + $0x118] sm:$0xff] %vm579, %v509
        %616 = vst.msk [vmem:[#allocation2 + $0x120] sm:$0xff] %vm579, %v511
        %617 = vst.msk [vmem:[#allocation2 + $0x128] sm:$0xff] %vm579, %v513
        %618 = vst.msk [vmem:[#allocation2 + $0x130] sm:$0xff] %vm579, %v515
        %619 = vst.msk [vmem:[#allocation2 + $0x138] sm:$0xff] %vm579, %v517
        %620 = vst.msk [vmem:[#allocation2 + $0x140] sm:$0xff] %vm579, %v519
        %621 = vst.msk [vmem:[#allocation2 + $0x148] sm:$0xff] %vm579, %v521
        %622 = vst.msk [vmem:[#allocation2 + $0x150] sm:$0xff] %vm579, %v523
        %623 = vst.msk [vmem:[#allocation2 + $0x158] sm:$0xff] %vm579, %v525
        %624 = vst.msk [vmem:[#allocation2 + $0x160] sm:$0xff] %vm579, %v527
        %625 = vst.msk [vmem:[#allocation2 + $0x168] sm:$0xff] %vm579, %v529
        %626 = vst.msk [vmem:[#allocation2 + $0x170] sm:$0xff] %vm579, %v531
        %v627 = vld [vmem:[%s248 + $0x2] sm:$0xff]
        %v628 = vld [vmem:[%s248 + $0xa] sm:$0xff]
        %v629 = vld [vmem:[%s248 + $0x12] sm:$0xff]
        %v630 = vld [vmem:[%s248 + $0x1a] sm:$0xff]
        %v631 = vld [vmem:[%s248 + $0x22] sm:$0xff]
        %v632 = vld [vmem:[%s248 + $0x2a] sm:$0xff]
        %v633 = vld [vmem:[%s248 + $0x32] sm:$0xff]
        %v634 = vld [vmem:[%s248 + $0x3a] sm:$0xff]
        %v635 = vld [vmem:[%s248 + $0x42] sm:$0xff]
        %v636 = vld [vmem:[%s248 + $0x4a] sm:$0xff]
        %v637 = vld [vmem:[%s248 + $0x52] sm:$0xff]
        %v638 = vld [vmem:[%s248 + $0x5a] sm:$0xff]
        %v639 = vld [vmem:[%s248 + $0x62] sm:$0xff]
        %v640 = vld [vmem:[%s248 + $0x6a] sm:$0xff]
        %v641 = vld [vmem:[%s248 + $0x72] sm:$0xff]
        %v642 = vld [vmem:[%s248 + $0x7a] sm:$0xff]
        %v643 = vld [vmem:[%s248 + $0x82] sm:$0xff]
        %v644 = vld [vmem:[%s248 + $0x8a] sm:$0xff]
        %v645 = vld [vmem:[%s248 + $0x92] sm:$0xff]
        %v646 = vld [vmem:[%s248 + $0x9a] sm:$0xff]
        %v647 = vld [vmem:[%s248 + $0xa2] sm:$0xff]
        %v648 = vld [vmem:[%s248 + $0xaa] sm:$0xff]
        %v649 = vld [vmem:[%s248 + $0xb2] sm:$0xff]
        %v650 = vld [vmem:[%s248 + $0xba] sm:$0xff]
        %v651 = vld [vmem:[%s248 + $0xc2] sm:$0xff]
        %v652 = vld [vmem:[%s248 + $0xca] sm:$0xff]
        %v653 = vld [vmem:[%s248 + $0xd2] sm:$0xff]
        %v654 = vld [vmem:[%s248 + $0xda] sm:$0xff]
        %v655 = vld [vmem:[%s248 + $0xe2] sm:$0xff]
        %v656 = vld [vmem:[%s248 + $0xea] sm:$0xff]
        %v657 = vld [vmem:[%s248 + $0xf2] sm:$0xff]
        %v658 = vld [vmem:[%s248 + $0xfa] sm:$0xff]
        %v659 = vld [vmem:[%s248 + $0x102] sm:$0xff]
        %v660 = vld [vmem:[%s248 + $0x10a] sm:$0xff]
        %v661 = vld [vmem:[%s248 + $0x112] sm:$0xff]
        %v662 = vld [vmem:[%s248 + $0x11a] sm:$0xff]
        %v663 = vld [vmem:[%s248 + $0x122] sm:$0xff]
        %v664 = vld [vmem:[%s248 + $0x12a] sm:$0xff]
        %v665 = vld [vmem:[%s248 + $0x132] sm:$0xff]
        %v666 = vld [vmem:[%s248 + $0x13a] sm:$0xff]
        %v667 = vld [vmem:[%s248 + $0x142] sm:$0xff]
        %v668 = vld [vmem:[%s248 + $0x14a] sm:$0xff]
        %v669 = vld [vmem:[%s248 + $0x152] sm:$0xff]
        %v670 = vld [vmem:[%s248 + $0x15a] sm:$0xff]
        %v671 = vld [vmem:[%s248 + $0x162] sm:$0xff]
        %v672 = vld [vmem:[%s248 + $0x16a] sm:$0xff]
        %v673 = vld [vmem:[%s248 + $0x172] sm:$0xff]
        %721 = vrot.lane.b32.xlu0 %v627, 16
        %v722 = vpop.permute.xlu0 %721
        %723 = vrot.lane.b32.xlu0 %v628, 16
        %v724 = vpop.permute.xlu0 %723
        %725 = vrot.lane.b32.xlu0 %v629, 16
        %v726 = vpop.permute.xlu0 %725
        %727 = vrot.lane.b32.xlu0 %v630, 16
        %v728 = vpop.permute.xlu0 %727
        %729 = vrot.lane.b32.xlu0 %v631, 16
        %v730 = vpop.permute.xlu0 %729
        %731 = vrot.lane.b32.xlu0 %v632, 16
        %v732 = vpop.permute.xlu0 %731
        %733 = vrot.lane.b32.xlu0 %v633, 16
        %v734 = vpop.permute.xlu0 %733
        %735 = vrot.lane.b32.xlu0 %v634, 16
        %v736 = vpop.permute.xlu0 %735
        %737 = vrot.lane.b32.xlu0 %v635, 16
        %v738 = vpop.permute.xlu0 %737
        %739 = vrot.lane.b32.xlu0 %v636, 16
        %v740 = vpop.permute.xlu0 %739
        %741 = vrot.lane.b32.xlu0 %v637, 16
        %v742 = vpop.permute.xlu0 %741
        %743 = vrot.lane.b32.xlu0 %v638, 16
        %v744 = vpop.permute.xlu0 %743
        %745 = vrot.lane.b32.xlu0 %v639, 16
        %v746 = vpop.permute.xlu0 %745
        %747 = vrot.lane.b32.xlu0 %v640, 16
        %v748 = vpop.permute.xlu0 %747
        %749 = vrot.lane.b32.xlu0 %v641, 16
        %v750 = vpop.permute.xlu0 %749
        %751 = vrot.lane.b32.xlu0 %v642, 16
        %v752 = vpop.permute.xlu0 %751
        %753 = vrot.lane.b32.xlu0 %v643, 16
        %v754 = vpop.permute.xlu0 %753
        %755 = vrot.lane.b32.xlu0 %v644, 16
        %v756 = vpop.permute.xlu0 %755
        %757 = vrot.lane.b32.xlu0 %v645, 16
        %v758 = vpop.permute.xlu0 %757
        %759 = vrot.lane.b32.xlu0 %v646, 16
        %v760 = vpop.permute.xlu0 %759
        %761 = vrot.lane.b32.xlu0 %v647, 16
        %v762 = vpop.permute.xlu0 %761
        %763 = vrot.lane.b32.xlu0 %v648, 16
        %v764 = vpop.permute.xlu0 %763
        %765 = vrot.lane.b32.xlu0 %v649, 16
        %v766 = vpop.permute.xlu0 %765
        %767 = vrot.lane.b32.xlu0 %v650, 16
        %v768 = vpop.permute.xlu0 %767
        %769 = vrot.lane.b32.xlu0 %v651, 16
        %v770 = vpop.permute.xlu0 %769
        %771 = vrot.lane.b32.xlu0 %v652, 16
        %v772 = vpop.permute.xlu0 %771
        %773 = vrot.lane.b32.xlu0 %v653, 16
        %v774 = vpop.permute.xlu0 %773
        %775 = vrot.lane.b32.xlu0 %v654, 16
        %v776 = vpop.permute.xlu0 %775
        %777 = vrot.lane.b32.xlu0 %v655, 16
        %v778 = vpop.permute.xlu0 %777
        %779 = vrot.lane.b32.xlu0 %v656, 16
        %v780 = vpop.permute.xlu0 %779
        %781 = vrot.lane.b32.xlu0 %v657, 16
        %v782 = vpop.permute.xlu0 %781
        %783 = vrot.lane.b32.xlu0 %v658, 16
        %v784 = vpop.permute.xlu0 %783
        %785 = vrot.lane.b32.xlu0 %v659, 16
        %v786 = vpop.permute.xlu0 %785
        %787 = vrot.lane.b32.xlu0 %v660, 16
        %v788 = vpop.permute.xlu0 %787
        %789 = vrot.lane.b32.xlu0 %v661, 16
        %v790 = vpop.permute.xlu0 %789
        %791 = vrot.lane.b32.xlu0 %v662, 16
        %v792 = vpop.permute.xlu0 %791
        %793 = vrot.lane.b32.xlu0 %v663, 16
        %v794 = vpop.permute.xlu0 %793
        %795 = vrot.lane.b32.xlu0 %v664, 16
        %v796 = vpop.permute.xlu0 %795
        %797 = vrot.lane.b32.xlu0 %v665, 16
        %v798 = vpop.permute.xlu0 %797
        %799 = vrot.lane.b32.xlu0 %v666, 16
        %v800 = vpop.permute.xlu0 %799
        %801 = vrot.lane.b32.xlu0 %v667, 16
        %v802 = vpop.permute.xlu0 %801
        %803 = vrot.lane.b32.xlu0 %v668, 16
        %v804 = vpop.permute.xlu0 %803
        %805 = vrot.lane.b32.xlu0 %v669, 16
        %v806 = vpop.permute.xlu0 %805
        %807 = vrot.lane.b32.xlu0 %v670, 16
        %v808 = vpop.permute.xlu0 %807
        %809 = vrot.lane.b32.xlu0 %v671, 16
        %v810 = vpop.permute.xlu0 %809
        %811 = vrot.lane.b32.xlu0 %v672, 16
        %v812 = vpop.permute.xlu0 %811
        %813 = vrot.lane.b32.xlu0 %v673, 16
        %v814 = vpop.permute.xlu0 %813
        %vm862 = vcmask 195712
        %863 = vst.msk [vmem:[#allocation2] sm:$0xff] %vm862, %v722
        %864 = vst.msk [vmem:[#allocation2 + $0x8] sm:$0xff] %vm862, %v724
        %865 = vst.msk [vmem:[#allocation2 + $0x10] sm:$0xff] %vm862, %v726
        %866 = vst.msk [vmem:[#allocation2 + $0x18] sm:$0xff] %vm862, %v728
        %867 = vst.msk [vmem:[#allocation2 + $0x20] sm:$0xff] %vm862, %v730
        %868 = vst.msk [vmem:[#allocation2 + $0x28] sm:$0xff] %vm862, %v732
        %869 = vst.msk [vmem:[#allocation2 + $0x30] sm:$0xff] %vm862, %v734
        %870 = vst.msk [vmem:[#allocation2 + $0x38] sm:$0xff] %vm862, %v736
        %871 = vst.msk [vmem:[#allocation2 + $0x40] sm:$0xff] %vm862, %v738
        %872 = vst.msk [vmem:[#allocation2 + $0x48] sm:$0xff] %vm862, %v740
        %873 = vst.msk [vmem:[#allocation2 + $0x50] sm:$0xff] %vm862, %v742
        %874 = vst.msk [vmem:[#allocation2 + $0x58] sm:$0xff] %vm862, %v744
        %875 = vst.msk [vmem:[#allocation2 + $0x60] sm:$0xff] %vm862, %v746
        %876 = vst.msk [vmem:[#allocation2 + $0x68] sm:$0xff] %vm862, %v748
        %877 = vst.msk [vmem:[#allocation2 + $0x70] sm:$0xff] %vm862, %v750
        %878 = vst.msk [vmem:[#allocation2 + $0x78] sm:$0xff] %vm862, %v752
        %879 = vst.msk [vmem:[#allocation2 + $0x80] sm:$0xff] %vm862, %v754
        %880 = vst.msk [vmem:[#allocation2 + $0x88] sm:$0xff] %vm862, %v756
        %881 = vst.msk [vmem:[#allocation2 + $0x90] sm:$0xff] %vm862, %v758
        %882 = vst.msk [vmem:[#allocation2 + $0x98] sm:$0xff] %vm862, %v760
        %883 = vst.msk [vmem:[#allocation2 + $0xa0] sm:$0xff] %vm862, %v762
        %884 = vst.msk [vmem:[#allocation2 + $0xa8] sm:$0xff] %vm862, %v764
        %885 = vst.msk [vmem:[#allocation2 + $0xb0] sm:$0xff] %vm862, %v766
        %886 = vst.msk [vmem:[#allocation2 + $0xb8] sm:$0xff] %vm862, %v768
        %887 = vst.msk [vmem:[#allocation2 + $0xc0] sm:$0xff] %vm862, %v770
        %888 = vst.msk [vmem:[#allocation2 + $0xc8] sm:$0xff] %vm862, %v772
        %889 = vst.msk [vmem:[#allocation2 + $0xd0] sm:$0xff] %vm862, %v774
        %890 = vst.msk [vmem:[#allocation2 + $0xd8] sm:$0xff] %vm862, %v776
        %891 = vst.msk [vmem:[#allocation2 + $0xe0] sm:$0xff] %vm862, %v778
        %892 = vst.msk [vmem:[#allocation2 + $0xe8] sm:$0xff] %vm862, %v780
        %893 = vst.msk [vmem:[#allocation2 + $0xf0] sm:$0xff] %vm862, %v782
        %894 = vst.msk [vmem:[#allocation2 + $0xf8] sm:$0xff] %vm862, %v784
        %895 = vst.msk [vmem:[#allocation2 + $0x100] sm:$0xff] %vm862, %v786
        %896 = vst.msk [vmem:[#allocation2 + $0x108] sm:$0xff] %vm862, %v788
        %897 = vst.msk [vmem:[#allocation2 + $0x110] sm:$0xff] %vm862, %v790
        %898 = vst.msk [vmem:[#allocation2 + $0x118] sm:$0xff] %vm862, %v792
        %899 = vst.msk [vmem:[#allocation2 + $0x120] sm:$0xff] %vm862, %v794
        %900 = vst.msk [vmem:[#allocation2 + $0x128] sm:$0xff] %vm862, %v796
        %901 = vst.msk [vmem:[#allocation2 + $0x130] sm:$0xff] %vm862, %v798
        %902 = vst.msk [vmem:[#allocation2 + $0x138] sm:$0xff] %vm862, %v800
        %903 = vst.msk [vmem:[#allocation2 + $0x140] sm:$0xff] %vm862, %v802
        %904 = vst.msk [vmem:[#allocation2 + $0x148] sm:$0xff] %vm862, %v804
        %905 = vst.msk [vmem:[#allocation2 + $0x150] sm:$0xff] %vm862, %v806
        %906 = vst.msk [vmem:[#allocation2 + $0x158] sm:$0xff] %vm862, %v808
        %907 = vst.msk [vmem:[#allocation2 + $0x160] sm:$0xff] %vm862, %v810
        %908 = vst.msk [vmem:[#allocation2 + $0x168] sm:$0xff] %vm862, %v812
        %909 = vst.msk [vmem:[#allocation2 + $0x170] sm:$0xff] %vm862, %v814
        %v910 = vld [vmem:[%s248 + $0x18] sm:$0xff]
        %v911 = vld [vmem:[%s248 + $0x20] sm:$0xff]
        %v912 = vld [vmem:[%s248 + $0x28] sm:$0xff]
        %v913 = vld [vmem:[%s248 + $0x30] sm:$0xff]
        %v914 = vld [vmem:[%s248 + $0x38] sm:$0xff]
        %v915 = vld [vmem:[%s248 + $0x40] sm:$0xff]
        %v916 = vld [vmem:[%s248 + $0x48] sm:$0xff]
        %v917 = vld [vmem:[%s248 + $0x50] sm:$0xff]
        %v918 = vld [vmem:[%s248 + $0x58] sm:$0xff]
        %v919 = vld [vmem:[%s248 + $0x60] sm:$0xff]
        %v920 = vld [vmem:[%s248 + $0x68] sm:$0xff]
        %v921 = vld [vmem:[%s248 + $0x70] sm:$0xff]
        %v922 = vld [vmem:[%s248 + $0x78] sm:$0xff]
        %v923 = vld [vmem:[%s248 + $0x80] sm:$0xff]
        %v924 = vld [vmem:[%s248 + $0x88] sm:$0xff]
        %v925 = vld [vmem:[%s248 + $0x90] sm:$0xff]
        %v926 = vld [vmem:[%s248 + $0x98] sm:$0xff]
        %v927 = vld [vmem:[%s248 + $0xa0] sm:$0xff]
        %v928 = vld [vmem:[%s248 + $0xa8] sm:$0xff]
        %v929 = vld [vmem:[%s248 + $0xb0] sm:$0xff]
        %v930 = vld [vmem:[%s248 + $0xb8] sm:$0xff]
        %v931 = vld [vmem:[%s248 + $0xc0] sm:$0xff]
        %v932 = vld [vmem:[%s248 + $0xc8] sm:$0xff]
        %v933 = vld [vmem:[%s248 + $0xd0] sm:$0xff]
        %v934 = vld [vmem:[%s248 + $0xd8] sm:$0xff]
        %v935 = vld [vmem:[%s248 + $0xe0] sm:$0xff]
        %v936 = vld [vmem:[%s248 + $0xe8] sm:$0xff]
        %v937 = vld [vmem:[%s248 + $0xf0] sm:$0xff]
        %v938 = vld [vmem:[%s248 + $0xf8] sm:$0xff]
        %v939 = vld [vmem:[%s248 + $0x100] sm:$0xff]
        %v940 = vld [vmem:[%s248 + $0x108] sm:$0xff]
        %v941 = vld [vmem:[%s248 + $0x110] sm:$0xff]
        %v942 = vld [vmem:[%s248 + $0x118] sm:$0xff]
        %v943 = vld [vmem:[%s248 + $0x120] sm:$0xff]
        %v944 = vld [vmem:[%s248 + $0x128] sm:$0xff]
        %v945 = vld [vmem:[%s248 + $0x130] sm:$0xff]
        %v946 = vld [vmem:[%s248 + $0x138] sm:$0xff]
        %v947 = vld [vmem:[%s248 + $0x140] sm:$0xff]
        %v948 = vld [vmem:[%s248 + $0x148] sm:$0xff]
        %v949 = vld [vmem:[%s248 + $0x150] sm:$0xff]
        %v950 = vld [vmem:[%s248 + $0x158] sm:$0xff]
        %v951 = vld [vmem:[%s248 + $0x160] sm:$0xff]
        %v952 = vld [vmem:[%s248 + $0x168] sm:$0xff]
        %v953 = vld [vmem:[%s248 + $0x170] sm:$0xff]
        %v954 = vld [vmem:[%s248 + $0x178] sm:$0xff]
        %v955 = vld [vmem:[%s248 + $0x180] sm:$0xff]
        %v956 = vld [vmem:[%s248 + $0x188] sm:$0xff]
        %1004 = vrot.lane.b32.xlu0 %v910, 24
        %v1005 = vpop.permute.xlu0 %1004
        %1006 = vrot.lane.b32.xlu0 %v911, 24
        %v1007 = vpop.permute.xlu0 %1006
        %1008 = vrot.lane.b32.xlu0 %v912, 24
        %v1009 = vpop.permute.xlu0 %1008
        %1010 = vrot.lane.b32.xlu0 %v913, 24
        %v1011 = vpop.permute.xlu0 %1010
        %1012 = vrot.lane.b32.xlu0 %v914, 24
        %v1013 = vpop.permute.xlu0 %1012
        %1014 = vrot.lane.b32.xlu0 %v915, 24
        %v1015 = vpop.permute.xlu0 %1014
        %1016 = vrot.lane.b32.xlu0 %v916, 24
        %v1017 = vpop.permute.xlu0 %1016
        %1018 = vrot.lane.b32.xlu0 %v917, 24
        %v1019 = vpop.permute.xlu0 %1018
        %1020 = vrot.lane.b32.xlu0 %v918, 24
        %v1021 = vpop.permute.xlu0 %1020
        %1022 = vrot.lane.b32.xlu0 %v919, 24
        %v1023 = vpop.permute.xlu0 %1022
        %1024 = vrot.lane.b32.xlu0 %v920, 24
        %v1025 = vpop.permute.xlu0 %1024
        %1026 = vrot.lane.b32.xlu0 %v921, 24
        %v1027 = vpop.permute.xlu0 %1026
        %1028 = vrot.lane.b32.xlu0 %v922, 24
        %v1029 = vpop.permute.xlu0 %1028
        %1030 = vrot.lane.b32.xlu0 %v923, 24
        %v1031 = vpop.permute.xlu0 %1030
        %1032 = vrot.lane.b32.xlu0 %v924, 24
        %v1033 = vpop.permute.xlu0 %1032
        %1034 = vrot.lane.b32.xlu0 %v925, 24
        %v1035 = vpop.permute.xlu0 %1034
        %1036 = vrot.lane.b32.xlu0 %v926, 24
        %v1037 = vpop.permute.xlu0 %1036
        %1038 = vrot.lane.b32.xlu0 %v927, 24
        %v1039 = vpop.permute.xlu0 %1038
        %1040 = vrot.lane.b32.xlu0 %v928, 24
        %v1041 = vpop.permute.xlu0 %1040
        %1042 = vrot.lane.b32.xlu0 %v929, 24
        %v1043 = vpop.permute.xlu0 %1042
        %1044 = vrot.lane.b32.xlu0 %v930, 24
        %v1045 = vpop.permute.xlu0 %1044
        %1046 = vrot.lane.b32.xlu0 %v931, 24
        %v1047 = vpop.permute.xlu0 %1046
        %1048 = vrot.lane.b32.xlu0 %v932, 24
        %v1049 = vpop.permute.xlu0 %1048
        %1050 = vrot.lane.b32.xlu0 %v933, 24
        %v1051 = vpop.permute.xlu0 %1050
        %1052 = vrot.lane.b32.xlu0 %v934, 24
        %v1053 = vpop.permute.xlu0 %1052
        %1054 = vrot.lane.b32.xlu0 %v935, 24
        %v1055 = vpop.permute.xlu0 %1054
        %1056 = vrot.lane.b32.xlu0 %v936, 24
        %v1057 = vpop.permute.xlu0 %1056
        %1058 = vrot.lane.b32.xlu0 %v937, 24
        %v1059 = vpop.permute.xlu0 %1058
        %1060 = vrot.lane.b32.xlu0 %v938, 24
        %v1061 = vpop.permute.xlu0 %1060
        %1062 = vrot.lane.b32.xlu0 %v939, 24
        %v1063 = vpop.permute.xlu0 %1062
        %1064 = vrot.lane.b32.xlu0 %v940, 24
        %v1065 = vpop.permute.xlu0 %1064
        %1066 = vrot.lane.b32.xlu0 %v941, 24
        %v1067 = vpop.permute.xlu0 %1066
        %1068 = vrot.lane.b32.xlu0 %v942, 24
        %v1069 = vpop.permute.xlu0 %1068
        %1070 = vrot.lane.b32.xlu0 %v943, 24
        %v1071 = vpop.permute.xlu0 %1070
        %1072 = vrot.lane.b32.xlu0 %v944, 24
        %v1073 = vpop.permute.xlu0 %1072
        %1074 = vrot.lane.b32.xlu0 %v945, 24
        %v1075 = vpop.permute.xlu0 %1074
        %1076 = vrot.lane.b32.xlu0 %v946, 24
        %v1077 = vpop.permute.xlu0 %1076
        %1078 = vrot.lane.b32.xlu0 %v947, 24
        %v1079 = vpop.permute.xlu0 %1078
        %1080 = vrot.lane.b32.xlu0 %v948, 24
        %v1081 = vpop.permute.xlu0 %1080
        %1082 = vrot.lane.b32.xlu0 %v949, 24
        %v1083 = vpop.permute.xlu0 %1082
        %1084 = vrot.lane.b32.xlu0 %v950, 24
        %v1085 = vpop.permute.xlu0 %1084
        %1086 = vrot.lane.b32.xlu0 %v951, 24
        %v1087 = vpop.permute.xlu0 %1086
        %1088 = vrot.lane.b32.xlu0 %v952, 24
        %v1089 = vpop.permute.xlu0 %1088
        %1090 = vrot.lane.b32.xlu0 %v953, 24
        %v1091 = vpop.permute.xlu0 %1090
        %1092 = vrot.lane.b32.xlu0 %v954, 24
        %v1093 = vpop.permute.xlu0 %1092
        %1094 = vrot.lane.b32.xlu0 %v955, 24
        %v1095 = vpop.permute.xlu0 %1094
        %1096 = vrot.lane.b32.xlu0 %v956, 24
        %v1097 = vpop.permute.xlu0 %1096
        %vm1145 = vcmask 261312
        %1146 = vst.msk [vmem:[#allocation2] sm:$0xff] %vm1145, %v1005
        %1147 = vst.msk [vmem:[#allocation2 + $0x8] sm:$0xff] %vm1145, %v1007
        %1148 = vst.msk [vmem:[#allocation2 + $0x10] sm:$0xff] %vm1145, %v1009
        %1149 = vst.msk [vmem:[#allocation2 + $0x18] sm:$0xff] %vm1145, %v1011
        %1150 = vst.msk [vmem:[#allocation2 + $0x20] sm:$0xff] %vm1145, %v1013
        %1151 = vst.msk [vmem:[#allocation2 + $0x28] sm:$0xff] %vm1145, %v1015
        %1152 = vst.msk [vmem:[#allocation2 + $0x30] sm:$0xff] %vm1145, %v1017
        %1153 = vst.msk [vmem:[#allocation2 + $0x38] sm:$0xff] %vm1145, %v1019
        %1154 = vst.msk [vmem:[#allocation2 + $0x40] sm:$0xff] %vm1145, %v1021
        %1155 = vst.msk [vmem:[#allocation2 + $0x48] sm:$0xff] %vm1145, %v1023
        %1156 = vst.msk [vmem:[#allocation2 + $0x50] sm:$0xff] %vm1145, %v1025
        %1157 = vst.msk [vmem:[#allocation2 + $0x58] sm:$0xff] %vm1145, %v1027
        %1158 = vst.msk [vmem:[#allocation2 + $0x60] sm:$0xff] %vm1145, %v1029
        %1159 = vst.msk [vmem:[#allocation2 + $0x68] sm:$0xff] %vm1145, %v1031
        %1160 = vst.msk [vmem:[#allocation2 + $0x70] sm:$0xff] %vm1145, %v1033
        %1161 = vst.msk [vmem:[#allocation2 + $0x78] sm:$0xff] %vm1145, %v1035
        %1162 = vst.msk [vmem:[#allocation2 + $0x80] sm:$0xff] %vm1145, %v1037
        %1163 = vst.msk [vmem:[#allocation2 + $0x88] sm:$0xff] %vm1145, %v1039
        %1164 = vst.msk [vmem:[#allocation2 + $0x90] sm:$0xff] %vm1145, %v1041
        %1165 = vst.msk [vmem:[#allocation2 + $0x98] sm:$0xff] %vm1145, %v1043
        %1166 = vst.msk [vmem:[#allocation2 + $0xa0] sm:$0xff] %vm1145, %v1045
        %1167 = vst.msk [vmem:[#allocation2 + $0xa8] sm:$0xff] %vm1145, %v1047
        %1168 = vst.msk [vmem:[#allocation2 + $0xb0] sm:$0xff] %vm1145, %v1049
        %1169 = vst.msk [vmem:[#allocation2 + $0xb8] sm:$0xff] %vm1145, %v1051
        %1170 = vst.msk [vmem:[#allocation2 + $0xc0] sm:$0xff] %vm1145, %v1053
        %1171 = vst.msk [vmem:[#allocation2 + $0xc8] sm:$0xff] %vm1145, %v1055
        %1172 = vst.msk [vmem:[#allocation2 + $0xd0] sm:$0xff] %vm1145, %v1057
        %1173 = vst.msk [vmem:[#allocation2 + $0xd8] sm:$0xff] %vm1145, %v1059
        %1174 = vst.msk [vmem:[#allocation2 + $0xe0] sm:$0xff] %vm1145, %v1061
        %1175 = vst.msk [vmem:[#allocation2 + $0xe8] sm:$0xff] %vm1145, %v1063
        %1176 = vst.msk [vmem:[#allocation2 + $0xf0] sm:$0xff] %vm1145, %v1065
        %1177 = vst.msk [vmem:[#allocation2 + $0xf8] sm:$0xff] %vm1145, %v1067
        %1178 = vst.msk [vmem:[#allocation2 + $0x100] sm:$0xff] %vm1145, %v1069
        %1179 = vst.msk [vmem:[#allocation2 + $0x108] sm:$0xff] %vm1145, %v1071
        %1180 = vst.msk [vmem:[#allocation2 + $0x110] sm:$0xff] %vm1145, %v1073
        %1181 = vst.msk [vmem:[#allocation2 + $0x118] sm:$0xff] %vm1145, %v1075
        %1182 = vst.msk [vmem:[#allocation2 + $0x120] sm:$0xff] %vm1145, %v1077
        %1183 = vst.msk [vmem:[#allocation2 + $0x128] sm:$0xff] %vm1145, %v1079
        %1184 = vst.msk [vmem:[#allocation2 + $0x130] sm:$0xff] %vm1145, %v1081
        %1185 = vst.msk [vmem:[#allocation2 + $0x138] sm:$0xff] %vm1145, %v1083
        %1186 = vst.msk [vmem:[#allocation2 + $0x140] sm:$0xff] %vm1145, %v1085
        %1187 = vst.msk [vmem:[#allocation2 + $0x148] sm:$0xff] %vm1145, %v1087
        %1188 = vst.msk [vmem:[#allocation2 + $0x150] sm:$0xff] %vm1145, %v1089
        %1189 = vst.msk [vmem:[#allocation2 + $0x158] sm:$0xff] %vm1145, %v1091
        %1190 = vst.msk [vmem:[#allocation2 + $0x160] sm:$0xff] %vm1145, %v1093
        %1191 = vst.msk [vmem:[#allocation2 + $0x168] sm:$0xff] %vm1145, %v1095
        %1192 = vst.msk [vmem:[#allocation2 + $0x170] sm:$0xff] %vm1145, %v1097
        %v1193 = vld [vmem:[%s248 + $0x19] sm:$0xff]
        %v1194 = vld [vmem:[%s248 + $0x21] sm:$0xff]
        %v1195 = vld [vmem:[%s248 + $0x29] sm:$0xff]
        %v1196 = vld [vmem:[%s248 + $0x31] sm:$0xff]
        %v1197 = vld [vmem:[%s248 + $0x39] sm:$0xff]
        %v1198 = vld [vmem:[%s248 + $0x41] sm:$0xff]
        %v1199 = vld [vmem:[%s248 + $0x49] sm:$0xff]
        %v1200 = vld [vmem:[%s248 + $0x51] sm:$0xff]
        %v1201 = vld [vmem:[%s248 + $0x59] sm:$0xff]
        %v1202 = vld [vmem:[%s248 + $0x61] sm:$0xff]
        %v1203 = vld [vmem:[%s248 + $0x69] sm:$0xff]
        %v1204 = vld [vmem:[%s248 + $0x71] sm:$0xff]
        %v1205 = vld [vmem:[%s248 + $0x79] sm:$0xff]
        %v1206 = vld [vmem:[%s248 + $0x81] sm:$0xff]
        %v1207 = vld [vmem:[%s248 + $0x89] sm:$0xff]
        %v1208 = vld [vmem:[%s248 + $0x91] sm:$0xff]
        %v1209 = vld [vmem:[%s248 + $0x99] sm:$0xff]
        %v1210 = vld [vmem:[%s248 + $0xa1] sm:$0xff]
        %v1211 = vld [vmem:[%s248 + $0xa9] sm:$0xff]
        %v1212 = vld [vmem:[%s248 + $0xb1] sm:$0xff]
        %v1213 = vld [vmem:[%s248 + $0xb9] sm:$0xff]
        %v1214 = vld [vmem:[%s248 + $0xc1] sm:$0xff]
        %v1215 = vld [vmem:[%s248 + $0xc9] sm:$0xff]
        %v1216 = vld [vmem:[%s248 + $0xd1] sm:$0xff]
        %v1217 = vld [vmem:[%s248 + $0xd9] sm:$0xff]
        %v1218 = vld [vmem:[%s248 + $0xe1] sm:$0xff]
        %v1219 = vld [vmem:[%s248 + $0xe9] sm:$0xff]
        %v1220 = vld [vmem:[%s248 + $0xf1] sm:$0xff]
        %v1221 = vld [vmem:[%s248 + $0xf9] sm:$0xff]
        %v1222 = vld [vmem:[%s248 + $0x101] sm:$0xff]
        %v1223 = vld [vmem:[%s248 + $0x109] sm:$0xff]
        %v1224 = vld [vmem:[%s248 + $0x111] sm:$0xff]
        %v1225 = vld [vmem:[%s248 + $0x119] sm:$0xff]
        %v1226 = vld [vmem:[%s248 + $0x121] sm:$0xff]
        %v1227 = vld [vmem:[%s248 + $0x129] sm:$0xff]
        %v1228 = vld [vmem:[%s248 + $0x131] sm:$0xff]
        %v1229 = vld [vmem:[%s248 + $0x139] sm:$0xff]
        %v1230 = vld [vmem:[%s248 + $0x141] sm:$0xff]
        %v1231 = vld [vmem:[%s248 + $0x149] sm:$0xff]
        %v1232 = vld [vmem:[%s248 + $0x151] sm:$0xff]
        %v1233 = vld [vmem:[%s248 + $0x159] sm:$0xff]
        %v1234 = vld [vmem:[%s248 + $0x161] sm:$0xff]
        %v1235 = vld [vmem:[%s248 + $0x169] sm:$0xff]
        %v1236 = vld [vmem:[%s248 + $0x171] sm:$0xff]
        %v1237 = vld [vmem:[%s248 + $0x179] sm:$0xff]
        %v1238 = vld [vmem:[%s248 + $0x181] sm:$0xff]
        %v1239 = vld [vmem:[%s248 + $0x189] sm:$0xff]
        %1287 = vrot.lane.b32.xlu0 %v1193, 32
        %v1288 = vpop.permute.xlu0 %1287
        %1289 = vrot.lane.b32.xlu0 %v1194, 32
        %v1290 = vpop.permute.xlu0 %1289
        %1291 = vrot.lane.b32.xlu0 %v1195, 32
        %v1292 = vpop.permute.xlu0 %1291
        %1293 = vrot.lane.b32.xlu0 %v1196, 32
        %v1294 = vpop.permute.xlu0 %1293
        %1295 = vrot.lane.b32.xlu0 %v1197, 32
        %v1296 = vpop.permute.xlu0 %1295
        %1297 = vrot.lane.b32.xlu0 %v1198, 32
        %v1298 = vpop.permute.xlu0 %1297
        %1299 = vrot.lane.b32.xlu0 %v1199, 32
        %v1300 = vpop.permute.xlu0 %1299
        %1301 = vrot.lane.b32.xlu0 %v1200, 32
        %v1302 = vpop.permute.xlu0 %1301
        %1303 = vrot.lane.b32.xlu0 %v1201, 32
        %v1304 = vpop.permute.xlu0 %1303
        %1305 = vrot.lane.b32.xlu0 %v1202, 32
        %v1306 = vpop.permute.xlu0 %1305
        %1307 = vrot.lane.b32.xlu0 %v1203, 32
        %v1308 = vpop.permute.xlu0 %1307
        %1309 = vrot.lane.b32.xlu0 %v1204, 32
        %v1310 = vpop.permute.xlu0 %1309
        %1311 = vrot.lane.b32.xlu0 %v1205, 32
        %v1312 = vpop.permute.xlu0 %1311
        %1313 = vrot.lane.b32.xlu0 %v1206, 32
        %v1314 = vpop.permute.xlu0 %1313
        %1315 = vrot.lane.b32.xlu0 %v1207, 32
        %v1316 = vpop.permute.xlu0 %1315
        %1317 = vrot.lane.b32.xlu0 %v1208, 32
        %v1318 = vpop.permute.xlu0 %1317
        %1319 = vrot.lane.b32.xlu0 %v1209, 32
        %v1320 = vpop.permute.xlu0 %1319
        %1321 = vrot.lane.b32.xlu0 %v1210, 32
        %v1322 = vpop.permute.xlu0 %1321
        %1323 = vrot.lane.b32.xlu0 %v1211, 32
        %v1324 = vpop.permute.xlu0 %1323
        %1325 = vrot.lane.b32.xlu0 %v1212, 32
        %v1326 = vpop.permute.xlu0 %1325
        %1327 = vrot.lane.b32.xlu0 %v1213, 32
        %v1328 = vpop.permute.xlu0 %1327
        %1329 = vrot.lane.b32.xlu0 %v1214, 32
        %v1330 = vpop.permute.xlu0 %1329
        %1331 = vrot.lane.b32.xlu0 %v1215, 32
        %v1332 = vpop.permute.xlu0 %1331
        %1333 = vrot.lane.b32.xlu0 %v1216, 32
        %v1334 = vpop.permute.xlu0 %1333
        %1335 = vrot.lane.b32.xlu0 %v1217, 32
        %v1336 = vpop.permute.xlu0 %1335
        %1337 = vrot.lane.b32.xlu0 %v1218, 32
        %v1338 = vpop.permute.xlu0 %1337
        %1339 = vrot.lane.b32.xlu0 %v1219, 32
        %v1340 = vpop.permute.xlu0 %1339
        %1341 = vrot.lane.b32.xlu0 %v1220, 32
        %v1342 = vpop.permute.xlu0 %1341
        %1343 = vrot.lane.b32.xlu0 %v1221, 32
        %v1344 = vpop.permute.xlu0 %1343
        %1345 = vrot.lane.b32.xlu0 %v1222, 32
        %v1346 = vpop.permute.xlu0 %1345
        %1347 = vrot.lane.b32.xlu0 %v1223, 32
        %v1348 = vpop.permute.xlu0 %1347
        %1349 = vrot.lane.b32.xlu0 %v1224, 32
        %v1350 = vpop.permute.xlu0 %1349
        %1351 = vrot.lane.b32.xlu0 %v1225, 32
        %v1352 = vpop.permute.xlu0 %1351
        %1353 = vrot.lane.b32.xlu0 %v1226, 32
        %v1354 = vpop.permute.xlu0 %1353
        %1355 = vrot.lane.b32.xlu0 %v1227, 32
        %v1356 = vpop.permute.xlu0 %1355
        %1357 = vrot.lane.b32.xlu0 %v1228, 32
        %v1358 = vpop.permute.xlu0 %1357
        %1359 = vrot.lane.b32.xlu0 %v1229, 32
        %v1360 = vpop.permute.xlu0 %1359
        %1361 = vrot.lane.b32.xlu0 %v1230, 32
        %v1362 = vpop.permute.xlu0 %1361
        %1363 = vrot.lane.b32.xlu0 %v1231, 32
        %v1364 = vpop.permute.xlu0 %1363
        %1365 = vrot.lane.b32.xlu0 %v1232, 32
        %v1366 = vpop.permute.xlu0 %1365
        %1367 = vrot.lane.b32.xlu0 %v1233, 32
        %v1368 = vpop.permute.xlu0 %1367
        %1369 = vrot.lane.b32.xlu0 %v1234, 32
        %v1370 = vpop.permute.xlu0 %1369
        %1371 = vrot.lane.b32.xlu0 %v1235, 32
        %v1372 = vpop.permute.xlu0 %1371
        %1373 = vrot.lane.b32.xlu0 %v1236, 32
        %v1374 = vpop.permute.xlu0 %1373
        %1375 = vrot.lane.b32.xlu0 %v1237, 32
        %v1376 = vpop.permute.xlu0 %1375
        %1377 = vrot.lane.b32.xlu0 %v1238, 32
        %v1378 = vpop.permute.xlu0 %1377
        %1379 = vrot.lane.b32.xlu0 %v1239, 32
        %v1380 = vpop.permute.xlu0 %1379
        %vm1428 = vcmask 326912
        %1429 = vst.msk [vmem:[#allocation2] sm:$0xff] %vm1428, %v1288
        %1430 = vst.msk [vmem:[#allocation2 + $0x8] sm:$0xff] %vm1428, %v1290
        %1431 = vst.msk [vmem:[#allocation2 + $0x10] sm:$0xff] %vm1428, %v1292
        %1432 = vst.msk [vmem:[#allocation2 + $0x18] sm:$0xff] %vm1428, %v1294
        %1433 = vst.msk [vmem:[#allocation2 + $0x20] sm:$0xff] %vm1428, %v1296
        %1434 = vst.msk [vmem:[#allocation2 + $0x28] sm:$0xff] %vm1428, %v1298
        %1435 = vst.msk [vmem:[#allocation2 + $0x30] sm:$0xff] %vm1428, %v1300
        %1436 = vst.msk [vmem:[#allocation2 + $0x38] sm:$0xff] %vm1428, %v1302
        %1437 = vst.msk [vmem:[#allocation2 + $0x40] sm:$0xff] %vm1428, %v1304
        %1438 = vst.msk [vmem:[#allocation2 + $0x48] sm:$0xff] %vm1428, %v1306
        %1439 = vst.msk [vmem:[#allocation2 + $0x50] sm:$0xff] %vm1428, %v1308
        %1440 = vst.msk [vmem:[#allocation2 + $0x58] sm:$0xff] %vm1428, %v1310
        %1441 = vst.msk [vmem:[#allocation2 + $0x60] sm:$0xff] %vm1428, %v1312
        %1442 = vst.msk [vmem:[#allocation2 + $0x68] sm:$0xff] %vm1428, %v1314
        %1443 = vst.msk [vmem:[#allocation2 + $0x70] sm:$0xff] %vm1428, %v1316
        %1444 = vst.msk [vmem:[#allocation2 + $0x78] sm:$0xff] %vm1428, %v1318
        %1445 = vst.msk [vmem:[#allocation2 + $0x80] sm:$0xff] %vm1428, %v1320
        %1446 = vst.msk [vmem:[#allocation2 + $0x88] sm:$0xff] %vm1428, %v1322
        %1447 = vst.msk [vmem:[#allocation2 + $0x90] sm:$0xff] %vm1428, %v1324
        %1448 = vst.msk [vmem:[#allocation2 + $0x98] sm:$0xff] %vm1428, %v1326
        %1449 = vst.msk [vmem:[#allocation2 + $0xa0] sm:$0xff] %vm1428, %v1328
        %1450 = vst.msk [vmem:[#allocation2 + $0xa8] sm:$0xff] %vm1428, %v1330
        %1451 = vst.msk [vmem:[#allocation2 + $0xb0] sm:$0xff] %vm1428, %v1332
        %1452 = vst.msk [vmem:[#allocation2 + $0xb8] sm:$0xff] %vm1428, %v1334
        %1453 = vst.msk [vmem:[#allocation2 + $0xc0] sm:$0xff] %vm1428, %v1336
        %1454 = vst.msk [vmem:[#allocation2 + $0xc8] sm:$0xff] %vm1428, %v1338
        %1455 = vst.msk [vmem:[#allocation2 + $0xd0] sm:$0xff] %vm1428, %v1340
        %1456 = vst.msk [vmem:[#allocation2 + $0xd8] sm:$0xff] %vm1428, %v1342
        %1457 = vst.msk [vmem:[#allocation2 + $0xe0] sm:$0xff] %vm1428, %v1344
        %1458 = vst.msk [vmem:[#allocation2 + $0xe8] sm:$0xff] %vm1428, %v1346
        %1459 = vst.msk [vmem:[#allocation2 + $0xf0] sm:$0xff] %vm1428, %v1348
        %1460 = vst.msk [vmem:[#allocation2 + $0xf8] sm:$0xff] %vm1428, %v1350
        %1461 = vst.msk [vmem:[#allocation2 + $0x100] sm:$0xff] %vm1428, %v1352
        %1462 = vst.msk [vmem:[#allocation2 + $0x108] sm:$0xff] %vm1428, %v1354
        %1463 = vst.msk [vmem:[#allocation2 + $0x110] sm:$0xff] %vm1428, %v1356
        %1464 = vst.msk [vmem:[#allocation2 + $0x118] sm:$0xff] %vm1428, %v1358
        %1465 = vst.msk [vmem:[#allocation2 + $0x120] sm:$0xff] %vm1428, %v1360
        %1466 = vst.msk [vmem:[#allocation2 + $0x128] sm:$0xff] %vm1428, %v1362
        %1467 = vst.msk [vmem:[#allocation2 + $0x130] sm:$0xff] %vm1428, %v1364
        %1468 = vst.msk [vmem:[#allocation2 + $0x138] sm:$0xff] %vm1428, %v1366
        %1469 = vst.msk [vmem:[#allocation2 + $0x140] sm:$0xff] %vm1428, %v1368
        %1470 = vst.msk [vmem:[#allocation2 + $0x148] sm:$0xff] %vm1428, %v1370
        %1471 = vst.msk [vmem:[#allocation2 + $0x150] sm:$0xff] %vm1428, %v1372
        %1472 = vst.msk [vmem:[#allocation2 + $0x158] sm:$0xff] %vm1428, %v1374
        %1473 = vst.msk [vmem:[#allocation2 + $0x160] sm:$0xff] %vm1428, %v1376
        %1474 = vst.msk [vmem:[#allocation2 + $0x168] sm:$0xff] %vm1428, %v1378
        %1475 = vst.msk [vmem:[#allocation2 + $0x170] sm:$0xff] %vm1428, %v1380
        %v1476 = vld [vmem:[%s248 + $0x1a] sm:$0xff]
        %v1477 = vld [vmem:[%s248 + $0x22] sm:$0xff]
        %v1478 = vld [vmem:[%s248 + $0x2a] sm:$0xff]
        %v1479 = vld [vmem:[%s248 + $0x32] sm:$0xff]
        %v1480 = vld [vmem:[%s248 + $0x3a] sm:$0xff]
        %v1481 = vld [vmem:[%s248 + $0x42] sm:$0xff]
        %v1482 = vld [vmem:[%s248 + $0x4a] sm:$0xff]
        %v1483 = vld [vmem:[%s248 + $0x52] sm:$0xff]
        %v1484 = vld [vmem:[%s248 + $0x5a] sm:$0xff]
        %v1485 = vld [vmem:[%s248 + $0x62] sm:$0xff]
        %v1486 = vld [vmem:[%s248 + $0x6a] sm:$0xff]
        %v1487 = vld [vmem:[%s248 + $0x72] sm:$0xff]
        %v1488 = vld [vmem:[%s248 + $0x7a] sm:$0xff]
        %v1489 = vld [vmem:[%s248 + $0x82] sm:$0xff]
        %v1490 = vld [vmem:[%s248 + $0x8a] sm:$0xff]
        %v1491 = vld [vmem:[%s248 + $0x92] sm:$0xff]
        %v1492 = vld [vmem:[%s248 + $0x9a] sm:$0xff]
        %v1493 = vld [vmem:[%s248 + $0xa2] sm:$0xff]
        %v1494 = vld [vmem:[%s248 + $0xaa] sm:$0xff]
        %v1495 = vld [vmem:[%s248 + $0xb2] sm:$0xff]
        %v1496 = vld [vmem:[%s248 + $0xba] sm:$0xff]
        %v1497 = vld [vmem:[%s248 + $0xc2] sm:$0xff]
        %v1498 = vld [vmem:[%s248 + $0xca] sm:$0xff]
        %v1499 = vld [vmem:[%s248 + $0xd2] sm:$0xff]
        %v1500 = vld [vmem:[%s248 + $0xda] sm:$0xff]
        %v1501 = vld [vmem:[%s248 + $0xe2] sm:$0xff]
        %v1502 = vld [vmem:[%s248 + $0xea] sm:$0xff]
        %v1503 = vld [vmem:[%s248 + $0xf2] sm:$0xff]
        %v1504 = vld [vmem:[%s248 + $0xfa] sm:$0xff]
        %v1505 = vld [vmem:[%s248 + $0x102] sm:$0xff]
        %v1506 = vld [vmem:[%s248 + $0x10a] sm:$0xff]
        %v1507 = vld [vmem:[%s248 + $0x112] sm:$0xff]
        %v1508 = vld [vmem:[%s248 + $0x11a] sm:$0xff]
        %v1509 = vld [vmem:[%s248 + $0x122] sm:$0xff]
        %v1510 = vld [vmem:[%s248 + $0x12a] sm:$0xff]
        %v1511 = vld [vmem:[%s248 + $0x132] sm:$0xff]
        %v1512 = vld [vmem:[%s248 + $0x13a] sm:$0xff]
        %v1513 = vld [vmem:[%s248 + $0x142] sm:$0xff]
        %v1514 = vld [vmem:[%s248 + $0x14a] sm:$0xff]
        %v1515 = vld [vmem:[%s248 + $0x152] sm:$0xff]
        %v1516 = vld [vmem:[%s248 + $0x15a] sm:$0xff]
        %v1517 = vld [vmem:[%s248 + $0x162] sm:$0xff]
        %v1518 = vld [vmem:[%s248 + $0x16a] sm:$0xff]
        %v1519 = vld [vmem:[%s248 + $0x172] sm:$0xff]
        %v1520 = vld [vmem:[%s248 + $0x17a] sm:$0xff]
        %v1521 = vld [vmem:[%s248 + $0x182] sm:$0xff]
        %v1522 = vld [vmem:[%s248 + $0x18a] sm:$0xff]
        %1570 = vrot.lane.b32.xlu0 %v1476, 40
        %v1571 = vpop.permute.xlu0 %1570
        %1572 = vrot.lane.b32.xlu0 %v1477, 40
        %v1573 = vpop.permute.xlu0 %1572
        %1574 = vrot.lane.b32.xlu0 %v1478, 40
        %v1575 = vpop.permute.xlu0 %1574
        %1576 = vrot.lane.b32.xlu0 %v1479, 40
        %v1577 = vpop.permute.xlu0 %1576
        %1578 = vrot.lane.b32.xlu0 %v1480, 40
        %v1579 = vpop.permute.xlu0 %1578
        %1580 = vrot.lane.b32.xlu0 %v1481, 40
        %v1581 = vpop.permute.xlu0 %1580
        %1582 = vrot.lane.b32.xlu0 %v1482, 40
        %v1583 = vpop.permute.xlu0 %1582
        %1584 = vrot.lane.b32.xlu0 %v1483, 40
        %v1585 = vpop.permute.xlu0 %1584
        %1586 = vrot.lane.b32.xlu0 %v1484, 40
        %v1587 = vpop.permute.xlu0 %1586
        %1588 = vrot.lane.b32.xlu0 %v1485, 40
        %v1589 = vpop.permute.xlu0 %1588
        %1590 = vrot.lane.b32.xlu0 %v1486, 40
        %v1591 = vpop.permute.xlu0 %1590
        %1592 = vrot.lane.b32.xlu0 %v1487, 40
        %v1593 = vpop.permute.xlu0 %1592
        %1594 = vrot.lane.b32.xlu0 %v1488, 40
        %v1595 = vpop.permute.xlu0 %1594
        %1596 = vrot.lane.b32.xlu0 %v1489, 40
        %v1597 = vpop.permute.xlu0 %1596
        %1598 = vrot.lane.b32.xlu0 %v1490, 40
        %v1599 = vpop.permute.xlu0 %1598
        %1600 = vrot.lane.b32.xlu0 %v1491, 40
        %v1601 = vpop.permute.xlu0 %1600
        %1602 = vrot.lane.b32.xlu0 %v1492, 40
        %v1603 = vpop.permute.xlu0 %1602
        %1604 = vrot.lane.b32.xlu0 %v1493, 40
        %v1605 = vpop.permute.xlu0 %1604
        %1606 = vrot.lane.b32.xlu0 %v1494, 40
        %v1607 = vpop.permute.xlu0 %1606
        %1608 = vrot.lane.b32.xlu0 %v1495, 40
        %v1609 = vpop.permute.xlu0 %1608
        %1610 = vrot.lane.b32.xlu0 %v1496, 40
        %v1611 = vpop.permute.xlu0 %1610
        %1612 = vrot.lane.b32.xlu0 %v1497, 40
        %v1613 = vpop.permute.xlu0 %1612
        %1614 = vrot.lane.b32.xlu0 %v1498, 40
        %v1615 = vpop.permute.xlu0 %1614
        %1616 = vrot.lane.b32.xlu0 %v1499, 40
        %v1617 = vpop.permute.xlu0 %1616
        %1618 = vrot.lane.b32.xlu0 %v1500, 40
        %v1619 = vpop.permute.xlu0 %1618
        %1620 = vrot.lane.b32.xlu0 %v1501, 40
        %v1621 = vpop.permute.xlu0 %1620
        %1622 = vrot.lane.b32.xlu0 %v1502, 40
        %v1623 = vpop.permute.xlu0 %1622
        %1624 = vrot.lane.b32.xlu0 %v1503, 40
        %v1625 = vpop.permute.xlu0 %1624
        %1626 = vrot.lane.b32.xlu0 %v1504, 40
        %v1627 = vpop.permute.xlu0 %1626
        %1628 = vrot.lane.b32.xlu0 %v1505, 40
        %v1629 = vpop.permute.xlu0 %1628
        %1630 = vrot.lane.b32.xlu0 %v1506, 40
        %v1631 = vpop.permute.xlu0 %1630
        %1632 = vrot.lane.b32.xlu0 %v1507, 40
        %v1633 = vpop.permute.xlu0 %1632
        %1634 = vrot.lane.b32.xlu0 %v1508, 40
        %v1635 = vpop.permute.xlu0 %1634
        %1636 = vrot.lane.b32.xlu0 %v1509, 40
        %v1637 = vpop.permute.xlu0 %1636
        %1638 = vrot.lane.b32.xlu0 %v1510, 40
        %v1639 = vpop.permute.xlu0 %1638
        %1640 = vrot.lane.b32.xlu0 %v1511, 40
        %v1641 = vpop.permute.xlu0 %1640
        %1642 = vrot.lane.b32.xlu0 %v1512, 40
        %v1643 = vpop.permute.xlu0 %1642
        %1644 = vrot.lane.b32.xlu0 %v1513, 40
        %v1645 = vpop.permute.xlu0 %1644
        %1646 = vrot.lane.b32.xlu0 %v1514, 40
        %v1647 = vpop.permute.xlu0 %1646
        %1648 = vrot.lane.b32.xlu0 %v1515, 40
        %v1649 = vpop.permute.xlu0 %1648
        %1650 = vrot.lane.b32.xlu0 %v1516, 40
        %v1651 = vpop.permute.xlu0 %1650
        %1652 = vrot.lane.b32.xlu0 %v1517, 40
        %v1653 = vpop.permute.xlu0 %1652
        %1654 = vrot.lane.b32.xlu0 %v1518, 40
        %v1655 = vpop.permute.xlu0 %1654
        %1656 = vrot.lane.b32.xlu0 %v1519, 40
        %v1657 = vpop.permute.xlu0 %1656
        %1658 = vrot.lane.b32.xlu0 %v1520, 40
        %v1659 = vpop.permute.xlu0 %1658
        %1660 = vrot.lane.b32.xlu0 %v1521, 40
        %v1661 = vpop.permute.xlu0 %1660
        %1662 = vrot.lane.b32.xlu0 %v1522, 40
        %v1663 = vpop.permute.xlu0 %1662
        %vm1711 = vcmask 392512
        %1712 = vst.msk [vmem:[#allocation2] sm:$0xff] %vm1711, %v1571
        %1713 = vst.msk [vmem:[#allocation2 + $0x8] sm:$0xff] %vm1711, %v1573
        %1714 = vst.msk [vmem:[#allocation2 + $0x10] sm:$0xff] %vm1711, %v1575
        %1715 = vst.msk [vmem:[#allocation2 + $0x18] sm:$0xff] %vm1711, %v1577
        %1716 = vst.msk [vmem:[#allocation2 + $0x20] sm:$0xff] %vm1711, %v1579
        %1717 = vst.msk [vmem:[#allocation2 + $0x28] sm:$0xff] %vm1711, %v1581
        %1718 = vst.msk [vmem:[#allocation2 + $0x30] sm:$0xff] %vm1711, %v1583
        %1719 = vst.msk [vmem:[#allocation2 + $0x38] sm:$0xff] %vm1711, %v1585
        %1720 = vst.msk [vmem:[#allocation2 + $0x40] sm:$0xff] %vm1711, %v1587
        %1721 = vst.msk [vmem:[#allocation2 + $0x48] sm:$0xff] %vm1711, %v1589
        %1722 = vst.msk [vmem:[#allocation2 + $0x50] sm:$0xff] %vm1711, %v1591
        %1723 = vst.msk [vmem:[#allocation2 + $0x58] sm:$0xff] %vm1711, %v1593
        %1724 = vst.msk [vmem:[#allocation2 + $0x60] sm:$0xff] %vm1711, %v1595
        %1725 = vst.msk [vmem:[#allocation2 + $0x68] sm:$0xff] %vm1711, %v1597
        %1726 = vst.msk [vmem:[#allocation2 + $0x70] sm:$0xff] %vm1711, %v1599
        %1727 = vst.msk [vmem:[#allocation2 + $0x78] sm:$0xff] %vm1711, %v1601
        %1728 = vst.msk [vmem:[#allocation2 + $0x80] sm:$0xff] %vm1711, %v1603
        %1729 = vst.msk [vmem:[#allocation2 + $0x88] sm:$0xff] %vm1711, %v1605
        %1730 = vst.msk [vmem:[#allocation2 + $0x90] sm:$0xff] %vm1711, %v1607
        %1731 = vst.msk [vmem:[#allocation2 + $0x98] sm:$0xff] %vm1711, %v1609
        %1732 = vst.msk [vmem:[#allocation2 + $0xa0] sm:$0xff] %vm1711, %v1611
        %1733 = vst.msk [vmem:[#allocation2 + $0xa8] sm:$0xff] %vm1711, %v1613
        %1734 = vst.msk [vmem:[#allocation2 + $0xb0] sm:$0xff] %vm1711, %v1615
        %1735 = vst.msk [vmem:[#allocation2 + $0xb8] sm:$0xff] %vm1711, %v1617
        %1736 = vst.msk [vmem:[#allocation2 + $0xc0] sm:$0xff] %vm1711, %v1619
        %1737 = vst.msk [vmem:[#allocation2 + $0xc8] sm:$0xff] %vm1711, %v1621
        %1738 = vst.msk [vmem:[#allocation2 + $0xd0] sm:$0xff] %vm1711, %v1623
        %1739 = vst.msk [vmem:[#allocation2 + $0xd8] sm:$0xff] %vm1711, %v1625
        %1740 = vst.msk [vmem:[#allocation2 + $0xe0] sm:$0xff] %vm1711, %v1627
        %1741 = vst.msk [vmem:[#allocation2 + $0xe8] sm:$0xff] %vm1711, %v1629
        %1742 = vst.msk [vmem:[#allocation2 + $0xf0] sm:$0xff] %vm1711, %v1631
        %1743 = vst.msk [vmem:[#allocation2 + $0xf8] sm:$0xff] %vm1711, %v1633
        %1744 = vst.msk [vmem:[#allocation2 + $0x100] sm:$0xff] %vm1711, %v1635
        %1745 = vst.msk [vmem:[#allocation2 + $0x108] sm:$0xff] %vm1711, %v1637
        %1746 = vst.msk [vmem:[#allocation2 + $0x110] sm:$0xff] %vm1711, %v1639
        %1747 = vst.msk [vmem:[#allocation2 + $0x118] sm:$0xff] %vm1711, %v1641
        %1748 = vst.msk [vmem:[#allocation2 + $0x120] sm:$0xff] %vm1711, %v1643
        %1749 = vst.msk [vmem:[#allocation2 + $0x128] sm:$0xff] %vm1711, %v1645
        %1750 = vst.msk [vmem:[#allocation2 + $0x130] sm:$0xff] %vm1711, %v1647
        %1751 = vst.msk [vmem:[#allocation2 + $0x138] sm:$0xff] %vm1711, %v1649
        %1752 = vst.msk [vmem:[#allocation2 + $0x140] sm:$0xff] %vm1711, %v1651
        %1753 = vst.msk [vmem:[#allocation2 + $0x148] sm:$0xff] %vm1711, %v1653
        %1754 = vst.msk [vmem:[#allocation2 + $0x150] sm:$0xff] %vm1711, %v1655
        %1755 = vst.msk [vmem:[#allocation2 + $0x158] sm:$0xff] %vm1711, %v1657
        %1756 = vst.msk [vmem:[#allocation2 + $0x160] sm:$0xff] %vm1711, %v1659
        %1757 = vst.msk [vmem:[#allocation2 + $0x168] sm:$0xff] %vm1711, %v1661
        %1758 = vst.msk [vmem:[#allocation2 + $0x170] sm:$0xff] %vm1711, %v1663
        %v1759 = vld [vmem:[%s248 + $0x30] sm:$0xff]
        %v1760 = vld [vmem:[%s248 + $0x38] sm:$0xff]
        %v1761 = vld [vmem:[%s248 + $0x40] sm:$0xff]
        %v1762 = vld [vmem:[%s248 + $0x48] sm:$0xff]
        %v1763 = vld [vmem:[%s248 + $0x50] sm:$0xff]
        %v1764 = vld [vmem:[%s248 + $0x58] sm:$0xff]
        %v1765 = vld [vmem:[%s248 + $0x60] sm:$0xff]
        %v1766 = vld [vmem:[%s248 + $0x68] sm:$0xff]
        %v1767 = vld [vmem:[%s248 + $0x70] sm:$0xff]
        %v1768 = vld [vmem:[%s248 + $0x78] sm:$0xff]
        %v1769 = vld [vmem:[%s248 + $0x80] sm:$0xff]
        %v1770 = vld [vmem:[%s248 + $0x88] sm:$0xff]
        %v1771 = vld [vmem:[%s248 + $0x90] sm:$0xff]
        %v1772 = vld [vmem:[%s248 + $0x98] sm:$0xff]
        %v1773 = vld [vmem:[%s248 + $0xa0] sm:$0xff]
        %v1774 = vld [vmem:[%s248 + $0xa8] sm:$0xff]
        %v1775 = vld [vmem:[%s248 + $0xb0] sm:$0xff]
        %v1776 = vld [vmem:[%s248 + $0xb8] sm:$0xff]
        %v1777 = vld [vmem:[%s248 + $0xc0] sm:$0xff]
        %v1778 = vld [vmem:[%s248 + $0xc8] sm:$0xff]
        %v1779 = vld [vmem:[%s248 + $0xd0] sm:$0xff]
        %v1780 = vld [vmem:[%s248 + $0xd8] sm:$0xff]
        %v1781 = vld [vmem:[%s248 + $0xe0] sm:$0xff]
        %v1782 = vld [vmem:[%s248 + $0xe8] sm:$0xff]
        %v1783 = vld [vmem:[%s248 + $0xf0] sm:$0xff]
        %v1784 = vld [vmem:[%s248 + $0xf8] sm:$0xff]
        %v1785 = vld [vmem:[%s248 + $0x100] sm:$0xff]
        %v1786 = vld [vmem:[%s248 + $0x108] sm:$0xff]
        %v1787 = vld [vmem:[%s248 + $0x110] sm:$0xff]
        %v1788 = vld [vmem:[%s248 + $0x118] sm:$0xff]
        %v1789 = vld [vmem:[%s248 + $0x120] sm:$0xff]
        %v1790 = vld [vmem:[%s248 + $0x128] sm:$0xff]
        %v1791 = vld [vmem:[%s248 + $0x130] sm:$0xff]
        %v1792 = vld [vmem:[%s248 + $0x138] sm:$0xff]
        %v1793 = vld [vmem:[%s248 + $0x140] sm:$0xff]
        %v1794 = vld [vmem:[%s248 + $0x148] sm:$0xff]
        %v1795 = vld [vmem:[%s248 + $0x150] sm:$0xff]
        %v1796 = vld [vmem:[%s248 + $0x158] sm:$0xff]
        %v1797 = vld [vmem:[%s248 + $0x160] sm:$0xff]
        %v1798 = vld [vmem:[%s248 + $0x168] sm:$0xff]
        %v1799 = vld [vmem:[%s248 + $0x170] sm:$0xff]
        %v1800 = vld [vmem:[%s248 + $0x178] sm:$0xff]
        %v1801 = vld [vmem:[%s248 + $0x180] sm:$0xff]
        %v1802 = vld [vmem:[%s248 + $0x188] sm:$0xff]
        %v1803 = vld [vmem:[%s248 + $0x190] sm:$0xff]
        %v1804 = vld [vmem:[%s248 + $0x198] sm:$0xff]
        %v1805 = vld [vmem:[%s248 + $0x1a0] sm:$0xff]
        %1853 = vrot.lane.b32.xlu0 %v1759, 48
        %v1854 = vpop.permute.xlu0 %1853
        %1855 = vrot.lane.b32.xlu0 %v1760, 48
        %v1856 = vpop.permute.xlu0 %1855
        %1857 = vrot.lane.b32.xlu0 %v1761, 48
        %v1858 = vpop.permute.xlu0 %1857
        %1859 = vrot.lane.b32.xlu0 %v1762, 48
        %v1860 = vpop.permute.xlu0 %1859
        %1861 = vrot.lane.b32.xlu0 %v1763, 48
        %v1862 = vpop.permute.xlu0 %1861
        %1863 = vrot.lane.b32.xlu0 %v1764, 48
        %v1864 = vpop.permute.xlu0 %1863
        %1865 = vrot.lane.b32.xlu0 %v1765, 48
        %v1866 = vpop.permute.xlu0 %1865
        %1867 = vrot.lane.b32.xlu0 %v1766, 48
        %v1868 = vpop.permute.xlu0 %1867
        %1869 = vrot.lane.b32.xlu0 %v1767, 48
        %v1870 = vpop.permute.xlu0 %1869
        %1871 = vrot.lane.b32.xlu0 %v1768, 48
        %v1872 = vpop.permute.xlu0 %1871
        %1873 = vrot.lane.b32.xlu0 %v1769, 48
        %v1874 = vpop.permute.xlu0 %1873
        %1875 = vrot.lane.b32.xlu0 %v1770, 48
        %v1876 = vpop.permute.xlu0 %1875
        %1877 = vrot.lane.b32.xlu0 %v1771, 48
        %v1878 = vpop.permute.xlu0 %1877
        %1879 = vrot.lane.b32.xlu0 %v1772, 48
        %v1880 = vpop.permute.xlu0 %1879
        %1881 = vrot.lane.b32.xlu0 %v1773, 48
        %v1882 = vpop.permute.xlu0 %1881
        %1883 = vrot.lane.b32.xlu0 %v1774, 48
        %v1884 = vpop.permute.xlu0 %1883
        %1885 = vrot.lane.b32.xlu0 %v1775, 48
        %v1886 = vpop.permute.xlu0 %1885
        %1887 = vrot.lane.b32.xlu0 %v1776, 48
        %v1888 = vpop.permute.xlu0 %1887
        %1889 = vrot.lane.b32.xlu0 %v1777, 48
        %v1890 = vpop.permute.xlu0 %1889
        %1891 = vrot.lane.b32.xlu0 %v1778, 48
        %v1892 = vpop.permute.xlu0 %1891
        %1893 = vrot.lane.b32.xlu0 %v1779, 48
        %v1894 = vpop.permute.xlu0 %1893
        %1895 = vrot.lane.b32.xlu0 %v1780, 48
        %v1896 = vpop.permute.xlu0 %1895
        %1897 = vrot.lane.b32.xlu0 %v1781, 48
        %v1898 = vpop.permute.xlu0 %1897
        %1899 = vrot.lane.b32.xlu0 %v1782, 48
        %v1900 = vpop.permute.xlu0 %1899
        %1901 = vrot.lane.b32.xlu0 %v1783, 48
        %v1902 = vpop.permute.xlu0 %1901
        %1903 = vrot.lane.b32.xlu0 %v1784, 48
        %v1904 = vpop.permute.xlu0 %1903
        %1905 = vrot.lane.b32.xlu0 %v1785, 48
        %v1906 = vpop.permute.xlu0 %1905
        %1907 = vrot.lane.b32.xlu0 %v1786, 48
        %v1908 = vpop.permute.xlu0 %1907
        %1909 = vrot.lane.b32.xlu0 %v1787, 48
        %v1910 = vpop.permute.xlu0 %1909
        %1911 = vrot.lane.b32.xlu0 %v1788, 48
        %v1912 = vpop.permute.xlu0 %1911
        %1913 = vrot.lane.b32.xlu0 %v1789, 48
        %v1914 = vpop.permute.xlu0 %1913
        %1915 = vrot.lane.b32.xlu0 %v1790, 48
        %v1916 = vpop.permute.xlu0 %1915
        %1917 = vrot.lane.b32.xlu0 %v1791, 48
        %v1918 = vpop.permute.xlu0 %1917
        %1919 = vrot.lane.b32.xlu0 %v1792, 48
        %v1920 = vpop.permute.xlu0 %1919
        %1921 = vrot.lane.b32.xlu0 %v1793, 48
        %v1922 = vpop.permute.xlu0 %1921
        %1923 = vrot.lane.b32.xlu0 %v1794, 48
        %v1924 = vpop.permute.xlu0 %1923
        %1925 = vrot.lane.b32.xlu0 %v1795, 48
        %v1926 = vpop.permute.xlu0 %1925
        %1927 = vrot.lane.b32.xlu0 %v1796, 48
        %v1928 = vpop.permute.xlu0 %1927
        %1929 = vrot.lane.b32.xlu0 %v1797, 48
        %v1930 = vpop.permute.xlu0 %1929
        %1931 = vrot.lane.b32.xlu0 %v1798, 48
        %v1932 = vpop.permute.xlu0 %1931
        %1933 = vrot.lane.b32.xlu0 %v1799, 48
        %v1934 = vpop.permute.xlu0 %1933
        %1935 = vrot.lane.b32.xlu0 %v1800, 48
        %v1936 = vpop.permute.xlu0 %1935
        %1937 = vrot.lane.b32.xlu0 %v1801, 48
        %v1938 = vpop.permute.xlu0 %1937
        %1939 = vrot.lane.b32.xlu0 %v1802, 48
        %v1940 = vpop.permute.xlu0 %1939
        %1941 = vrot.lane.b32.xlu0 %v1803, 48
        %v1942 = vpop.permute.xlu0 %1941
        %1943 = vrot.lane.b32.xlu0 %v1804, 48
        %v1944 = vpop.permute.xlu0 %1943
        %1945 = vrot.lane.b32.xlu0 %v1805, 48
        %v1946 = vpop.permute.xlu0 %1945
        %vm1994 = vcmask 458112
        %1995 = vst.msk [vmem:[#allocation2] sm:$0xff] %vm1994, %v1854
        %1996 = vst.msk [vmem:[#allocation2 + $0x8] sm:$0xff] %vm1994, %v1856
        %1997 = vst.msk [vmem:[#allocation2 + $0x10] sm:$0xff] %vm1994, %v1858
        %1998 = vst.msk [vmem:[#allocation2 + $0x18] sm:$0xff] %vm1994, %v1860
        %1999 = vst.msk [vmem:[#allocation2 + $0x20] sm:$0xff] %vm1994, %v1862
        %2000 = vst.msk [vmem:[#allocation2 + $0x28] sm:$0xff] %vm1994, %v1864
        %2001 = vst.msk [vmem:[#allocation2 + $0x30] sm:$0xff] %vm1994, %v1866
        %2002 = vst.msk [vmem:[#allocation2 + $0x38] sm:$0xff] %vm1994, %v1868
        %2003 = vst.msk [vmem:[#allocation2 + $0x40] sm:$0xff] %vm1994, %v1870
        %2004 = vst.msk [vmem:[#allocation2 + $0x48] sm:$0xff] %vm1994, %v1872
        %2005 = vst.msk [vmem:[#allocation2 + $0x50] sm:$0xff] %vm1994, %v1874
        %2006 = vst.msk [vmem:[#allocation2 + $0x58] sm:$0xff] %vm1994, %v1876
        %2007 = vst.msk [vmem:[#allocation2 + $0x60] sm:$0xff] %vm1994, %v1878
        %2008 = vst.msk [vmem:[#allocation2 + $0x68] sm:$0xff] %vm1994, %v1880
        %2009 = vst.msk [vmem:[#allocation2 + $0x70] sm:$0xff] %vm1994, %v1882
        %2010 = vst.msk [vmem:[#allocation2 + $0x78] sm:$0xff] %vm1994, %v1884
        %2011 = vst.msk [vmem:[#allocation2 + $0x80] sm:$0xff] %vm1994, %v1886
        %2012 = vst.msk [vmem:[#allocation2 + $0x88] sm:$0xff] %vm1994, %v1888
        %2013 = vst.msk [vmem:[#allocation2 + $0x90] sm:$0xff] %vm1994, %v1890
        %2014 = vst.msk [vmem:[#allocation2 + $0x98] sm:$0xff] %vm1994, %v1892
        %2015 = vst.msk [vmem:[#allocation2 + $0xa0] sm:$0xff] %vm1994, %v1894
        %2016 = vst.msk [vmem:[#allocation2 + $0xa8] sm:$0xff] %vm1994, %v1896
        %2017 = vst.msk [vmem:[#allocation2 + $0xb0] sm:$0xff] %vm1994, %v1898
        %2018 = vst.msk [vmem:[#allocation2 + $0xb8] sm:$0xff] %vm1994, %v1900
        %2019 = vst.msk [vmem:[#allocation2 + $0xc0] sm:$0xff] %vm1994, %v1902
        %2020 = vst.msk [vmem:[#allocation2 + $0xc8] sm:$0xff] %vm1994, %v1904
        %2021 = vst.msk [vmem:[#allocation2 + $0xd0] sm:$0xff] %vm1994, %v1906
        %2022 = vst.msk [vmem:[#allocation2 + $0xd8] sm:$0xff] %vm1994, %v1908
        %2023 = vst.msk [vmem:[#allocation2 + $0xe0] sm:$0xff] %vm1994, %v1910
        %2024 = vst.msk [vmem:[#allocation2 + $0xe8] sm:$0xff] %vm1994, %v1912
        %2025 = vst.msk [vmem:[#allocation2 + $0xf0] sm:$0xff] %vm1994, %v1914
        %2026 = vst.msk [vmem:[#allocation2 + $0xf8] sm:$0xff] %vm1994, %v1916
        %2027 = vst.msk [vmem:[#allocation2 + $0x100] sm:$0xff] %vm1994, %v1918
        %2028 = vst.msk [vmem:[#allocation2 + $0x108] sm:$0xff] %vm1994, %v1920
        %2029 = vst.msk [vmem:[#allocation2 + $0x110] sm:$0xff] %vm1994, %v1922
        %2030 = vst.msk [vmem:[#allocation2 + $0x118] sm:$0xff] %vm1994, %v1924
        %2031 = vst.msk [vmem:[#allocation2 + $0x120] sm:$0xff] %vm1994, %v1926
        %2032 = vst.msk [vmem:[#allocation2 + $0x128] sm:$0xff] %vm1994, %v1928
        %2033 = vst.msk [vmem:[#allocation2 + $0x130] sm:$0xff] %vm1994, %v1930
        %2034 = vst.msk [vmem:[#allocation2 + $0x138] sm:$0xff] %vm1994, %v1932
        %2035 = vst.msk [vmem:[#allocation2 + $0x140] sm:$0xff] %vm1994, %v1934
        %2036 = vst.msk [vmem:[#allocation2 + $0x148] sm:$0xff] %vm1994, %v1936
        %2037 = vst.msk [vmem:[#allocation2 + $0x150] sm:$0xff] %vm1994, %v1938
        %2038 = vst.msk [vmem:[#allocation2 + $0x158] sm:$0xff] %vm1994, %v1940
        %2039 = vst.msk [vmem:[#allocation2 + $0x160] sm:$0xff] %vm1994, %v1942
        %2040 = vst.msk [vmem:[#allocation2 + $0x168] sm:$0xff] %vm1994, %v1944
        %2041 = vst.msk [vmem:[#allocation2 + $0x170] sm:$0xff] %vm1994, %v1946
        %v2042 = vld [vmem:[%s248 + $0x31] sm:$0xff]
        %v2043 = vld [vmem:[%s248 + $0x39] sm:$0xff]
        %v2044 = vld [vmem:[%s248 + $0x41] sm:$0xff]
        %v2045 = vld [vmem:[%s248 + $0x49] sm:$0xff]
        %v2046 = vld [vmem:[%s248 + $0x51] sm:$0xff]
        %v2047 = vld [vmem:[%s248 + $0x59] sm:$0xff]
        %v2048 = vld [vmem:[%s248 + $0x61] sm:$0xff]
        %v2049 = vld [vmem:[%s248 + $0x69] sm:$0xff]
        %v2050 = vld [vmem:[%s248 + $0x71] sm:$0xff]
        %v2051 = vld [vmem:[%s248 + $0x79] sm:$0xff]
        %v2052 = vld [vmem:[%s248 + $0x81] sm:$0xff]
        %v2053 = vld [vmem:[%s248 + $0x89] sm:$0xff]
        %v2054 = vld [vmem:[%s248 + $0x91] sm:$0xff]
        %v2055 = vld [vmem:[%s248 + $0x99] sm:$0xff]
        %v2056 = vld [vmem:[%s248 + $0xa1] sm:$0xff]
        %v2057 = vld [vmem:[%s248 + $0xa9] sm:$0xff]
        %v2058 = vld [vmem:[%s248 + $0xb1] sm:$0xff]
        %v2059 = vld [vmem:[%s248 + $0xb9] sm:$0xff]
        %v2060 = vld [vmem:[%s248 + $0xc1] sm:$0xff]
        %v2061 = vld [vmem:[%s248 + $0xc9] sm:$0xff]
        %v2062 = vld [vmem:[%s248 + $0xd1] sm:$0xff]
        %v2063 = vld [vmem:[%s248 + $0xd9] sm:$0xff]
        %v2064 = vld [vmem:[%s248 + $0xe1] sm:$0xff]
        %v2065 = vld [vmem:[%s248 + $0xe9] sm:$0xff]
        %v2066 = vld [vmem:[%s248 + $0xf1] sm:$0xff]
        %v2067 = vld [vmem:[%s248 + $0xf9] sm:$0xff]
        %v2068 = vld [vmem:[%s248 + $0x101] sm:$0xff]
        %v2069 = vld [vmem:[%s248 + $0x109] sm:$0xff]
        %v2070 = vld [vmem:[%s248 + $0x111] sm:$0xff]
        %v2071 = vld [vmem:[%s248 + $0x119] sm:$0xff]
        %v2072 = vld [vmem:[%s248 + $0x121] sm:$0xff]
        %v2073 = vld [vmem:[%s248 + $0x129] sm:$0xff]
        %v2074 = vld [vmem:[%s248 + $0x131] sm:$0xff]
        %v2075 = vld [vmem:[%s248 + $0x139] sm:$0xff]
        %v2076 = vld [vmem:[%s248 + $0x141] sm:$0xff]
        %v2077 = vld [vmem:[%s248 + $0x149] sm:$0xff]
        %v2078 = vld [vmem:[%s248 + $0x151] sm:$0xff]
        %v2079 = vld [vmem:[%s248 + $0x159] sm:$0xff]
        %v2080 = vld [vmem:[%s248 + $0x161] sm:$0xff]
        %v2081 = vld [vmem:[%s248 + $0x169] sm:$0xff]
        %v2082 = vld [vmem:[%s248 + $0x171] sm:$0xff]
        %v2083 = vld [vmem:[%s248 + $0x179] sm:$0xff]
        %v2084 = vld [vmem:[%s248 + $0x181] sm:$0xff]
        %v2085 = vld [vmem:[%s248 + $0x189] sm:$0xff]
        %v2086 = vld [vmem:[%s248 + $0x191] sm:$0xff]
        %v2087 = vld [vmem:[%s248 + $0x199] sm:$0xff]
        %v2088 = vld [vmem:[%s248 + $0x1a1] sm:$0xff]
        %2136 = vrot.lane.b32.xlu0 %v2042, 56
        %v2137 = vpop.permute.xlu0 %2136
        %2138 = vrot.lane.b32.xlu0 %v2043, 56
        %v2139 = vpop.permute.xlu0 %2138
        %2140 = vrot.lane.b32.xlu0 %v2044, 56
        %v2141 = vpop.permute.xlu0 %2140
        %2142 = vrot.lane.b32.xlu0 %v2045, 56
        %v2143 = vpop.permute.xlu0 %2142
        %2144 = vrot.lane.b32.xlu0 %v2046, 56
        %v2145 = vpop.permute.xlu0 %2144
        %2146 = vrot.lane.b32.xlu0 %v2047, 56
        %v2147 = vpop.permute.xlu0 %2146
        %2148 = vrot.lane.b32.xlu0 %v2048, 56
        %v2149 = vpop.permute.xlu0 %2148
        %2150 = vrot.lane.b32.xlu0 %v2049, 56
        %v2151 = vpop.permute.xlu0 %2150
        %2152 = vrot.lane.b32.xlu0 %v2050, 56
        %v2153 = vpop.permute.xlu0 %2152
        %2154 = vrot.lane.b32.xlu0 %v2051, 56
        %v2155 = vpop.permute.xlu0 %2154
        %2156 = vrot.lane.b32.xlu0 %v2052, 56
        %v2157 = vpop.permute.xlu0 %2156
        %2158 = vrot.lane.b32.xlu0 %v2053, 56
        %v2159 = vpop.permute.xlu0 %2158
        %2160 = vrot.lane.b32.xlu0 %v2054, 56
        %v2161 = vpop.permute.xlu0 %2160
        %2162 = vrot.lane.b32.xlu0 %v2055, 56
        %v2163 = vpop.permute.xlu0 %2162
        %2164 = vrot.lane.b32.xlu0 %v2056, 56
        %v2165 = vpop.permute.xlu0 %2164
        %2166 = vrot.lane.b32.xlu0 %v2057, 56
        %v2167 = vpop.permute.xlu0 %2166
        %2168 = vrot.lane.b32.xlu0 %v2058, 56
        %v2169 = vpop.permute.xlu0 %2168
        %2170 = vrot.lane.b32.xlu0 %v2059, 56
        %v2171 = vpop.permute.xlu0 %2170
        %2172 = vrot.lane.b32.xlu0 %v2060, 56
        %v2173 = vpop.permute.xlu0 %2172
        %2174 = vrot.lane.b32.xlu0 %v2061, 56
        %v2175 = vpop.permute.xlu0 %2174
        %2176 = vrot.lane.b32.xlu0 %v2062, 56
        %v2177 = vpop.permute.xlu0 %2176
        %2178 = vrot.lane.b32.xlu0 %v2063, 56
        %v2179 = vpop.permute.xlu0 %2178
        %2180 = vrot.lane.b32.xlu0 %v2064, 56
        %v2181 = vpop.permute.xlu0 %2180
        %2182 = vrot.lane.b32.xlu0 %v2065, 56
        %v2183 = vpop.permute.xlu0 %2182
        %2184 = vrot.lane.b32.xlu0 %v2066, 56
        %v2185 = vpop.permute.xlu0 %2184
        %2186 = vrot.lane.b32.xlu0 %v2067, 56
        %v2187 = vpop.permute.xlu0 %2186
        %2188 = vrot.lane.b32.xlu0 %v2068, 56
        %v2189 = vpop.permute.xlu0 %2188
        %2190 = vrot.lane.b32.xlu0 %v2069, 56
        %v2191 = vpop.permute.xlu0 %2190
        %2192 = vrot.lane.b32.xlu0 %v2070, 56
        %v2193 = vpop.permute.xlu0 %2192
        %2194 = vrot.lane.b32.xlu0 %v2071, 56
        %v2195 = vpop.permute.xlu0 %2194
        %2196 = vrot.lane.b32.xlu0 %v2072, 56
        %v2197 = vpop.permute.xlu0 %2196
        %2198 = vrot.lane.b32.xlu0 %v2073, 56
        %v2199 = vpop.permute.xlu0 %2198
        %2200 = vrot.lane.b32.xlu0 %v2074, 56
        %v2201 = vpop.permute.xlu0 %2200
        %2202 = vrot.lane.b32.xlu0 %v2075, 56
        %v2203 = vpop.permute.xlu0 %2202
        %2204 = vrot.lane.b32.xlu0 %v2076, 56
        %v2205 = vpop.permute.xlu0 %2204
        %2206 = vrot.lane.b32.xlu0 %v2077, 56
        %v2207 = vpop.permute.xlu0 %2206
        %2208 = vrot.lane.b32.xlu0 %v2078, 56
        %v2209 = vpop.permute.xlu0 %2208
        %2210 = vrot.lane.b32.xlu0 %v2079, 56
        %v2211 = vpop.permute.xlu0 %2210
        %2212 = vrot.lane.b32.xlu0 %v2080, 56
        %v2213 = vpop.permute.xlu0 %2212
        %2214 = vrot.lane.b32.xlu0 %v2081, 56
        %v2215 = vpop.permute.xlu0 %2214
        %2216 = vrot.lane.b32.xlu0 %v2082, 56
        %v2217 = vpop.permute.xlu0 %2216
        %2218 = vrot.lane.b32.xlu0 %v2083, 56
        %v2219 = vpop.permute.xlu0 %2218
        %2220 = vrot.lane.b32.xlu0 %v2084, 56
        %v2221 = vpop.permute.xlu0 %2220
        %2222 = vrot.lane.b32.xlu0 %v2085, 56
        %v2223 = vpop.permute.xlu0 %2222
        %2224 = vrot.lane.b32.xlu0 %v2086, 56
        %v2225 = vpop.permute.xlu0 %2224
        %2226 = vrot.lane.b32.xlu0 %v2087, 56
        %v2227 = vpop.permute.xlu0 %2226
        %2228 = vrot.lane.b32.xlu0 %v2088, 56
        %v2229 = vpop.permute.xlu0 %2228
        %vm2277 = vcmask 523712
        %2278 = vst.msk [vmem:[#allocation2] sm:$0xff] %vm2277, %v2137
        %2279 = vst.msk [vmem:[#allocation2 + $0x8] sm:$0xff] %vm2277, %v2139
        %2280 = vst.msk [vmem:[#allocation2 + $0x10] sm:$0xff] %vm2277, %v2141
        %2281 = vst.msk [vmem:[#allocation2 + $0x18] sm:$0xff] %vm2277, %v2143
        %2282 = vst.msk [vmem:[#allocation2 + $0x20] sm:$0xff] %vm2277, %v2145
        %2283 = vst.msk [vmem:[#allocation2 + $0x28] sm:$0xff] %vm2277, %v2147
        %2284 = vst.msk [vmem:[#allocation2 + $0x30] sm:$0xff] %vm2277, %v2149
        %2285 = vst.msk [vmem:[#allocation2 + $0x38] sm:$0xff] %vm2277, %v2151
        %2286 = vst.msk [vmem:[#allocation2 + $0x40] sm:$0xff] %vm2277, %v2153
        %2287 = vst.msk [vmem:[#allocation2 + $0x48] sm:$0xff] %vm2277, %v2155
        %2288 = vst.msk [vmem:[#allocation2 + $0x50] sm:$0xff] %vm2277, %v2157
        %2289 = vst.msk [vmem:[#allocation2 + $0x58] sm:$0xff] %vm2277, %v2159
        %2290 = vst.msk [vmem:[#allocation2 + $0x60] sm:$0xff] %vm2277, %v2161
        %2291 = vst.msk [vmem:[#allocation2 + $0x68] sm:$0xff] %vm2277, %v2163
        %2292 = vst.msk [vmem:[#allocation2 + $0x70] sm:$0xff] %vm2277, %v2165
        %2293 = vst.msk [vmem:[#allocation2 + $0x78] sm:$0xff] %vm2277, %v2167
        %2294 = vst.msk [vmem:[#allocation2 + $0x80] sm:$0xff] %vm2277, %v2169
        %2295 = vst.msk [vmem:[#allocation2 + $0x88] sm:$0xff] %vm2277, %v2171
        %2296 = vst.msk [vmem:[#allocation2 + $0x90] sm:$0xff] %vm2277, %v2173
        %2297 = vst.msk [vmem:[#allocation2 + $0x98] sm:$0xff] %vm2277, %v2175
        %2298 = vst.msk [vmem:[#allocation2 + $0xa0] sm:$0xff] %vm2277, %v2177
        %2299 = vst.msk [vmem:[#allocation2 + $0xa8] sm:$0xff] %vm2277, %v2179
        %2300 = vst.msk [vmem:[#allocation2 + $0xb0] sm:$0xff] %vm2277, %v2181
        %2301 = vst.msk [vmem:[#allocation2 + $0xb8] sm:$0xff] %vm2277, %v2183
        %2302 = vst.msk [vmem:[#allocation2 + $0xc0] sm:$0xff] %vm2277, %v2185
        %2303 = vst.msk [vmem:[#allocation2 + $0xc8] sm:$0xff] %vm2277, %v2187
        %2304 = vst.msk [vmem:[#allocation2 + $0xd0] sm:$0xff] %vm2277, %v2189
        %2305 = vst.msk [vmem:[#allocation2 + $0xd8] sm:$0xff] %vm2277, %v2191
        %2306 = vst.msk [vmem:[#allocation2 + $0xe0] sm:$0xff] %vm2277, %v2193
        %2307 = vst.msk [vmem:[#allocation2 + $0xe8] sm:$0xff] %vm2277, %v2195
        %2308 = vst.msk [vmem:[#allocation2 + $0xf0] sm:$0xff] %vm2277, %v2197
        %2309 = vst.msk [vmem:[#allocation2 + $0xf8] sm:$0xff] %vm2277, %v2199
        %2310 = vst.msk [vmem:[#allocation2 + $0x100] sm:$0xff] %vm2277, %v2201
        %2311 = vst.msk [vmem:[#allocation2 + $0x108] sm:$0xff] %vm2277, %v2203
        %2312 = vst.msk [vmem:[#allocation2 + $0x110] sm:$0xff] %vm2277, %v2205
        %2313 = vst.msk [vmem:[#allocation2 + $0x118] sm:$0xff] %vm2277, %v2207
        %2314 = vst.msk [vmem:[#allocation2 + $0x120] sm:$0xff] %vm2277, %v2209
        %2315 = vst.msk [vmem:[#allocation2 + $0x128] sm:$0xff] %vm2277, %v2211
        %2316 = vst.msk [vmem:[#allocation2 + $0x130] sm:$0xff] %vm2277, %v2213
        %2317 = vst.msk [vmem:[#allocation2 + $0x138] sm:$0xff] %vm2277, %v2215
        %2318 = vst.msk [vmem:[#allocation2 + $0x140] sm:$0xff] %vm2277, %v2217
        %2319 = vst.msk [vmem:[#allocation2 + $0x148] sm:$0xff] %vm2277, %v2219
        %2320 = vst.msk [vmem:[#allocation2 + $0x150] sm:$0xff] %vm2277, %v2221
        %2321 = vst.msk [vmem:[#allocation2 + $0x158] sm:$0xff] %vm2277, %v2223
        %2322 = vst.msk [vmem:[#allocation2 + $0x160] sm:$0xff] %vm2277, %v2225
        %2323 = vst.msk [vmem:[#allocation2 + $0x168] sm:$0xff] %vm2277, %v2227
        %2324 = vst.msk [vmem:[#allocation2 + $0x170] sm:$0xff] %vm2277, %v2229
        %v2325 = vld [vmem:[%s248 + $0x32] sm:$0xff]
        %v2326 = vld [vmem:[%s248 + $0x3a] sm:$0xff]
        %v2327 = vld [vmem:[%s248 + $0x42] sm:$0xff]
        %v2328 = vld [vmem:[%s248 + $0x4a] sm:$0xff]
        %v2329 = vld [vmem:[%s248 + $0x52] sm:$0xff]
        %v2330 = vld [vmem:[%s248 + $0x5a] sm:$0xff]
        %v2331 = vld [vmem:[%s248 + $0x62] sm:$0xff]
        %v2332 = vld [vmem:[%s248 + $0x6a] sm:$0xff]
        %v2333 = vld [vmem:[%s248 + $0x72] sm:$0xff]
        %v2334 = vld [vmem:[%s248 + $0x7a] sm:$0xff]
        %v2335 = vld [vmem:[%s248 + $0x82] sm:$0xff]
        %v2336 = vld [vmem:[%s248 + $0x8a] sm:$0xff]
        %v2337 = vld [vmem:[%s248 + $0x92] sm:$0xff]
        %v2338 = vld [vmem:[%s248 + $0x9a] sm:$0xff]
        %v2339 = vld [vmem:[%s248 + $0xa2] sm:$0xff]
        %v2340 = vld [vmem:[%s248 + $0xaa] sm:$0xff]
        %v2341 = vld [vmem:[%s248 + $0xb2] sm:$0xff]
        %v2342 = vld [vmem:[%s248 + $0xba] sm:$0xff]
        %v2343 = vld [vmem:[%s248 + $0xc2] sm:$0xff]
        %v2344 = vld [vmem:[%s248 + $0xca] sm:$0xff]
        %v2345 = vld [vmem:[%s248 + $0xd2] sm:$0xff]
        %v2346 = vld [vmem:[%s248 + $0xda] sm:$0xff]
        %v2347 = vld [vmem:[%s248 + $0xe2] sm:$0xff]
        %v2348 = vld [vmem:[%s248 + $0xea] sm:$0xff]
        %v2349 = vld [vmem:[%s248 + $0xf2] sm:$0xff]
        %v2350 = vld [vmem:[%s248 + $0xfa] sm:$0xff]
        %v2351 = vld [vmem:[%s248 + $0x102] sm:$0xff]
        %v2352 = vld [vmem:[%s248 + $0x10a] sm:$0xff]
        %v2353 = vld [vmem:[%s248 + $0x112] sm:$0xff]
        %v2354 = vld [vmem:[%s248 + $0x11a] sm:$0xff]
        %v2355 = vld [vmem:[%s248 + $0x122] sm:$0xff]
        %v2356 = vld [vmem:[%s248 + $0x12a] sm:$0xff]
        %v2357 = vld [vmem:[%s248 + $0x132] sm:$0xff]
        %v2358 = vld [vmem:[%s248 + $0x13a] sm:$0xff]
        %v2359 = vld [vmem:[%s248 + $0x142] sm:$0xff]
        %v2360 = vld [vmem:[%s248 + $0x14a] sm:$0xff]
        %v2361 = vld [vmem:[%s248 + $0x152] sm:$0xff]
        %v2362 = vld [vmem:[%s248 + $0x15a] sm:$0xff]
        %v2363 = vld [vmem:[%s248 + $0x162] sm:$0xff]
        %v2364 = vld [vmem:[%s248 + $0x16a] sm:$0xff]
        %v2365 = vld [vmem:[%s248 + $0x172] sm:$0xff]
        %v2366 = vld [vmem:[%s248 + $0x17a] sm:$0xff]
        %v2367 = vld [vmem:[%s248 + $0x182] sm:$0xff]
        %v2368 = vld [vmem:[%s248 + $0x18a] sm:$0xff]
        %v2369 = vld [vmem:[%s248 + $0x192] sm:$0xff]
        %v2370 = vld [vmem:[%s248 + $0x19a] sm:$0xff]
        %v2371 = vld [vmem:[%s248 + $0x1a2] sm:$0xff]
        %2419 = vrot.lane.b32.xlu0 %v2325, 64
        %v2420 = vpop.permute.xlu0 %2419
        %2421 = vrot.lane.b32.xlu0 %v2326, 64
        %v2422 = vpop.permute.xlu0 %2421
        %2423 = vrot.lane.b32.xlu0 %v2327, 64
        %v2424 = vpop.permute.xlu0 %2423
        %2425 = vrot.lane.b32.xlu0 %v2328, 64
        %v2426 = vpop.permute.xlu0 %2425
        %2427 = vrot.lane.b32.xlu0 %v2329, 64
        %v2428 = vpop.permute.xlu0 %2427
        %2429 = vrot.lane.b32.xlu0 %v2330, 64
        %v2430 = vpop.permute.xlu0 %2429
        %2431 = vrot.lane.b32.xlu0 %v2331, 64
        %v2432 = vpop.permute.xlu0 %2431
        %2433 = vrot.lane.b32.xlu0 %v2332, 64
        %v2434 = vpop.permute.xlu0 %2433
        %2435 = vrot.lane.b32.xlu0 %v2333, 64
        %v2436 = vpop.permute.xlu0 %2435
        %2437 = vrot.lane.b32.xlu0 %v2334, 64
        %v2438 = vpop.permute.xlu0 %2437
        %2439 = vrot.lane.b32.xlu0 %v2335, 64
        %v2440 = vpop.permute.xlu0 %2439
        %2441 = vrot.lane.b32.xlu0 %v2336, 64
        %v2442 = vpop.permute.xlu0 %2441
        %2443 = vrot.lane.b32.xlu0 %v2337, 64
        %v2444 = vpop.permute.xlu0 %2443
        %2445 = vrot.lane.b32.xlu0 %v2338, 64
        %v2446 = vpop.permute.xlu0 %2445
        %2447 = vrot.lane.b32.xlu0 %v2339, 64
        %v2448 = vpop.permute.xlu0 %2447
        %2449 = vrot.lane.b32.xlu0 %v2340, 64
        %v2450 = vpop.permute.xlu0 %2449
        %2451 = vrot.lane.b32.xlu0 %v2341, 64
        %v2452 = vpop.permute.xlu0 %2451
        %2453 = vrot.lane.b32.xlu0 %v2342, 64
        %v2454 = vpop.permute.xlu0 %2453
        %2455 = vrot.lane.b32.xlu0 %v2343, 64
        %v2456 = vpop.permute.xlu0 %2455
        %2457 = vrot.lane.b32.xlu0 %v2344, 64
        %v2458 = vpop.permute.xlu0 %2457
        %2459 = vrot.lane.b32.xlu0 %v2345, 64
        %v2460 = vpop.permute.xlu0 %2459
        %2461 = vrot.lane.b32.xlu0 %v2346, 64
        %v2462 = vpop.permute.xlu0 %2461
        %2463 = vrot.lane.b32.xlu0 %v2347, 64
        %v2464 = vpop.permute.xlu0 %2463
        %2465 = vrot.lane.b32.xlu0 %v2348, 64
        %v2466 = vpop.permute.xlu0 %2465
        %2467 = vrot.lane.b32.xlu0 %v2349, 64
        %v2468 = vpop.permute.xlu0 %2467
        %2469 = vrot.lane.b32.xlu0 %v2350, 64
        %v2470 = vpop.permute.xlu0 %2469
        %2471 = vrot.lane.b32.xlu0 %v2351, 64
        %v2472 = vpop.permute.xlu0 %2471
        %2473 = vrot.lane.b32.xlu0 %v2352, 64
        %v2474 = vpop.permute.xlu0 %2473
        %2475 = vrot.lane.b32.xlu0 %v2353, 64
        %v2476 = vpop.permute.xlu0 %2475
        %2477 = vrot.lane.b32.xlu0 %v2354, 64
        %v2478 = vpop.permute.xlu0 %2477
        %2479 = vrot.lane.b32.xlu0 %v2355, 64
        %v2480 = vpop.permute.xlu0 %2479
        %2481 = vrot.lane.b32.xlu0 %v2356, 64
        %v2482 = vpop.permute.xlu0 %2481
        %2483 = vrot.lane.b32.xlu0 %v2357, 64
        %v2484 = vpop.permute.xlu0 %2483
        %2485 = vrot.lane.b32.xlu0 %v2358, 64
        %v2486 = vpop.permute.xlu0 %2485
        %2487 = vrot.lane.b32.xlu0 %v2359, 64
        %v2488 = vpop.permute.xlu0 %2487
        %2489 = vrot.lane.b32.xlu0 %v2360, 64
        %v2490 = vpop.permute.xlu0 %2489
        %2491 = vrot.lane.b32.xlu0 %v2361, 64
        %v2492 = vpop.permute.xlu0 %2491
        %2493 = vrot.lane.b32.xlu0 %v2362, 64
        %v2494 = vpop.permute.xlu0 %2493
        %2495 = vrot.lane.b32.xlu0 %v2363, 64
        %v2496 = vpop.permute.xlu0 %2495
        %2497 = vrot.lane.b32.xlu0 %v2364, 64
        %v2498 = vpop.permute.xlu0 %2497
        %2499 = vrot.lane.b32.xlu0 %v2365, 64
        %v2500 = vpop.permute.xlu0 %2499
        %2501 = vrot.lane.b32.xlu0 %v2366, 64
        %v2502 = vpop.permute.xlu0 %2501
        %2503 = vrot.lane.b32.xlu0 %v2367, 64
        %v2504 = vpop.permute.xlu0 %2503
        %2505 = vrot.lane.b32.xlu0 %v2368, 64
        %v2506 = vpop.permute.xlu0 %2505
        %2507 = vrot.lane.b32.xlu0 %v2369, 64
        %v2508 = vpop.permute.xlu0 %2507
        %2509 = vrot.lane.b32.xlu0 %v2370, 64
        %v2510 = vpop.permute.xlu0 %2509
        %2511 = vrot.lane.b32.xlu0 %v2371, 64
        %v2512 = vpop.permute.xlu0 %2511
        %vm2560 = vcmask 589312
        %2561 = vst.msk [vmem:[#allocation2] sm:$0xff] %vm2560, %v2420
        %2562 = vst.msk [vmem:[#allocation2 + $0x8] sm:$0xff] %vm2560, %v2422
        %2563 = vst.msk [vmem:[#allocation2 + $0x10] sm:$0xff] %vm2560, %v2424
        %2564 = vst.msk [vmem:[#allocation2 + $0x18] sm:$0xff] %vm2560, %v2426
        %2565 = vst.msk [vmem:[#allocation2 + $0x20] sm:$0xff] %vm2560, %v2428
        %2566 = vst.msk [vmem:[#allocation2 + $0x28] sm:$0xff] %vm2560, %v2430
        %2567 = vst.msk [vmem:[#allocation2 + $0x30] sm:$0xff] %vm2560, %v2432
        %2568 = vst.msk [vmem:[#allocation2 + $0x38] sm:$0xff] %vm2560, %v2434
        %2569 = vst.msk [vmem:[#allocation2 + $0x40] sm:$0xff] %vm2560, %v2436
        %2570 = vst.msk [vmem:[#allocation2 + $0x48] sm:$0xff] %vm2560, %v2438
        %2571 = vst.msk [vmem:[#allocation2 + $0x50] sm:$0xff] %vm2560, %v2440
        %2572 = vst.msk [vmem:[#allocation2 + $0x58] sm:$0xff] %vm2560, %v2442
        %2573 = vst.msk [vmem:[#allocation2 + $0x60] sm:$0xff] %vm2560, %v2444
        %2574 = vst.msk [vmem:[#allocation2 + $0x68] sm:$0xff] %vm2560, %v2446
        %2575 = vst.msk [vmem:[#allocation2 + $0x70] sm:$0xff] %vm2560, %v2448
        %2576 = vst.msk [vmem:[#allocation2 + $0x78] sm:$0xff] %vm2560, %v2450
        %2577 = vst.msk [vmem:[#allocation2 + $0x80] sm:$0xff] %vm2560, %v2452
        %2578 = vst.msk [vmem:[#allocation2 + $0x88] sm:$0xff] %vm2560, %v2454
        %2579 = vst.msk [vmem:[#allocation2 + $0x90] sm:$0xff] %vm2560, %v2456
        %2580 = vst.msk [vmem:[#allocation2 + $0x98] sm:$0xff] %vm2560, %v2458
        %2581 = vst.msk [vmem:[#allocation2 + $0xa0] sm:$0xff] %vm2560, %v2460
        %2582 = vst.msk [vmem:[#allocation2 + $0xa8] sm:$0xff] %vm2560, %v2462
        %2583 = vst.msk [vmem:[#allocation2 + $0xb0] sm:$0xff] %vm2560, %v2464
        %2584 = vst.msk [vmem:[#allocation2 + $0xb8] sm:$0xff] %vm2560, %v2466
        %2585 = vst.msk [vmem:[#allocation2 + $0xc0] sm:$0xff] %vm2560, %v2468
        %2586 = vst.msk [vmem:[#allocation2 + $0xc8] sm:$0xff] %vm2560, %v2470
        %2587 = vst.msk [vmem:[#allocation2 + $0xd0] sm:$0xff] %vm2560, %v2472
        %2588 = vst.msk [vmem:[#allocation2 + $0xd8] sm:$0xff] %vm2560, %v2474
        %2589 = vst.msk [vmem:[#allocation2 + $0xe0] sm:$0xff] %vm2560, %v2476
        %2590 = vst.msk [vmem:[#allocation2 + $0xe8] sm:$0xff] %vm2560, %v2478
        %2591 = vst.msk [vmem:[#allocation2 + $0xf0] sm:$0xff] %vm2560, %v2480
        %2592 = vst.msk [vmem:[#allocation2 + $0xf8] sm:$0xff] %vm2560, %v2482
        %2593 = vst.msk [vmem:[#allocation2 + $0x100] sm:$0xff] %vm2560, %v2484
        %2594 = vst.msk [vmem:[#allocation2 + $0x108] sm:$0xff] %vm2560, %v2486
        %2595 = vst.msk [vmem:[#allocation2 + $0x110] sm:$0xff] %vm2560, %v2488
        %2596 = vst.msk [vmem:[#allocation2 + $0x118] sm:$0xff] %vm2560, %v2490
        %2597 = vst.msk [vmem:[#allocation2 + $0x120] sm:$0xff] %vm2560, %v2492
        %2598 = vst.msk [vmem:[#allocation2 + $0x128] sm:$0xff] %vm2560, %v2494
        %2599 = vst.msk [vmem:[#allocation2 + $0x130] sm:$0xff] %vm2560, %v2496
        %2600 = vst.msk [vmem:[#allocation2 + $0x138] sm:$0xff] %vm2560, %v2498
        %2601 = vst.msk [vmem:[#allocation2 + $0x140] sm:$0xff] %vm2560, %v2500
        %2602 = vst.msk [vmem:[#allocation2 + $0x148] sm:$0xff] %vm2560, %v2502
        %2603 = vst.msk [vmem:[#allocation2 + $0x150] sm:$0xff] %vm2560, %v2504
        %2604 = vst.msk [vmem:[#allocation2 + $0x158] sm:$0xff] %vm2560, %v2506
        %2605 = vst.msk [vmem:[#allocation2 + $0x160] sm:$0xff] %vm2560, %v2508
        %2606 = vst.msk [vmem:[#allocation2 + $0x168] sm:$0xff] %vm2560, %v2510
        %2607 = vst.msk [vmem:[#allocation2 + $0x170] sm:$0xff] %vm2560, %v2512
        %v2608 = vld [vmem:[#allocation2] sm:$0xff]
        %v2609 = vld [vmem:[#allocation2 + $0x8] sm:$0xff]
        %v2610 = vld [vmem:[#allocation2 + $0x10] sm:$0xff]
        %v2611 = vld [vmem:[#allocation2 + $0x18] sm:$0xff]
        %v2612 = vld [vmem:[#allocation2 + $0x20] sm:$0xff]
        %v2613 = vld [vmem:[#allocation2 + $0x28] sm:$0xff]
        %v2614 = vld [vmem:[#allocation2 + $0x30] sm:$0xff]
        %v2615 = vld [vmem:[#allocation2 + $0x38] sm:$0xff]
        %v2616 = vld [vmem:[#allocation2 + $0x40] sm:$0xff]
        %v2617 = vld [vmem:[#allocation2 + $0x48] sm:$0xff]
        %v2618 = vld [vmem:[#allocation2 + $0x50] sm:$0xff]
        %v2619 = vld [vmem:[#allocation2 + $0x58] sm:$0xff]
        %v2620 = vld [vmem:[#allocation2 + $0x60] sm:$0xff]
        %v2621 = vld [vmem:[#allocation2 + $0x68] sm:$0xff]
        %v2622 = vld [vmem:[#allocation2 + $0x70] sm:$0xff]
        %v2623 = vld [vmem:[#allocation2 + $0x78] sm:$0xff]
        %v2624 = vld [vmem:[#allocation2 + $0x80] sm:$0xff]
        %v2625 = vld [vmem:[#allocation2 + $0x88] sm:$0xff]
        %v2626 = vld [vmem:[#allocation2 + $0x90] sm:$0xff]
        %v2627 = vld [vmem:[#allocation2 + $0x98] sm:$0xff]
        %v2628 = vld [vmem:[#allocation2 + $0xa0] sm:$0xff]
        %v2629 = vld [vmem:[#allocation2 + $0xa8] sm:$0xff]
        %v2630 = vld [vmem:[#allocation2 + $0xb0] sm:$0xff]
        %v2631 = vld [vmem:[#allocation2 + $0xb8] sm:$0xff]
        %v2632 = vld [vmem:[#allocation2 + $0xc0] sm:$0xff]
        %v2633 = vld [vmem:[#allocation2 + $0xc8] sm:$0xff]
        %v2634 = vld [vmem:[#allocation2 + $0xd0] sm:$0xff]
        %v2635 = vld [vmem:[#allocation2 + $0xd8] sm:$0xff]
        %v2636 = vld [vmem:[#allocation2 + $0xe0] sm:$0xff]
        %v2637 = vld [vmem:[#allocation2 + $0xe8] sm:$0xff]
        %v2638 = vld [vmem:[#allocation2 + $0xf0] sm:$0xff]
        %v2639 = vld [vmem:[#allocation2 + $0xf8] sm:$0xff]
        %v2640 = vld [vmem:[#allocation2 + $0x100] sm:$0xff]
        %v2641 = vld [vmem:[#allocation2 + $0x108] sm:$0xff]
        %v2642 = vld [vmem:[#allocation2 + $0x110] sm:$0xff]
        %v2643 = vld [vmem:[#allocation2 + $0x118] sm:$0xff]
        %v2644 = vld [vmem:[#allocation2 + $0x120] sm:$0xff]
        %v2645 = vld [vmem:[#allocation2 + $0x128] sm:$0xff]
        %v2646 = vld [vmem:[#allocation2 + $0x130] sm:$0xff]
        %v2647 = vld [vmem:[#allocation2 + $0x138] sm:$0xff]
        %v2648 = vld [vmem:[#allocation2 + $0x140] sm:$0xff]
        %v2649 = vld [vmem:[#allocation2 + $0x148] sm:$0xff]
        %v2650 = vld [vmem:[#allocation2 + $0x150] sm:$0xff]
        %v2651 = vld [vmem:[#allocation2 + $0x158] sm:$0xff]
        %v2652 = vld [vmem:[#allocation2 + $0x160] sm:$0xff]
        %v2653 = vld [vmem:[#allocation2 + $0x168] sm:$0xff]
        %v2654 = vld [vmem:[#allocation2 + $0x170] sm:$0xff]
        %v2655 = vld [vmem:[%s1] sm:$0xff]
        %v2656 = vld [vmem:[%s1 + $0x8] sm:$0xff]
        %v2657 = vld [vmem:[%s1 + $0x10] sm:$0xff]
        %v2658 = vld [vmem:[%s1 + $0x18] sm:$0xff]
        %v2659 = vld [vmem:[%s1 + $0x20] sm:$0xff]
        %v2660 = vld [vmem:[%s1 + $0x28] sm:$0xff]
        %v2661 = vld [vmem:[%s1 + $0x30] sm:$0xff]
        %v2662 = vld [vmem:[%s1 + $0x38] sm:$0xff]
        %v2663 = vld [vmem:[%s1 + $0x40] sm:$0xff]
        %v2664 = vld [vmem:[%s2] sm:$0x1]
        %v2666 = vlaneseq
        %v2667 = vshrl.u32 %v2666, 7
        %v2668 = vsub.s32 0, %v2667
        %v2669 = vrot.slane %v2664, %v2668
        %vm2671 = vcmask 588800
        %v2673 = vsel %vm2671, %v2608, 0
        %v2676 = vsel %vm2671, %v2609, 0
        %v2679 = vsel %vm2671, %v2610, 0
        %v2682 = vsel %vm2671, %v2611, 0
        %v2685 = vsel %vm2671, %v2612, 0
        %v2688 = vsel %vm2671, %v2613, 0
        %v2691 = vsel %vm2671, %v2614, 0
        %v2694 = vsel %vm2671, %v2615, 0
        %v2697 = vsel %vm2671, %v2616, 0
        %v2700 = vsel %vm2671, %v2617, 0
        %v2703 = vsel %vm2671, %v2618, 0
        %v2706 = vsel %vm2671, %v2619, 0
        %v2709 = vsel %vm2671, %v2620, 0
        %v2712 = vsel %vm2671, %v2621, 0
        %v2715 = vsel %vm2671, %v2622, 0
        %v2718 = vsel %vm2671, %v2623, 0
        %v2721 = vsel %vm2671, %v2624, 0
        %v2724 = vsel %vm2671, %v2625, 0
        %v2727 = vsel %vm2671, %v2626, 0
        %v2730 = vsel %vm2671, %v2627, 0
        %v2733 = vsel %vm2671, %v2628, 0
        %v2736 = vsel %vm2671, %v2629, 0
        %v2739 = vsel %vm2671, %v2630, 0
        %v2742 = vsel %vm2671, %v2631, 0
        %v2745 = vsel %vm2671, %v2632, 0
        %v2748 = vsel %vm2671, %v2633, 0
        %v2751 = vsel %vm2671, %v2634, 0
        %v2754 = vsel %vm2671, %v2635, 0
        %v2757 = vsel %vm2671, %v2636, 0
        %v2760 = vsel %vm2671, %v2637, 0
        %v2763 = vsel %vm2671, %v2638, 0
        %v2766 = vsel %vm2671, %v2639, 0
        %v2769 = vsel %vm2671, %v2640, 0
        %v2772 = vsel %vm2671, %v2641, 0
        %v2775 = vsel %vm2671, %v2642, 0
        %v2778 = vsel %vm2671, %v2643, 0
        %v2781 = vsel %vm2671, %v2644, 0
        %v2784 = vsel %vm2671, %v2645, 0
        %v2787 = vsel %vm2671, %v2646, 0
        %v2790 = vsel %vm2671, %v2647, 0
        %v2793 = vsel %vm2671, %v2648, 0
        %v2796 = vsel %vm2671, %v2649, 0
        %v2799 = vsel %vm2671, %v2650, 0
        %v2802 = vsel %vm2671, %v2651, 0
        %v2805 = vsel %vm2671, %v2652, 0
        %v2808 = vsel %vm2671, %v2653, 0
        %v2811 = vsel %vm2671, %v2654, 0
        %2813 = vmatprep.subr.mxu0 0.0
        %2814 = vmatpush1.msra.mxu0 0.0
        %2815 = vmatprep.subr.mxu0 0.0
        %2816 = vmatpush1.msra.mxu0 0.0
        %2817 = vmatprep.subr.mxu0 0.0
        %2818 = vmatpush1.msra.mxu0 0.0
        %2819 = vmatprep.subr.mxu0 0.0
        %2820 = vmatpush1.msra.mxu0 0.0
        %2821 = vmatprep.subr.mxu0 0.0
        %2822 = vmatpush1.msra.mxu0 0.0
        %2823 = vmatprep.subr.mxu0 0.0
        %2824 = vmatpush1.msra.mxu0 0.0
        %2825 = vmatprep.subr.mxu0 0.0
        %2826 = vmatpush1.msra.mxu0 0.0
        %2827 = vmatprep.subr.mxu0 0.0
        %2828 = vmatpush1.msra.mxu0 %v2663
        %2829 = vmatprep.subr.mxu0 0.0
        %2830 = vmatpush1.msra.mxu0 %v2662
        %2831 = vmatprep.subr.mxu0 0.0
        %2832 = vmatpush1.msra.mxu0 %v2661
        %2833 = vmatprep.subr.mxu0 0.0
        %2834 = vmatpush1.msra.mxu0 %v2660
        %2835 = vmatprep.subr.mxu0 0.0
        %2836 = vmatpush1.msra.mxu0 %v2659
        %2837 = vmatprep.subr.mxu0 0.0
        %2838 = vmatpush1.msra.mxu0 %v2658
        %2839 = vmatprep.subr.mxu0 0.0
        %2840 = vmatpush1.msra.mxu0 %v2657
        %2841 = vmatprep.subr.mxu0 0.0
        %2842 = vmatpush1.msra.mxu0 %v2656
        %2843 = vmatprep.subr.mxu0 0.0
        %2844 = vmatpush1.msra.mxu0 %v2655
        %2845 = vmatprep.subr.mxu0 0.0
        %2846 = vmatpush2.msra.mxu0 0.0
        %2847 = vmatprep.subr.mxu0 0.0
        %2848 = vmatpush2.msra.mxu0 0.0
        %2849 = vmatprep.subr.mxu0 0.0
        %2850 = vmatpush2.msra.mxu0 0.0
        %2851 = vmatprep.subr.mxu0 0.0
        %2852 = vmatpush2.msra.mxu0 0.0
        %2853 = vmatprep.subr.mxu0 0.0
        %2854 = vmatpush2.msra.mxu0 0.0
        %2855 = vmatprep.subr.mxu0 0.0
        %2856 = vmatpush2.msra.mxu0 0.0
        %2857 = vmatprep.subr.mxu0 0.0
        %2858 = vmatpush2.msra.mxu0 0.0
        %2859 = vmatprep.subr.mxu0 0.0
        %2860 = vmatpush2.msra.mxu0 0.0
        %2861 = vmatprep.subr.mxu0 0.0
        %2862 = vmatpush2.msra.mxu0 0.0
        %2863 = vmatprep.subr.mxu0 0.0
        %2864 = vmatpush2.msra.mxu0 0.0
        %2865 = vmatprep.subr.mxu0 0.0
        %2866 = vmatpush2.msra.mxu0 0.0
        %2867 = vmatprep.subr.mxu0 0.0
        %2868 = vmatpush2.msra.mxu0 0.0
        %2869 = vmatprep.subr.mxu0 0.0
        %2870 = vmatpush2.msra.mxu0 0.0
        %2871 = vmatprep.subr.mxu0 0.0
        %2872 = vmatpush2.msra.mxu0 0.0
        %2873 = vmatprep.subr.mxu0 0.0
        %2874 = vmatpush2.msra.mxu0 0.0
        %2875 = vmatprep.subr.mxu0 0.0
        %2876 = vmatpush2.msra.mxu0 0.0
        %2877 = vmatprep.mubr.f32.mxu0 0.0
        %2878 = vmatmul.mubr.f32.gmra.mxu0 %v2673
        %v2879 = vpop.f32.mrf.mxu0
        %v2880 = vadd.f32 %v2669, %v2879
        %v2881 = vpop.f32.mrf.mxu0
        %2882 = vmatprep.mubr.f32.mxu0 0.0
        %2883 = vmatmul.mubr.f32.gmra.mxu0 %v2676
        %v2884 = vpop.f32.mrf.mxu0
        %v2885 = vadd.f32 %v2669, %v2884
        %v2886 = vpop.f32.mrf.mxu0
        %2887 = vmatprep.mubr.f32.mxu0 0.0
        %2888 = vmatmul.mubr.f32.gmra.mxu0 %v2679
        %v2889 = vpop.f32.mrf.mxu0
        %v2890 = vadd.f32 %v2669, %v2889
        %v2891 = vpop.f32.mrf.mxu0
        %2892 = vmatprep.mubr.f32.mxu0 0.0
        %2893 = vmatmul.mubr.f32.gmra.mxu0 %v2682
        %v2894 = vpop.f32.mrf.mxu0
        %v2895 = vadd.f32 %v2669, %v2894
        %v2896 = vpop.f32.mrf.mxu0
        %2897 = vmatprep.mubr.f32.mxu0 0.0
        %2898 = vmatmul.mubr.f32.gmra.mxu0 %v2685
        %v2899 = vpop.f32.mrf.mxu0
        %v2900 = vadd.f32 %v2669, %v2899
        %v2901 = vpop.f32.mrf.mxu0
        %2902 = vmatprep.mubr.f32.mxu0 0.0
        %2903 = vmatmul.mubr.f32.gmra.mxu0 %v2688
        %v2904 = vpop.f32.mrf.mxu0
        %v2905 = vadd.f32 %v2669, %v2904
        %v2906 = vpop.f32.mrf.mxu0
        %2907 = vmatprep.mubr.f32.mxu0 0.0
        %2908 = vmatmul.mubr.f32.gmra.mxu0 %v2691
        %v2909 = vpop.f32.mrf.mxu0
        %v2910 = vadd.f32 %v2669, %v2909
        %v2911 = vpop.f32.mrf.mxu0
        %2912 = vmatprep.mubr.f32.mxu0 0.0
        %2913 = vmatmul.mubr.f32.gmra.mxu0 %v2694
        %v2914 = vpop.f32.mrf.mxu0
        %v2915 = vadd.f32 %v2669, %v2914
        %v2916 = vpop.f32.mrf.mxu0
        %2917 = vmatprep.mubr.f32.mxu0 0.0
        %2918 = vmatmul.mubr.f32.gmra.mxu0 %v2697
        %v2919 = vpop.f32.mrf.mxu0
        %v2920 = vadd.f32 %v2669, %v2919
        %v2921 = vpop.f32.mrf.mxu0
        %2922 = vmatprep.mubr.f32.mxu0 0.0
        %2923 = vmatmul.mubr.f32.gmra.mxu0 %v2700
        %v2924 = vpop.f32.mrf.mxu0
        %v2925 = vadd.f32 %v2669, %v2924
        %v2926 = vpop.f32.mrf.mxu0
        %2927 = vmatprep.mubr.f32.mxu0 0.0
        %2928 = vmatmul.mubr.f32.gmra.mxu0 %v2703
        %v2929 = vpop.f32.mrf.mxu0
        %v2930 = vadd.f32 %v2669, %v2929
        %v2931 = vpop.f32.mrf.mxu0
        %2932 = vmatprep.mubr.f32.mxu0 0.0
        %2933 = vmatmul.mubr.f32.gmra.mxu0 %v2706
        %v2934 = vpop.f32.mrf.mxu0
        %v2935 = vadd.f32 %v2669, %v2934
        %v2936 = vpop.f32.mrf.mxu0
        %2937 = vmatprep.mubr.f32.mxu0 0.0
        %2938 = vmatmul.mubr.f32.gmra.mxu0 %v2709
        %v2939 = vpop.f32.mrf.mxu0
        %v2940 = vadd.f32 %v2669, %v2939
        %v2941 = vpop.f32.mrf.mxu0
        %2942 = vmatprep.mubr.f32.mxu0 0.0
        %2943 = vmatmul.mubr.f32.gmra.mxu0 %v2712
        %v2944 = vpop.f32.mrf.mxu0
        %v2945 = vadd.f32 %v2669, %v2944
        %v2946 = vpop.f32.mrf.mxu0
        %2947 = vmatprep.mubr.f32.mxu0 0.0
        %2948 = vmatmul.mubr.f32.gmra.mxu0 %v2715
        %v2949 = vpop.f32.mrf.mxu0
        %v2950 = vadd.f32 %v2669, %v2949
        %v2951 = vpop.f32.mrf.mxu0
        %2952 = vmatprep.mubr.f32.mxu0 0.0
        %2953 = vmatmul.mubr.f32.gmra.mxu0 %v2718
        %v2954 = vpop.f32.mrf.mxu0
        %v2955 = vadd.f32 %v2669, %v2954
        %v2956 = vpop.f32.mrf.mxu0
        %2957 = vmatprep.mubr.f32.mxu0 0.0
        %2958 = vmatmul.mubr.f32.gmra.mxu0 %v2721
        %v2959 = vpop.f32.mrf.mxu0
        %v2960 = vadd.f32 %v2669, %v2959
        %v2961 = vpop.f32.mrf.mxu0
        %2962 = vmatprep.mubr.f32.mxu0 0.0
        %2963 = vmatmul.mubr.f32.gmra.mxu0 %v2724
        %v2964 = vpop.f32.mrf.mxu0
        %v2965 = vadd.f32 %v2669, %v2964
        %v2966 = vpop.f32.mrf.mxu0
        %2967 = vmatprep.mubr.f32.mxu0 0.0
        %2968 = vmatmul.mubr.f32.gmra.mxu0 %v2727
        %v2969 = vpop.f32.mrf.mxu0
        %v2970 = vadd.f32 %v2669, %v2969
        %v2971 = vpop.f32.mrf.mxu0
        %2972 = vmatprep.mubr.f32.mxu0 0.0
        %2973 = vmatmul.mubr.f32.gmra.mxu0 %v2730
        %v2974 = vpop.f32.mrf.mxu0
        %v2975 = vadd.f32 %v2669, %v2974
        %v2976 = vpop.f32.mrf.mxu0
        %2977 = vmatprep.mubr.f32.mxu0 0.0
        %2978 = vmatmul.mubr.f32.gmra.mxu0 %v2733
        %v2979 = vpop.f32.mrf.mxu0
        %v2980 = vadd.f32 %v2669, %v2979
        %v2981 = vpop.f32.mrf.mxu0
        %2982 = vmatprep.mubr.f32.mxu0 0.0
        %2983 = vmatmul.mubr.f32.gmra.mxu0 %v2736
        %v2984 = vpop.f32.mrf.mxu0
        %v2985 = vadd.f32 %v2669, %v2984
        %v2986 = vpop.f32.mrf.mxu0
        %2987 = vmatprep.mubr.f32.mxu0 0.0
        %2988 = vmatmul.mubr.f32.gmra.mxu0 %v2739
        %v2989 = vpop.f32.mrf.mxu0
        %v2990 = vadd.f32 %v2669, %v2989
        %v2991 = vpop.f32.mrf.mxu0
        %2992 = vmatprep.mubr.f32.mxu0 0.0
        %2993 = vmatmul.mubr.f32.gmra.mxu0 %v2742
        %v2994 = vpop.f32.mrf.mxu0
        %v2995 = vadd.f32 %v2669, %v2994
        %v2996 = vpop.f32.mrf.mxu0
        %2997 = vmatprep.mubr.f32.mxu0 0.0
        %2998 = vmatmul.mubr.f32.gmra.mxu0 %v2745
        %v2999 = vpop.f32.mrf.mxu0
        %v3000 = vadd.f32 %v2669, %v2999
        %v3001 = vpop.f32.mrf.mxu0
        %3002 = vmatprep.mubr.f32.mxu0 0.0
        %3003 = vmatmul.mubr.f32.gmra.mxu0 %v2748
        %v3004 = vpop.f32.mrf.mxu0
        %v3005 = vadd.f32 %v2669, %v3004
        %v3006 = vpop.f32.mrf.mxu0
        %3007 = vmatprep.mubr.f32.mxu0 0.0
        %3008 = vmatmul.mubr.f32.gmra.mxu0 %v2751
        %v3009 = vpop.f32.mrf.mxu0
        %v3010 = vadd.f32 %v2669, %v3009
        %v3011 = vpop.f32.mrf.mxu0
        %3012 = vmatprep.mubr.f32.mxu0 0.0
        %3013 = vmatmul.mubr.f32.gmra.mxu0 %v2754
        %v3014 = vpop.f32.mrf.mxu0
        %v3015 = vadd.f32 %v2669, %v3014
        %v3016 = vpop.f32.mrf.mxu0
        %3017 = vmatprep.mubr.f32.mxu0 0.0
        %3018 = vmatmul.mubr.f32.gmra.mxu0 %v2757
        %v3019 = vpop.f32.mrf.mxu0
        %v3020 = vadd.f32 %v2669, %v3019
        %v3021 = vpop.f32.mrf.mxu0
        %3022 = vmatprep.mubr.f32.mxu0 0.0
        %3023 = vmatmul.mubr.f32.gmra.mxu0 %v2760
        %v3024 = vpop.f32.mrf.mxu0
        %v3025 = vadd.f32 %v2669, %v3024
        %v3026 = vpop.f32.mrf.mxu0
        %3027 = vmatprep.mubr.f32.mxu0 0.0
        %3028 = vmatmul.mubr.f32.gmra.mxu0 %v2763
        %v3029 = vpop.f32.mrf.mxu0
        %v3030 = vadd.f32 %v2669, %v3029
        %v3031 = vpop.f32.mrf.mxu0
        %3032 = vmatprep.mubr.f32.mxu0 0.0
        %3033 = vmatmul.mubr.f32.gmra.mxu0 %v2766
        %v3034 = vpop.f32.mrf.mxu0
        %v3035 = vadd.f32 %v2669, %v3034
        %v3036 = vpop.f32.mrf.mxu0
        %3037 = vmatprep.mubr.f32.mxu0 0.0
        %3038 = vmatmul.mubr.f32.gmra.mxu0 %v2769
        %v3039 = vpop.f32.mrf.mxu0
        %v3040 = vadd.f32 %v2669, %v3039
        %v3041 = vpop.f32.mrf.mxu0
        %3042 = vmatprep.mubr.f32.mxu0 0.0
        %3043 = vmatmul.mubr.f32.gmra.mxu0 %v2772
        %v3044 = vpop.f32.mrf.mxu0
        %v3045 = vadd.f32 %v2669, %v3044
        %v3046 = vpop.f32.mrf.mxu0
        %3047 = vmatprep.mubr.f32.mxu0 0.0
        %3048 = vmatmul.mubr.f32.gmra.mxu0 %v2775
        %v3049 = vpop.f32.mrf.mxu0
        %v3050 = vadd.f32 %v2669, %v3049
        %v3051 = vpop.f32.mrf.mxu0
        %3052 = vmatprep.mubr.f32.mxu0 0.0
        %3053 = vmatmul.mubr.f32.gmra.mxu0 %v2778
        %v3054 = vpop.f32.mrf.mxu0
        %v3055 = vadd.f32 %v2669, %v3054
        %v3056 = vpop.f32.mrf.mxu0
        %3057 = vmatprep.mubr.f32.mxu0 0.0
        %3058 = vmatmul.mubr.f32.gmra.mxu0 %v2781
        %v3059 = vpop.f32.mrf.mxu0
        %v3060 = vadd.f32 %v2669, %v3059
        %v3061 = vpop.f32.mrf.mxu0
        %3062 = vmatprep.mubr.f32.mxu0 0.0
        %3063 = vmatmul.mubr.f32.gmra.mxu0 %v2784
        %v3064 = vpop.f32.mrf.mxu0
        %v3065 = vadd.f32 %v2669, %v3064
        %v3066 = vpop.f32.mrf.mxu0
        %3067 = vmatprep.mubr.f32.mxu0 0.0
        %3068 = vmatmul.mubr.f32.gmra.mxu0 %v2787
        %v3069 = vpop.f32.mrf.mxu0
        %v3070 = vadd.f32 %v2669, %v3069
        %v3071 = vpop.f32.mrf.mxu0
        %3072 = vmatprep.mubr.f32.mxu0 0.0
        %3073 = vmatmul.mubr.f32.gmra.mxu0 %v2790
        %v3074 = vpop.f32.mrf.mxu0
        %v3075 = vadd.f32 %v2669, %v3074
        %v3076 = vpop.f32.mrf.mxu0
        %3077 = vmatprep.mubr.f32.mxu0 0.0
        %3078 = vmatmul.mubr.f32.gmra.mxu0 %v2793
        %v3079 = vpop.f32.mrf.mxu0
        %v3080 = vadd.f32 %v2669, %v3079
        %v3081 = vpop.f32.mrf.mxu0
        %3082 = vmatprep.mubr.f32.mxu0 0.0
        %3083 = vmatmul.mubr.f32.gmra.mxu0 %v2796
        %v3084 = vpop.f32.mrf.mxu0
        %v3085 = vadd.f32 %v2669, %v3084
        %v3086 = vpop.f32.mrf.mxu0
        %3087 = vmatprep.mubr.f32.mxu0 0.0
        %3088 = vmatmul.mubr.f32.gmra.mxu0 %v2799
        %v3089 = vpop.f32.mrf.mxu0
        %v3090 = vadd.f32 %v2669, %v3089
        %v3091 = vpop.f32.mrf.mxu0
        %3092 = vmatprep.mubr.f32.mxu0 0.0
        %3093 = vmatmul.mubr.f32.gmra.mxu0 %v2802
        %v3094 = vpop.f32.mrf.mxu0
        %v3095 = vadd.f32 %v2669, %v3094
        %v3096 = vpop.f32.mrf.mxu0
        %3097 = vmatprep.mubr.f32.mxu0 0.0
        %3098 = vmatmul.mubr.f32.gmra.mxu0 %v2805
        %v3099 = vpop.f32.mrf.mxu0
        %v3100 = vadd.f32 %v2669, %v3099
        %v3101 = vpop.f32.mrf.mxu0
        %3102 = vmatprep.mubr.f32.mxu0 0.0
        %3103 = vmatmul.mubr.f32.gmra.mxu0 %v2808
        %v3104 = vpop.f32.mrf.mxu0
        %v3105 = vadd.f32 %v2669, %v3104
        %v3106 = vpop.f32.mrf.mxu0
        %3107 = vmatprep.mubr.f32.mxu0 0.0
        %3108 = vmatmul.mubr.f32.gmra.mxu0 %v2811
        %v3109 = vpop.f32.mrf.mxu0
        %v3110 = vadd.f32 %v2669, %v3109
        %v3111 = vpop.f32.mrf.mxu0
        %3112 = vdwg.mxu0
        %v3113 = vmax.f32 %v2880, 0.0
        %v3114 = vmax.f32 %v2885, 0.0
        %v3115 = vmax.f32 %v2890, 0.0
        %v3116 = vmax.f32 %v2895, 0.0
        %v3117 = vmax.f32 %v2900, 0.0
        %v3118 = vmax.f32 %v2905, 0.0
        %v3119 = vmax.f32 %v2910, 0.0
        %v3120 = vmax.f32 %v2915, 0.0
        %v3121 = vmax.f32 %v2920, 0.0
        %v3122 = vmax.f32 %v2925, 0.0
        %v3123 = vmax.f32 %v2930, 0.0
        %v3124 = vmax.f32 %v2935, 0.0
        %v3125 = vmax.f32 %v2940, 0.0
        %v3126 = vmax.f32 %v2945, 0.0
        %v3127 = vmax.f32 %v2950, 0.0
        %v3128 = vmax.f32 %v2955, 0.0
        %v3129 = vmax.f32 %v2960, 0.0
        %v3130 = vmax.f32 %v2965, 0.0
        %v3131 = vmax.f32 %v2970, 0.0
        %v3132 = vmax.f32 %v2975, 0.0
        %v3133 = vmax.f32 %v2980, 0.0
        %v3134 = vmax.f32 %v2985, 0.0
        %v3135 = vmax.f32 %v2990, 0.0
        %v3136 = vmax.f32 %v2995, 0.0
        %v3137 = vmax.f32 %v3000, 0.0
        %v3138 = vmax.f32 %v3005, 0.0
        %v3139 = vmax.f32 %v3010, 0.0
        %v3140 = vmax.f32 %v3015, 0.0
        %v3141 = vmax.f32 %v3020, 0.0
        %v3142 = vmax.f32 %v3025, 0.0
        %v3143 = vmax.f32 %v3030, 0.0
        %v3144 = vmax.f32 %v3035, 0.0
        %v3145 = vmax.f32 %v3040, 0.0
        %v3146 = vmax.f32 %v3045, 0.0
        %v3147 = vmax.f32 %v3050, 0.0
        %v3148 = vmax.f32 %v3055, 0.0
        %v3149 = vmax.f32 %v3060, 0.0
        %v3150 = vmax.f32 %v3065, 0.0
        %v3151 = vmax.f32 %v3070, 0.0
        %v3152 = vmax.f32 %v3075, 0.0
        %v3153 = vmax.f32 %v3080, 0.0
        %v3154 = vmax.f32 %v3085, 0.0
        %v3155 = vmax.f32 %v3090, 0.0
        %v3156 = vmax.f32 %v3095, 0.0
        %v3157 = vmax.f32 %v3100, 0.0
        %v3158 = vmax.f32 %v3105, 0.0
        %v3159 = vmax.f32 %v3110, 0.0
        %v3160 = vld [vmem:[%s3] sm:$0x7]
        %v3162 = vlaneseq
        %v3163 = vshrl.u32 %v3162, 7
        %v3164 = vsub.s32 0, %v3163
        %v3165 = vrot.slane %v3160, %v3164
        %v3166 = vlaneseq
        %v3167 = vshrl.u32 %v3166, 7
        %v3168 = vsub.s32 1, %v3167
        %v3169 = vrot.slane %v3160, %v3168
        %v3170 = vlaneseq
        %v3171 = vshrl.u32 %v3170, 7
        %v3172 = vsub.s32 2, %v3171
        %v3173 = vrot.slane %v3160, %v3172
        %vm3176 = vcmask 982016
        %v3177 = vsel %vm3176, %v3173, 0
        %3179 = vmatprep.subr.mxu0 0.0
        %3180 = vmatpush1.msra.mxu0 %v3128
        %3181 = vmatprep.subr.mxu0 0.0
        %3182 = vmatpush1.msra.mxu0 %v3127
        %3183 = vmatprep.subr.mxu0 0.0
        %3184 = vmatpush1.msra.mxu0 %v3126
        %3185 = vmatprep.subr.mxu0 0.0
        %3186 = vmatpush1.msra.mxu0 %v3125
        %3187 = vmatprep.subr.mxu0 0.0
        %3188 = vmatpush1.msra.mxu0 %v3124
        %3189 = vmatprep.subr.mxu0 0.0
        %3190 = vmatpush1.msra.mxu0 %v3123
        %3191 = vmatprep.subr.mxu0 0.0
        %3192 = vmatpush1.msra.mxu0 %v3122
        %3193 = vmatprep.subr.mxu0 0.0
        %3194 = vmatpush1.msra.mxu0 %v3121
        %3195 = vmatprep.subr.mxu0 0.0
        %3196 = vmatpush1.msra.mxu0 %v3120
        %3197 = vmatprep.subr.mxu0 0.0
        %3198 = vmatpush1.msra.mxu0 %v3119
        %3199 = vmatprep.subr.mxu0 0.0
        %3200 = vmatpush1.msra.mxu0 %v3118
        %3201 = vmatprep.subr.mxu0 0.0
        %3202 = vmatpush1.msra.mxu0 %v3117
        %3203 = vmatprep.subr.mxu0 0.0
        %3204 = vmatpush1.msra.mxu0 %v3116
        %3205 = vmatprep.subr.mxu0 0.0
        %3206 = vmatpush1.msra.mxu0 %v3115
        %3207 = vmatprep.subr.mxu0 0.0
        %3208 = vmatpush1.msra.mxu0 %v3114
        %3209 = vmatprep.subr.mxu0 0.0
        %3210 = vmatpush1.msra.mxu0 %v3113
        %3211 = vmatprep.subr.mxu0 0.0
        %3212 = vmatpush2.msra.mxu0 %v3144
        %3213 = vmatprep.subr.mxu0 0.0
        %3214 = vmatpush2.msra.mxu0 %v3143
        %3215 = vmatprep.subr.mxu0 0.0
        %3216 = vmatpush2.msra.mxu0 %v3142
        %3217 = vmatprep.subr.mxu0 0.0
        %3218 = vmatpush2.msra.mxu0 %v3141
        %3219 = vmatprep.subr.mxu0 0.0
        %3220 = vmatpush2.msra.mxu0 %v3140
        %3221 = vmatprep.subr.mxu0 0.0
        %3222 = vmatpush2.msra.mxu0 %v3139
        %3223 = vmatprep.subr.mxu0 0.0
        %3224 = vmatpush2.msra.mxu0 %v3138
        %3225 = vmatprep.subr.mxu0 0.0
        %3226 = vmatpush2.msra.mxu0 %v3137
        %3227 = vmatprep.subr.mxu0 0.0
        %3228 = vmatpush2.msra.mxu0 %v3136
        %3229 = vmatprep.subr.mxu0 0.0
        %3230 = vmatpush2.msra.mxu0 %v3135
        %3231 = vmatprep.subr.mxu0 0.0
        %3232 = vmatpush2.msra.mxu0 %v3134
        %3233 = vmatprep.subr.mxu0 0.0
        %3234 = vmatpush2.msra.mxu0 %v3133
        %3235 = vmatprep.subr.mxu0 0.0
        %3236 = vmatpush2.msra.mxu0 %v3132
        %3237 = vmatprep.subr.mxu0 0.0
        %3238 = vmatpush2.msra.mxu0 %v3131
        %3239 = vmatprep.subr.mxu0 0.0
        %3240 = vmatpush2.msra.mxu0 %v3130
        %3241 = vmatprep.subr.mxu0 0.0
        %3242 = vmatpush2.msra.mxu0 %v3129
        %3243 = vmatprep.mubr.f32.mxu0 %v3169
        %3244 = vmatmul.mubr.f32.gmra.mxu0 %v3165
        %v3245 = vpop.f32.mrf.mxu0
        %v3246 = vadd.f32 0.0, %v3245
        %v3247 = vpop.f32.mrf.mxu0
        %3248 = vdwg.mxu0
        %3249 = vmatprep.subr.mxu0 0.0
        %3250 = vmatpush1.msra.mxu0 0.0
        %3251 = vmatprep.subr.mxu0 0.0
        %3252 = vmatpush1.msra.mxu0 %v3159
        %3253 = vmatprep.subr.mxu0 0.0
        %3254 = vmatpush1.msra.mxu0 %v3158
        %3255 = vmatprep.subr.mxu0 0.0
        %3256 = vmatpush1.msra.mxu0 %v3157
        %3257 = vmatprep.subr.mxu0 0.0
        %3258 = vmatpush1.msra.mxu0 %v3156
        %3259 = vmatprep.subr.mxu0 0.0
        %3260 = vmatpush1.msra.mxu0 %v3155
        %3261 = vmatprep.subr.mxu0 0.0
        %3262 = vmatpush1.msra.mxu0 %v3154
        %3263 = vmatprep.subr.mxu0 0.0
        %3264 = vmatpush1.msra.mxu0 %v3153
        %3265 = vmatprep.subr.mxu0 0.0
        %3266 = vmatpush1.msra.mxu0 %v3152
        %3267 = vmatprep.subr.mxu0 0.0
        %3268 = vmatpush1.msra.mxu0 %v3151
        %3269 = vmatprep.subr.mxu0 0.0
        %3270 = vmatpush1.msra.mxu0 %v3150
        %3271 = vmatprep.subr.mxu0 0.0
        %3272 = vmatpush1.msra.mxu0 %v3149
        %3273 = vmatprep.subr.mxu0 0.0
        %3274 = vmatpush1.msra.mxu0 %v3148
        %3275 = vmatprep.subr.mxu0 0.0
        %3276 = vmatpush1.msra.mxu0 %v3147
        %3277 = vmatprep.subr.mxu0 0.0
        %3278 = vmatpush1.msra.mxu0 %v3146
        %3279 = vmatprep.subr.mxu0 0.0
        %3280 = vmatpush1.msra.mxu0 %v3145
        %3281 = vmatprep.subr.mxu0 0.0
        %3282 = vmatpush2.msra.mxu0 0.0
        %3283 = vmatprep.subr.mxu0 0.0
        %3284 = vmatpush2.msra.mxu0 0.0
        %3285 = vmatprep.subr.mxu0 0.0
        %3286 = vmatpush2.msra.mxu0 0.0
        %3287 = vmatprep.subr.mxu0 0.0
        %3288 = vmatpush2.msra.mxu0 0.0
        %3289 = vmatprep.subr.mxu0 0.0
        %3290 = vmatpush2.msra.mxu0 0.0
        %3291 = vmatprep.subr.mxu0 0.0
        %3292 = vmatpush2.msra.mxu0 0.0
        %3293 = vmatprep.subr.mxu0 0.0
        %3294 = vmatpush2.msra.mxu0 0.0
        %3295 = vmatprep.subr.mxu0 0.0
        %3296 = vmatpush2.msra.mxu0 0.0
        %3297 = vmatprep.subr.mxu0 0.0
        %3298 = vmatpush2.msra.mxu0 0.0
        %3299 = vmatprep.subr.mxu0 0.0
        %3300 = vmatpush2.msra.mxu0 0.0
        %3301 = vmatprep.subr.mxu0 0.0
        %3302 = vmatpush2.msra.mxu0 0.0
        %3303 = vmatprep.subr.mxu0 0.0
        %3304 = vmatpush2.msra.mxu0 0.0
        %3305 = vmatprep.subr.mxu0 0.0
        %3306 = vmatpush2.msra.mxu0 0.0
        %3307 = vmatprep.subr.mxu0 0.0
        %3308 = vmatpush2.msra.mxu0 0.0
        %3309 = vmatprep.subr.mxu0 0.0
        %3310 = vmatpush2.msra.mxu0 0.0
        %3311 = vmatprep.subr.mxu0 0.0
        %3312 = vmatpush2.msra.mxu0 0.0
        %3313 = vmatprep.mubr.f32.mxu0 0.0
        %3314 = vmatmul.mubr.f32.gmra.mxu0 %v3177
        %v3315 = vpop.f32.mrf.mxu0
        %v3316 = vadd.f32 %v3246, %v3315
        %v3317 = vpop.f32.mrf.mxu0
        %3318 = vdwg.mxu0
        %v3319 = vld [vmem:[%s4] sm:$0xff]
        %v3320 = vld [vmem:[%s5] sm:$0x1]
        %v3322 = vsel %vm296, %v3316, 0
        %3324 = vmatprep.subr.mxu0 0.0
        %3325 = vmatpush1.msra.mxu0 0.0
        %3326 = vmatprep.subr.mxu0 0.0
        %3327 = vmatpush1.msra.mxu0 0.0
        %3328 = vmatprep.subr.mxu0 0.0
        %3329 = vmatpush1.msra.mxu0 0.0
        %3330 = vmatprep.subr.mxu0 0.0
        %3331 = vmatpush1.msra.mxu0 0.0
        %3332 = vmatprep.subr.mxu0 0.0
        %3333 = vmatpush1.msra.mxu0 0.0
        %3334 = vmatprep.subr.mxu0 0.0
        %3335 = vmatpush1.msra.mxu0 0.0
        %3336 = vmatprep.subr.mxu0 0.0
        %3337 = vmatpush1.msra.mxu0 0.0
        %3338 = vmatprep.subr.mxu0 0.0
        %3339 = vmatpush1.msra.mxu0 0.0
        %3340 = vmatprep.subr.mxu0 0.0
        %3341 = vmatpush1.msra.mxu0 0.0
        %3342 = vmatprep.subr.mxu0 0.0
        %3343 = vmatpush1.msra.mxu0 0.0
        %3344 = vmatprep.subr.mxu0 0.0
        %3345 = vmatpush1.msra.mxu0 0.0
        %3346 = vmatprep.subr.mxu0 0.0
        %3347 = vmatpush1.msra.mxu0 0.0
        %3348 = vmatprep.subr.mxu0 0.0
        %3349 = vmatpush1.msra.mxu0 0.0
        %3350 = vmatprep.subr.mxu0 0.0
        %3351 = vmatpush1.msra.mxu0 0.0
        %3352 = vmatprep.subr.mxu0 0.0
        %3353 = vmatpush1.msra.mxu0 0.0
        %3354 = vmatprep.subr.mxu0 0.0
        %3355 = vmatpush1.msra.mxu0 %v3319
        %3356 = vmatprep.subr.mxu0 0.0
        %3357 = vmatpush2.msra.mxu0 0.0
        %3358 = vmatprep.subr.mxu0 0.0
        %3359 = vmatpush2.msra.mxu0 0.0
        %3360 = vmatprep.subr.mxu0 0.0
        %3361 = vmatpush2.msra.mxu0 0.0
        %3362 = vmatprep.subr.mxu0 0.0
        %3363 = vmatpush2.msra.mxu0 0.0
        %3364 = vmatprep.subr.mxu0 0.0
        %3365 = vmatpush2.msra.mxu0 0.0
        %3366 = vmatprep.subr.mxu0 0.0
        %3367 = vmatpush2.msra.mxu0 0.0
        %3368 = vmatprep.subr.mxu0 0.0
        %3369 = vmatpush2.msra.mxu0 0.0
        %3370 = vmatprep.subr.mxu0 0.0
        %3371 = vmatpush2.msra.mxu0 0.0
        %3372 = vmatprep.subr.mxu0 0.0
        %3373 = vmatpush2.msra.mxu0 0.0
        %3374 = vmatprep.subr.mxu0 0.0
        %3375 = vmatpush2.msra.mxu0 0.0
        %3376 = vmatprep.subr.mxu0 0.0
        %3377 = vmatpush2.msra.mxu0 0.0
        %3378 = vmatprep.subr.mxu0 0.0
        %3379 = vmatpush2.msra.mxu0 0.0
        %3380 = vmatprep.subr.mxu0 0.0
        %3381 = vmatpush2.msra.mxu0 0.0
        %3382 = vmatprep.subr.mxu0 0.0
        %3383 = vmatpush2.msra.mxu0 0.0
        %3384 = vmatprep.subr.mxu0 0.0
        %3385 = vmatpush2.msra.mxu0 0.0
        %3386 = vmatprep.subr.mxu0 0.0
        %3387 = vmatpush2.msra.mxu0 0.0
        %3388 = vmatprep.mubr.f32.mxu0 0.0
        %3389 = vmatmul.mubr.f32.gmra.mxu0 %v3322
        %v3390 = vpop.f32.mrf.mxu0
        %v3391 = vadd.f32 %v3320, %v3390
        %v3392 = vpop.f32.mrf.mxu0
        %3393 = vdwg.mxu0
        %3394 = vst [vmem:[%s243] sm:$0x1] %v3391
        %s3395 = sand.u32 %s159, 1
        %s3396 = scalar_lea.sflag [#allocation4], %s3395
        %s3397 = sand.u32 %s159, 1
        %s3398 = scalar_lea.vmem [#allocation3], %s3397
        // Predicated region
        $region45: #{gbml_forward.1} parent=43 // pred_check
          %p3399 = pneg %p169
        $region46: #{gbml_forward.1} parent=43 // pred_check_branch
          %3401 = sbr.rel (%p3399) target = $region48
        $region47: #{gbml_forward.1} parent=43 // pred_region
          %s3403 = ssub.s32 16, 16
          %3404 = vsyncadd %s3396, %s3403
          %s3405 = smul.addr %s20, 16
          %s3406 = scalar_lea.hbm %s6, %s3405
          %s3408 = sshll.u32 %s3398, 4
          %s3409 = int_to_ptr.vmem [resolvable:$true] %s3408
          %3411 = dma.vmem_to_hbm [thread:$0]  %s3409, 16, %s3406, %s3396
        $region48: #{gbml_forward.1} parent=43 // pred_fallthru
          _
      $region44: #{gbml_forward.1} parent=5 // pred_fallthru
        _
      %p3412 = scmp.le.s32.totalorder 2, %s15
      // Predicated region
      $region49: #{gbml_forward.1} parent=5 // pred_check
        %p3413 = pneg %p3412
      $region50: #{gbml_forward.1} parent=5 // pred_check_branch
        %3415 = sbr.rel (%p3413) target = $region52
      $region51: #{gbml_forward.1} parent=5 // pred_region
        %s3416 = ssub.s32 %s15, 2
        // Predicated region
        $region53: #{gbml_forward.1} parent=51 // pred_check
          %p3417 = pneg %p175
        $region54: #{gbml_forward.1} parent=51 // pred_check_branch
          %3419 = sbr.rel (%p3417) target = $region56
        $region55: #{gbml_forward.1} parent=51 // pred_region
          %s3420 = sand.u32 %s160, 1
          %s3421 = scalar_lea.sflag [#allocation4], %s3420
          %s3422 = sand.u32 %s160, 1
          %s3423 = scalar_lea.vmem [#allocation3], %s3422
          %3424 = dma.done %s3421, 16
        $region56: #{gbml_forward.1} parent=51 // pred_fallthru
          _
      $region52: #{gbml_forward.1} parent=5 // pred_fallthru
        _
    $region6: #{gbml_forward.1} parent=1 // loop_footer
      %s19 = sadd.s32 1, %s15
    $region7: #{gbml_forward.1} parent=1 // loop_footer_branch
      %14 = sbr.rel target = $region3
    $region8: #{gbml_forward.1} parent=1 // loop_exit
      _
    %3425 = vsyncpa [#allocation4], 1
    %s3426 = scalar_lea.sflag [#allocation4], 1
    %3427 = vsyncpa %s3426, 1

</llo_original>
